<compile_context>
chip_gen: v7x
topology: tpu7x:2x2x1
jax: 0.10.0
libtpu: 0.0.40
codegen_flags: <defaults>
</compile_context>

<pallas_src>
import jax
import jax.numpy as jnp
from jax.experimental import pallas as pl
from jax.experimental.pallas import tpu as pltpu


def _decoder_block_kernel(x_ref, w_ref, b_ref, o_ref):
    # x_ref : (1, H+2, W+2, Cin)     zero-padded input, resident per batch element
    # w_ref : (4, 4, Cin, Cout)      folded 2x2 kernels, [phase p=2a+b, tap t=2dr+dc, ci, co]
    # b_ref : (1, Cout)              conv bias (f32)
    # o_ref : (1, TH, 2, W, 2*Cout)  output row tile; row-major == NHWC rows [2*row0, 2*(row0+TH))
    _, Hp, Wp, Cin = x_ref.shape
    W = Wp - 2
    TH = o_ref.shape[1]
    Cout = b_ref.shape[-1]

    r = pl.program_id(1)
    row0 = pl.multiple_of(r * TH, TH)      # first (un-upsampled) output row of this tile

    bias = b_ref[...].astype(jnp.float32)  # (1, Cout), broadcasts over (TH*W, Cout)
    compute_dtype = w_ref.dtype            # bf16 or f32 operands; accumulation is f32

    # Tap-outer loop: each of the 9 distinct shifted windows is sliced exactly once and
    # immediately consumed by the accumulate matmuls of every phase that uses it.
    # Phase p=(a,b), local 2x2 tap (dr,dc)  <->  global tap (ty,tx) = (a+dr, b+dc).
    acc = [None, None, None, None]         # four (TH*W, Cout) f32 accumulators
    for ty in range(3):
        for tx in range(3):
            tap = x_ref[0, pl.ds(row0 + ty, TH), tx:tx + W, :]
            tap = tap.reshape(TH * W, Cin).astype(compute_dtype)
            for a in (0, 1):
                for b in (0, 1):
                    dr, dc = ty - a, tx - b
                    if not (0 <= dr <= 1 and 0 <= dc <= 1):
                        continue
                    p = 2 * a + b
                    contrib = jnp.dot(tap, w_ref[p, 2 * dr + dc],
                                      preferred_element_type=jnp.float32)
                    acc[p] = contrib if acc[p] is None else acc[p] + contrib

    # f32 epilogue (bias + ReLU) and direct lane-slice store per phase -- no
    # concatenated (TH, W, 2*Cout) intermediate on the store path.
    for a in (0, 1):
        for b in (0, 1):
            y = jnp.maximum(acc[2 * a + b] + bias, 0.0).reshape(TH, W, Cout)
            o_ref[0, :, a, :, b * Cout:(b + 1) * Cout] = y.astype(o_ref.dtype)


def _phase_tap_weights(w_hwio, dtype):
    """Fold the 3x3 conv over a 2x-nearest-upsampled image into 4 phase-wise 2x2 kernels.

    Returns (4, 4, Cin, Cout): [phase p = 2*a + b, tap t = 2*dr + dc, Cin, Cout].
    The fold is done in f32 regardless of the requested storage dtype.
    """
    w = w_hwio.astype(jnp.float32)
    # For output row parity a, the 3 conv taps collapse onto 2 input rows:
    #   a=0: input-row offset -1 gets w[0];      offset 0 gets w[1] + w[2]
    #   a=1: input-row offset  0 gets w[0]+w[1]; offset +1 gets w[2]
    # (same decomposition along columns with b / dx).
    groups = (((0,), (1, 2)), ((0, 1), (2,)))   # groups[a][dr] -> contributing dy taps
    phases = []
    for a in (0, 1):
        for b in (0, 1):
            taps = []
            for dr in (0, 1):
                for dc in (0, 1):
                    acc = jnp.zeros(w.shape[2:], jnp.float32)
                    for dy in groups[a][dr]:
                        for dx in groups[b][dc]:
                            acc = acc + w[dy, dx]
                    taps.append(acc)                    # (Cin, Cout)
            phases.append(jnp.stack(taps, axis=0))      # (4, Cin, Cout)
    return jnp.stack(phases, axis=0).astype(dtype)      # (4, 4, Cin, Cout)


def _vmem_limit_bytes():
    """Per-generation scoped-VMEM request: ~48 MiB on v7x (64 MiB physical), 64 MiB on
    v5e/v6e (128 MiB physical).  Falls back to the compiler default if unavailable."""
    try:
        cap = getattr(pltpu.get_tpu_info(), "vmem_capacity_bytes", None)
    except Exception:
        return None
    if cap is None:
        return None
    return min(64 * 1024 * 1024, (3 * int(cap)) // 4)


def _choose_row_tile(H, W, Cin, Cout, in_bytes, out_bytes, budget):
    """Largest divisor of H whose per-step working set fits `budget`, preferring >= 2
    row tiles so v7x megacore has parallel work even at batch size 1."""
    def est(th):
        x_blk = (H + 2) * (W + 2) * Cin * in_bytes       # resident padded input
        out_blk = th * 2 * W * 2 * Cout * out_bytes      # output row tile
        accs = 4 * th * W * Cout * 4                     # f32 phase accumulators
        w_blk = 16 * Cin * Cout * in_bytes
        tap = th * W * Cin * 4
        return 2 * x_blk + 2 * out_blk + accs + 2 * w_blk + tap
    divisors = sorted((d for d in range(1, H + 1) if H % d == 0), reverse=True)
    fitting = [d for d in divisors if est(d) <= budget] or [divisors[-1]]
    for th in fitting:
        if H // th >= 2:
            return th
    return fitting[0]


def unet_decoder_block_nhwc(x_nhwc, w_hwio, bias, *, compute_dtype=None):
    """Upsample(x2, nearest) -> Conv2d(3x3, pad=1) -> ReLU, channels-last in and out.

    x_nhwc: (N, H, W, Cin); w_hwio: (3, 3, Cin, Cout); bias: (Cout,).
    `compute_dtype` (e.g. jnp.bfloat16) selects the MXU operand dtype; accumulation,
    bias and ReLU are always f32.  Returns (N, 2H, 2W, Cout) in x_nhwc.dtype.
    """
    N, H, W, Cin = x_nhwc.shape
    Cout = w_hwio.shape[-1]
    if compute_dtype is None:
        compute_dtype = x_nhwc.dtype
    compute_dtype = jnp.dtype(compute_dtype)
    out_dtype = x_nhwc.dtype

    # TODO(synk): fold the 1-px zero pad into the kernel (boundary-masked taps) to save
    # one full-tensor HBM pass on very large activations.
    x_pad = jnp.pad(x_nhwc, ((0, 0), (1, 1), (1, 1), (0, 0))).astype(compute_dtype)
    w_phase = _phase_tap_weights(w_hwio, compute_dtype)       # (4, 4, Cin, Cout)
    bias2d = bias.reshape(1, Cout).astype(jnp.float32)

    vmem_limit = _vmem_limit_bytes()
    budget = (vmem_limit if vmem_limit is not None else 32 * 1024 * 1024) // 2
    TH = _choose_row_tile(H, W, Cin, Cout, compute_dtype.itemsize,
                          jnp.dtype(out_dtype).itemsize, budget)

    cp_kwargs = dict(dimension_semantics=("parallel", "parallel"))
    if vmem_limit is not None:
        cp_kwargs["vmem_limit_bytes"] = vmem_limit

    out5 = pl.pallas_call(
        _decoder_block_kernel,
        out_shape=jax.ShapeDtypeStruct((N, H, 2, W, 2 * Cout), out_dtype),
        grid_spec=pltpu.PrefetchScalarGridSpec(
            num_scalar_prefetch=0,
            grid=(N, H // TH),
            in_specs=[
                # Padded input stays resident while r sweeps one batch element.
                pl.BlockSpec((1, H + 2, W + 2, Cin), lambda n, r: (n, 0, 0, 0)),
                pl.BlockSpec((4, 4, Cin, Cout), lambda n, r: (0, 0, 0, 0)),
                pl.BlockSpec((1, Cout), lambda n, r: (0, 0)),
            ],
            out_specs=pl.BlockSpec((1, TH, 2, W, 2 * Cout),
                                   lambda n, r: (n, r, 0, 0, 0)),
        ),
        compiler_params=pltpu.CompilerParams(**cp_kwargs),
    )(x_pad, w_phase, bias2d)

    # (N, H, 2, W, 2*Cout) is row-major identical to NHWC (N, 2H, 2W, Cout): free view.
    return out5.reshape(N, 2 * H, 2 * W, Cout)


def unet_decoder_block(x_nchw, w_hwio, bias, *, compute_dtype=None):
    """PyTorch-layout wrapper: x (N, Cin, H, W) -> (N, Cout, 2H, 2W).

    Prefer unet_decoder_block_nhwc across a full decoder to avoid the two
    transpose HBM round-trips added here for NCHW compatibility.
    """
    x_nhwc = jnp.transpose(x_nchw, (0, 2, 3, 1))
    out_nhwc = unet_decoder_block_nhwc(x_nhwc, w_hwio, bias,
                                       compute_dtype=compute_dtype)
    return jnp.transpose(out_nhwc, (0, 3, 1, 2))


def _reference_forward(x_nchw, w_hwio, bias):
    """Pure-JAX reference matching PyTorch: Upsample(2, nearest) -> Conv2d(3, pad=1) -> ReLU."""
    up = jnp.repeat(jnp.repeat(x_nchw, 2, axis=2), 2, axis=3)
    w_oihw = jnp.transpose(w_hwio, (3, 2, 0, 1))
    y = jax.lax.conv_general_dilated(
        up, w_oihw, window_strides=(1, 1), padding=((1, 1), (1, 1)),
        dimension_numbers=("NCHW", "OIHW", "NCHW"))
    return jnp.maximum(y + bias[None, :, None, None], 0.0)


if __name__ == "__main__":
    N, Cin, Cout, H, W = 2, 4, 8, 16, 16

    key = jax.random.PRNGKey(0)
    kx, kw, kb = jax.random.split(key, 3)
    x = jax.random.normal(kx, (N, Cin, H, W), dtype=jnp.float32)
    # Synthetic conv parameters (shapes as in nn.Conv2d(Cin, Cout, 3, padding=1)).
    w = jax.random.normal(kw, (3, 3, Cin, Cout), dtype=jnp.float32) * 0.1
    b = jax.random.normal(kb, (Cout,), dtype=jnp.float32) * 0.1

    ref = jax.block_until_ready(_reference_forward(x, w, b))

    # f32 operand path: strict check.
    out = jax.block_until_ready(unet_decoder_block(x, w, b))
    assert out.shape == (N, Cout, 2 * H, 2 * W), out.shape
    if not jnp.allclose(out, ref, atol=1e-4, rtol=1e-4):
        raise AssertionError("Pallas kernel (f32) output does not match reference")

    # bf16 operand path (f32 accumulation / epilogue): looser tolerance.
    out_bf16 = jax.block_until_ready(
        unet_decoder_block(x, w, b, compute_dtype=jnp.bfloat16))
    if not jnp.allclose(out_bf16, ref, atol=5e-2, rtol=5e-2):
        raise AssertionError("Pallas kernel (bf16 operands) does not match reference")

    print("KERNEL_OK")
</pallas_src>

<mosaic_0001>
module attributes {stable_mosaic.version = 11 : i64} {
  func.func @_decoder_block_kernel(%arg0: i32, %arg1: i32, %arg2: memref<1x18x18x4xf32, #tpu.memory_space<vmem>>, %arg3: memref<4x4x4x8xf32, #tpu.memory_space<vmem>>, %arg4: memref<1x8xf32, #tpu.memory_space<vmem>>, %arg5: memref<1x8x2x16x16xf32, #tpu.memory_space<vmem>>) attributes {dimension_semantics = [#tpu.dimension_semantics<parallel>, #tpu.dimension_semantics<parallel>], iteration_bounds = array<i64: 2, 2>, scalar_prefetch = 0 : i64, scratch_operands = 0 : i64, tpu.core_type = #tpu.core_type<tc>, window_params = [{transform_indices = @transform_0, window_bounds = array<i64: 1, 18, 18, 4>}, {pipeline_mode = #tpu.pipeline_mode<synchronous>, transform_indices = @transform_1, window_bounds = array<i64: 4, 4, 4, 8>}, {pipeline_mode = #tpu.pipeline_mode<synchronous>, transform_indices = @transform_2, window_bounds = array<i64: 1, 8>}, {transform_indices = @transform_3, window_bounds = array<i64: 1, 8, 2, 16, 16>}]} {
    %c8_i32 = arith.constant 8 : i32
    %0 = arith.muli %arg1, %c8_i32 : i32
    %1 = tpu.assume_multiple %0, 8 : i32
    %c0 = arith.constant 0 : index
    %c0_0 = arith.constant 0 : index
    %2 = vector.load %arg4[%c0, %c0_0] : memref<1x8xf32, #tpu.memory_space<vmem>>, vector<1x8xf32>
    %c0_i32 = arith.constant 0 : i32
    %3 = arith.addi %1, %c0_i32 : i32
    %c0_1 = arith.constant 0 : index
    %4 = arith.index_cast %3 : i32 to index
    %c0_2 = arith.constant 0 : index
    %c0_3 = arith.constant 0 : index
    %5 = vector.load %arg2[%c0_1, %4, %c0_2, %c0_3] : memref<1x18x18x4xf32, #tpu.memory_space<vmem>>, vector<1x8x16x4xf32>
    %6 = vector.shape_cast %5 : vector<1x8x16x4xf32> to vector<8x16x4xf32>
    %7 = vector.shape_cast %6 : vector<8x16x4xf32> to vector<128x4xf32>
    %c0_4 = arith.constant 0 : index
    %c0_5 = arith.constant 0 : index
    %c0_6 = arith.constant 0 : index
    %c0_7 = arith.constant 0 : index
    %8 = vector.load %arg3[%c0_4, %c0_5, %c0_6, %c0_7] : memref<4x4x4x8xf32, #tpu.memory_space<vmem>>, vector<1x1x4x8xf32>
    %9 = vector.shape_cast %8 : vector<1x1x4x8xf32> to vector<4x8xf32>
    %cst = arith.constant dense<0.000000e+00> : vector<128x8xf32>
    %10 = tpu.matmul %7, %9, %cst {dimension_numbers = #tpu.dot_dimension_numbers<[1], [0], [0], [1], [0, 0, 1, 1], [], []>} : vector<128x4xf32>, vector<4x8xf32>, vector<128x8xf32> -> vector<128x8xf32>
    %c0_i32_8 = arith.constant 0 : i32
    %11 = arith.addi %1, %c0_i32_8 : i32
    %c0_9 = arith.constant 0 : index
    %12 = arith.index_cast %11 : i32 to index
    %c1 = arith.constant 1 : index
    %c0_10 = arith.constant 0 : index
    %13 = vector.load %arg2[%c0_9, %12, %c1, %c0_10] : memref<1x18x18x4xf32, #tpu.memory_space<vmem>>, vector<1x8x16x4xf32>
    %14 = vector.shape_cast %13 : vector<1x8x16x4xf32> to vector<8x16x4xf32>
    %15 = vector.shape_cast %14 : vector<8x16x4xf32> to vector<128x4xf32>
    %c0_11 = arith.constant 0 : index
    %c1_12 = arith.constant 1 : index
    %c0_13 = arith.constant 0 : index
    %c0_14 = arith.constant 0 : index
    %16 = vector.load %arg3[%c0_11, %c1_12, %c0_13, %c0_14] : memref<4x4x4x8xf32, #tpu.memory_space<vmem>>, vector<1x1x4x8xf32>
    %17 = vector.shape_cast %16 : vector<1x1x4x8xf32> to vector<4x8xf32>
    %cst_15 = arith.constant dense<0.000000e+00> : vector<128x8xf32>
    %18 = tpu.matmul %15, %17, %cst_15 {dimension_numbers = #tpu.dot_dimension_numbers<[1], [0], [0], [1], [0, 0, 1, 1], [], []>} : vector<128x4xf32>, vector<4x8xf32>, vector<128x8xf32> -> vector<128x8xf32>
    %19 = arith.addf %10, %18 : vector<128x8xf32>
    %c1_16 = arith.constant 1 : index
    %c0_17 = arith.constant 0 : index
    %c0_18 = arith.constant 0 : index
    %c0_19 = arith.constant 0 : index
    %20 = vector.load %arg3[%c1_16, %c0_17, %c0_18, %c0_19] : memref<4x4x4x8xf32, #tpu.memory_space<vmem>>, vector<1x1x4x8xf32>
    %21 = vector.shape_cast %20 : vector<1x1x4x8xf32> to vector<4x8xf32>
    %cst_20 = arith.constant dense<0.000000e+00> : vector<128x8xf32>
    %22 = tpu.matmul %15, %21, %cst_20 {dimension_numbers = #tpu.dot_dimension_numbers<[1], [0], [0], [1], [0, 0, 1, 1], [], []>} : vector<128x4xf32>, vector<4x8xf32>, vector<128x8xf32> -> vector<128x8xf32>
    %c0_i32_21 = arith.constant 0 : i32
    %23 = arith.addi %1, %c0_i32_21 : i32
    %c0_22 = arith.constant 0 : index
    %24 = arith.index_cast %23 : i32 to index
    %c2 = arith.constant 2 : index
    %c0_23 = arith.constant 0 : index
    %25 = vector.load %arg2[%c0_22, %24, %c2, %c0_23] : memref<1x18x18x4xf32, #tpu.memory_space<vmem>>, vector<1x8x16x4xf32>
    %26 = vector.shape_cast %25 : vector<1x8x16x4xf32> to vector<8x16x4xf32>
    %27 = vector.shape_cast %26 : vector<8x16x4xf32> to vector<128x4xf32>
    %c1_24 = arith.constant 1 : index
    %c1_25 = arith.constant 1 : index
    %c0_26 = arith.constant 0 : index
    %c0_27 = arith.constant 0 : index
    %28 = vector.load %arg3[%c1_24, %c1_25, %c0_26, %c0_27] : memref<4x4x4x8xf32, #tpu.memory_space<vmem>>, vector<1x1x4x8xf32>
    %29 = vector.shape_cast %28 : vector<1x1x4x8xf32> to vector<4x8xf32>
    %cst_28 = arith.constant dense<0.000000e+00> : vector<128x8xf32>
    %30 = tpu.matmul %27, %29, %cst_28 {dimension_numbers = #tpu.dot_dimension_numbers<[1], [0], [0], [1], [0, 0, 1, 1], [], []>} : vector<128x4xf32>, vector<4x8xf32>, vector<128x8xf32> -> vector<128x8xf32>
    %31 = arith.addf %22, %30 : vector<128x8xf32>
    %c1_i32 = arith.constant 1 : i32
    %32 = arith.addi %1, %c1_i32 : i32
    %c0_29 = arith.constant 0 : index
    %33 = arith.index_cast %32 : i32 to index
    %c0_30 = arith.constant 0 : index
    %c0_31 = arith.constant 0 : index
    %34 = vector.load %arg2[%c0_29, %33, %c0_30, %c0_31] : memref<1x18x18x4xf32, #tpu.memory_space<vmem>>, vector<1x8x16x4xf32>
    %35 = vector.shape_cast %34 : vector<1x8x16x4xf32> to vector<8x16x4xf32>
    %36 = vector.shape_cast %35 : vector<8x16x4xf32> to vector<128x4xf32>
    %c0_32 = arith.constant 0 : index
    %c2_33 = arith.constant 2 : index
    %c0_34 = arith.constant 0 : index
    %c0_35 = arith.constant 0 : index
    %37 = vector.load %arg3[%c0_32, %c2_33, %c0_34, %c0_35] : memref<4x4x4x8xf32, #tpu.memory_space<vmem>>, vector<1x1x4x8xf32>
    %38 = vector.shape_cast %37 : vector<1x1x4x8xf32> to vector<4x8xf32>
    %cst_36 = arith.constant dense<0.000000e+00> : vector<128x8xf32>
    %39 = tpu.matmul %36, %38, %cst_36 {dimension_numbers = #tpu.dot_dimension_numbers<[1], [0], [0], [1], [0, 0, 1, 1], [], []>} : vector<128x4xf32>, vector<4x8xf32>, vector<128x8xf32> -> vector<128x8xf32>
    %40 = arith.addf %19, %39 : vector<128x8xf32>
    %c2_37 = arith.constant 2 : index
    %c0_38 = arith.constant 0 : index
    %c0_39 = arith.constant 0 : index
    %c0_40 = arith.constant 0 : index
    %41 = vector.load %arg3[%c2_37, %c0_38, %c0_39, %c0_40] : memref<4x4x4x8xf32, #tpu.memory_space<vmem>>, vector<1x1x4x8xf32>
    %42 = vector.shape_cast %41 : vector<1x1x4x8xf32> to vector<4x8xf32>
    %cst_41 = arith.constant dense<0.000000e+00> : vector<128x8xf32>
    %43 = tpu.matmul %36, %42, %cst_41 {dimension_numbers = #tpu.dot_dimension_numbers<[1], [0], [0], [1], [0, 0, 1, 1], [], []>} : vector<128x4xf32>, vector<4x8xf32>, vector<128x8xf32> -> vector<128x8xf32>
    %c1_i32_42 = arith.constant 1 : i32
    %44 = arith.addi %1, %c1_i32_42 : i32
    %c0_43 = arith.constant 0 : index
    %45 = arith.index_cast %44 : i32 to index
    %c1_44 = arith.constant 1 : index
    %c0_45 = arith.constant 0 : index
    %46 = vector.load %arg2[%c0_43, %45, %c1_44, %c0_45] : memref<1x18x18x4xf32, #tpu.memory_space<vmem>>, vector<1x8x16x4xf32>
    %47 = vector.shape_cast %46 : vector<1x8x16x4xf32> to vector<8x16x4xf32>
    %48 = vector.shape_cast %47 : vector<8x16x4xf32> to vector<128x4xf32>
    %c0_46 = arith.constant 0 : index
    %c3 = arith.constant 3 : index
    %c0_47 = arith.constant 0 : index
    %c0_48 = arith.constant 0 : index
    %49 = vector.load %arg3[%c0_46, %c3, %c0_47, %c0_48] : memref<4x4x4x8xf32, #tpu.memory_space<vmem>>, vector<1x1x4x8xf32>
    %50 = vector.shape_cast %49 : vector<1x1x4x8xf32> to vector<4x8xf32>
    %cst_49 = arith.constant dense<0.000000e+00> : vector<128x8xf32>
    %51 = tpu.matmul %48, %50, %cst_49 {dimension_numbers = #tpu.dot_dimension_numbers<[1], [0], [0], [1], [0, 0, 1, 1], [], []>} : vector<128x4xf32>, vector<4x8xf32>, vector<128x8xf32> -> vector<128x8xf32>
    %52 = arith.addf %40, %51 : vector<128x8xf32>
    %c1_50 = arith.constant 1 : index
    %c2_51 = arith.constant 2 : index
    %c0_52 = arith.constant 0 : index
    %c0_53 = arith.constant 0 : index
    %53 = vector.load %arg3[%c1_50, %c2_51, %c0_52, %c0_53] : memref<4x4x4x8xf32, #tpu.memory_space<vmem>>, vector<1x1x4x8xf32>
    %54 = vector.shape_cast %53 : vector<1x1x4x8xf32> to vector<4x8xf32>
    %cst_54 = arith.constant dense<0.000000e+00> : vector<128x8xf32>
    %55 = tpu.matmul %48, %54, %cst_54 {dimension_numbers = #tpu.dot_dimension_numbers<[1], [0], [0], [1], [0, 0, 1, 1], [], []>} : vector<128x4xf32>, vector<4x8xf32>, vector<128x8xf32> -> vector<128x8xf32>
    %56 = arith.addf %31, %55 : vector<128x8xf32>
    %c2_55 = arith.constant 2 : index
    %c1_56 = arith.constant 1 : index
    %c0_57 = arith.constant 0 : index
    %c0_58 = arith.constant 0 : index
    %57 = vector.load %arg3[%c2_55, %c1_56, %c0_57, %c0_58] : memref<4x4x4x8xf32, #tpu.memory_space<vmem>>, vector<1x1x4x8xf32>
    %58 = vector.shape_cast %57 : vector<1x1x4x8xf32> to vector<4x8xf32>
    %cst_59 = arith.constant dense<0.000000e+00> : vector<128x8xf32>
    %59 = tpu.matmul %48, %58, %cst_59 {dimension_numbers = #tpu.dot_dimension_numbers<[1], [0], [0], [1], [0, 0, 1, 1], [], []>} : vector<128x4xf32>, vector<4x8xf32>, vector<128x8xf32> -> vector<128x8xf32>
    %60 = arith.addf %43, %59 : vector<128x8xf32>
    %c3_60 = arith.constant 3 : index
    %c0_61 = arith.constant 0 : index
    %c0_62 = arith.constant 0 : index
    %c0_63 = arith.constant 0 : index
    %61 = vector.load %arg3[%c3_60, %c0_61, %c0_62, %c0_63] : memref<4x4x4x8xf32, #tpu.memory_space<vmem>>, vector<1x1x4x8xf32>
    %62 = vector.shape_cast %61 : vector<1x1x4x8xf32> to vector<4x8xf32>
    %cst_64 = arith.constant dense<0.000000e+00> : vector<128x8xf32>
    %63 = tpu.matmul %48, %62, %cst_64 {dimension_numbers = #tpu.dot_dimension_numbers<[1], [0], [0], [1], [0, 0, 1, 1], [], []>} : vector<128x4xf32>, vector<4x8xf32>, vector<128x8xf32> -> vector<128x8xf32>
    %c1_i32_65 = arith.constant 1 : i32
    %64 = arith.addi %1, %c1_i32_65 : i32
    %c0_66 = arith.constant 0 : index
    %65 = arith.index_cast %64 : i32 to index
    %c2_67 = arith.constant 2 : index
    %c0_68 = arith.constant 0 : index
    %66 = vector.load %arg2[%c0_66, %65, %c2_67, %c0_68] : memref<1x18x18x4xf32, #tpu.memory_space<vmem>>, vector<1x8x16x4xf32>
    %67 = vector.shape_cast %66 : vector<1x8x16x4xf32> to vector<8x16x4xf32>
    %68 = vector.shape_cast %67 : vector<8x16x4xf32> to vector<128x4xf32>
    %c1_69 = arith.constant 1 : index
    %c3_70 = arith.constant 3 : index
    %c0_71 = arith.constant 0 : index
    %c0_72 = arith.constant 0 : index
    %69 = vector.load %arg3[%c1_69, %c3_70, %c0_71, %c0_72] : memref<4x4x4x8xf32, #tpu.memory_space<vmem>>, vector<1x1x4x8xf32>
    %70 = vector.shape_cast %69 : vector<1x1x4x8xf32> to vector<4x8xf32>
    %cst_73 = arith.constant dense<0.000000e+00> : vector<128x8xf32>
    %71 = tpu.matmul %68, %70, %cst_73 {dimension_numbers = #tpu.dot_dimension_numbers<[1], [0], [0], [1], [0, 0, 1, 1], [], []>} : vector<128x4xf32>, vector<4x8xf32>, vector<128x8xf32> -> vector<128x8xf32>
    %72 = arith.addf %56, %71 : vector<128x8xf32>
    %c3_74 = arith.constant 3 : index
    %c1_75 = arith.constant 1 : index
    %c0_76 = arith.constant 0 : index
    %c0_77 = arith.constant 0 : index
    %73 = vector.load %arg3[%c3_74, %c1_75, %c0_76, %c0_77] : memref<4x4x4x8xf32, #tpu.memory_space<vmem>>, vector<1x1x4x8xf32>
    %74 = vector.shape_cast %73 : vector<1x1x4x8xf32> to vector<4x8xf32>
    %cst_78 = arith.constant dense<0.000000e+00> : vector<128x8xf32>
    %75 = tpu.matmul %68, %74, %cst_78 {dimension_numbers = #tpu.dot_dimension_numbers<[1], [0], [0], [1], [0, 0, 1, 1], [], []>} : vector<128x4xf32>, vector<4x8xf32>, vector<128x8xf32> -> vector<128x8xf32>
    %76 = arith.addf %63, %75 : vector<128x8xf32>
    %c2_i32 = arith.constant 2 : i32
    %77 = arith.addi %1, %c2_i32 : i32
    %c0_79 = arith.constant 0 : index
    %78 = arith.index_cast %77 : i32 to index
    %c0_80 = arith.constant 0 : index
    %c0_81 = arith.constant 0 : index
    %79 = vector.load %arg2[%c0_79, %78, %c0_80, %c0_81] : memref<1x18x18x4xf32, #tpu.memory_space<vmem>>, vector<1x8x16x4xf32>
    %80 = vector.shape_cast %79 : vector<1x8x16x4xf32> to vector<8x16x4xf32>
    %81 = vector.shape_cast %80 : vector<8x16x4xf32> to vector<128x4xf32>
    %c2_82 = arith.constant 2 : index
    %c2_83 = arith.constant 2 : index
    %c0_84 = arith.constant 0 : index
    %c0_85 = arith.constant 0 : index
    %82 = vector.load %arg3[%c2_82, %c2_83, %c0_84, %c0_85] : memref<4x4x4x8xf32, #tpu.memory_space<vmem>>, vector<1x1x4x8xf32>
    %83 = vector.shape_cast %82 : vector<1x1x4x8xf32> to vector<4x8xf32>
    %cst_86 = arith.constant dense<0.000000e+00> : vector<128x8xf32>
    %84 = tpu.matmul %81, %83, %cst_86 {dimension_numbers = #tpu.dot_dimension_numbers<[1], [0], [0], [1], [0, 0, 1, 1], [], []>} : vector<128x4xf32>, vector<4x8xf32>, vector<128x8xf32> -> vector<128x8xf32>
    %85 = arith.addf %60, %84 : vector<128x8xf32>
    %c2_i32_87 = arith.constant 2 : i32
    %86 = arith.addi %1, %c2_i32_87 : i32
    %c0_88 = arith.constant 0 : index
    %87 = arith.index_cast %86 : i32 to index
    %c1_89 = arith.constant 1 : index
    %c0_90 = arith.constant 0 : index
    %88 = vector.load %arg2[%c0_88, %87, %c1_89, %c0_90] : memref<1x18x18x4xf32, #tpu.memory_space<vmem>>, vector<1x8x16x4xf32>
    %89 = vector.shape_cast %88 : vector<1x8x16x4xf32> to vector<8x16x4xf32>
    %90 = vector.shape_cast %89 : vector<8x16x4xf32> to vector<128x4xf32>
    %c2_91 = arith.constant 2 : index
    %c3_92 = arith.constant 3 : index
    %c0_93 = arith.constant 0 : index
    %c0_94 = arith.constant 0 : index
    %91 = vector.load %arg3[%c2_91, %c3_92, %c0_93, %c0_94] : memref<4x4x4x8xf32, #tpu.memory_space<vmem>>, vector<1x1x4x8xf32>
    %92 = vector.shape_cast %91 : vector<1x1x4x8xf32> to vector<4x8xf32>
    %cst_95 = arith.constant dense<0.000000e+00> : vector<128x8xf32>
    %93 = tpu.matmul %90, %92, %cst_95 {dimension_numbers = #tpu.dot_dimension_numbers<[1], [0], [0], [1], [0, 0, 1, 1], [], []>} : vector<128x4xf32>, vector<4x8xf32>, vector<128x8xf32> -> vector<128x8xf32>
    %94 = arith.addf %85, %93 : vector<128x8xf32>
    %c3_96 = arith.constant 3 : index
    %c2_97 = arith.constant 2 : index
    %c0_98 = arith.constant 0 : index
    %c0_99 = arith.constant 0 : index
    %95 = vector.load %arg3[%c3_96, %c2_97, %c0_98, %c0_99] : memref<4x4x4x8xf32, #tpu.memory_space<vmem>>, vector<1x1x4x8xf32>
    %96 = vector.shape_cast %95 : vector<1x1x4x8xf32> to vector<4x8xf32>
    %cst_100 = arith.constant dense<0.000000e+00> : vector<128x8xf32>
    %97 = tpu.matmul %90, %96, %cst_100 {dimension_numbers = #tpu.dot_dimension_numbers<[1], [0], [0], [1], [0, 0, 1, 1], [], []>} : vector<128x4xf32>, vector<4x8xf32>, vector<128x8xf32> -> vector<128x8xf32>
    %98 = arith.addf %76, %97 : vector<128x8xf32>
    %c2_i32_101 = arith.constant 2 : i32
    %99 = arith.addi %1, %c2_i32_101 : i32
    %c0_102 = arith.constant 0 : index
    %100 = arith.index_cast %99 : i32 to index
    %c2_103 = arith.constant 2 : index
    %c0_104 = arith.constant 0 : index
    %101 = vector.load %arg2[%c0_102, %100, %c2_103, %c0_104] : memref<1x18x18x4xf32, #tpu.memory_space<vmem>>, vector<1x8x16x4xf32>
    %102 = vector.shape_cast %101 : vector<1x8x16x4xf32> to vector<8x16x4xf32>
    %103 = vector.shape_cast %102 : vector<8x16x4xf32> to vector<128x4xf32>
    %c3_105 = arith.constant 3 : index
    %c3_106 = arith.constant 3 : index
    %c0_107 = arith.constant 0 : index
    %c0_108 = arith.constant 0 : index
    %104 = vector.load %arg3[%c3_105, %c3_106, %c0_107, %c0_108] : memref<4x4x4x8xf32, #tpu.memory_space<vmem>>, vector<1x1x4x8xf32>
    %105 = vector.shape_cast %104 : vector<1x1x4x8xf32> to vector<4x8xf32>
    %cst_109 = arith.constant dense<0.000000e+00> : vector<128x8xf32>
    %106 = tpu.matmul %103, %105, %cst_109 {dimension_numbers = #tpu.dot_dimension_numbers<[1], [0], [0], [1], [0, 0, 1, 1], [], []>} : vector<128x4xf32>, vector<4x8xf32>, vector<128x8xf32> -> vector<128x8xf32>
    %107 = arith.addf %98, %106 : vector<128x8xf32>
    %108 = vector.broadcast %2 : vector<1x8xf32> to vector<128x8xf32>
    %109 = arith.addf %52, %108 : vector<128x8xf32>
    %cst_110 = arith.constant 0.000000e+00 : f32
    %110 = vector.broadcast %cst_110 : f32 to vector<128x8xf32>
    %111 = arith.maximumf %109, %110 : vector<128x8xf32>
    %112 = vector.shape_cast %111 : vector<128x8xf32> to vector<8x16x8xf32>
    %c0_111 = arith.constant 0 : index
    %c0_112 = arith.constant 0 : index
    %c0_113 = arith.constant 0 : index
    %c0_114 = arith.constant 0 : index
    %c0_115 = arith.constant 0 : index
    %113 = vector.load %arg5[%c0_111, %c0_112, %c0_113, %c0_114, %c0_115] : memref<1x8x2x16x16xf32, #tpu.memory_space<vmem>>, vector<1x8x1x16x8xf32>
    %114 = vector.shape_cast %113 : vector<1x8x1x16x8xf32> to vector<8x16x8xf32>
    %115 = vector.shape_cast %112 : vector<8x16x8xf32> to vector<1x8x1x16x8xf32>
    tpu.vector_store %arg5[%c0_111, %c0_112, %c0_113, %c0_114, %c0_115], %115 {strides = array<i32>} : memref<1x8x2x16x16xf32, #tpu.memory_space<vmem>>, vector<1x8x1x16x8xf32>,
    %116 = vector.broadcast %2 : vector<1x8xf32> to vector<128x8xf32>
    %117 = arith.addf %72, %116 : vector<128x8xf32>
    %cst_116 = arith.constant 0.000000e+00 : f32
    %118 = vector.broadcast %cst_116 : f32 to vector<128x8xf32>
    %119 = arith.maximumf %117, %118 : vector<128x8xf32>
    %120 = vector.shape_cast %119 : vector<128x8xf32> to vector<8x16x8xf32>
    %c0_117 = arith.constant 0 : index
    %c0_118 = arith.constant 0 : index
    %c0_119 = arith.constant 0 : index
    %c0_120 = arith.constant 0 : index
    %c8 = arith.constant 8 : index
    %121 = vector.load %arg5[%c0_117, %c0_118, %c0_119, %c0_120, %c8] : memref<1x8x2x16x16xf32, #tpu.memory_space<vmem>>, vector<1x8x1x16x8xf32>
    %122 = vector.shape_cast %121 : vector<1x8x1x16x8xf32> to vector<8x16x8xf32>
    %123 = vector.shape_cast %120 : vector<8x16x8xf32> to vector<1x8x1x16x8xf32>
    tpu.vector_store %arg5[%c0_117, %c0_118, %c0_119, %c0_120, %c8], %123 {strides = array<i32>} : memref<1x8x2x16x16xf32, #tpu.memory_space<vmem>>, vector<1x8x1x16x8xf32>,
    %124 = vector.broadcast %2 : vector<1x8xf32> to vector<128x8xf32>
    %125 = arith.addf %94, %124 : vector<128x8xf32>
    %cst_121 = arith.constant 0.000000e+00 : f32
    %126 = vector.broadcast %cst_121 : f32 to vector<128x8xf32>
    %127 = arith.maximumf %125, %126 : vector<128x8xf32>
    %128 = vector.shape_cast %127 : vector<128x8xf32> to vector<8x16x8xf32>
    %c0_122 = arith.constant 0 : index
    %c0_123 = arith.constant 0 : index
    %c1_124 = arith.constant 1 : index
    %c0_125 = arith.constant 0 : index
    %c0_126 = arith.constant 0 : index
    %129 = vector.load %arg5[%c0_122, %c0_123, %c1_124, %c0_125, %c0_126] : memref<1x8x2x16x16xf32, #tpu.memory_space<vmem>>, vector<1x8x1x16x8xf32>
    %130 = vector.shape_cast %129 : vector<1x8x1x16x8xf32> to vector<8x16x8xf32>
    %131 = vector.shape_cast %128 : vector<8x16x8xf32> to vector<1x8x1x16x8xf32>
    tpu.vector_store %arg5[%c0_122, %c0_123, %c1_124, %c0_125, %c0_126], %131 {strides = array<i32>} : memref<1x8x2x16x16xf32, #tpu.memory_space<vmem>>, vector<1x8x1x16x8xf32>,
    %132 = vector.broadcast %2 : vector<1x8xf32> to vector<128x8xf32>
    %133 = arith.addf %107, %132 : vector<128x8xf32>
    %cst_127 = arith.constant 0.000000e+00 : f32
    %134 = vector.broadcast %cst_127 : f32 to vector<128x8xf32>
    %135 = arith.maximumf %133, %134 : vector<128x8xf32>
    %136 = vector.shape_cast %135 : vector<128x8xf32> to vector<8x16x8xf32>
    %c0_128 = arith.constant 0 : index
    %c0_129 = arith.constant 0 : index
    %c1_130 = arith.constant 1 : index
    %c0_131 = arith.constant 0 : index
    %c8_132 = arith.constant 8 : index
    %137 = vector.load %arg5[%c0_128, %c0_129, %c1_130, %c0_131, %c8_132] : memref<1x8x2x16x16xf32, #tpu.memory_space<vmem>>, vector<1x8x1x16x8xf32>
    %138 = vector.shape_cast %137 : vector<1x8x1x16x8xf32> to vector<8x16x8xf32>
    %139 = vector.shape_cast %136 : vector<8x16x8xf32> to vector<1x8x1x16x8xf32>
    tpu.vector_store %arg5[%c0_128, %c0_129, %c1_130, %c0_131, %c8_132], %139 {strides = array<i32>} : memref<1x8x2x16x16xf32, #tpu.memory_space<vmem>>, vector<1x8x1x16x8xf32>,
    return
  }
  func.func @transform_0(%arg0: i32, %arg1: i32) -> (i32, i32, i32, i32) {
    %c0_i32 = arith.constant 0 : i32
    %c0_i32_0 = arith.constant 0 : i32
    %c0_i32_1 = arith.constant 0 : i32
    %c0_i32_2 = arith.constant 0 : i32
    return %arg0, %c0_i32, %c0_i32_0, %c0_i32_1 : i32, i32, i32, i32
  }
  func.func @transform_1(%arg0: i32, %arg1: i32) -> (i32, i32, i32, i32) {
    %c0_i32 = arith.constant 0 : i32
    %c0_i32_0 = arith.constant 0 : i32
    %c0_i32_1 = arith.constant 0 : i32
    %c0_i32_2 = arith.constant 0 : i32
    %c0_i32_3 = arith.constant 0 : i32
    return %c0_i32, %c0_i32_0, %c0_i32_1, %c0_i32_2 : i32, i32, i32, i32
  }
  func.func @transform_2(%arg0: i32, %arg1: i32) -> (i32, i32) {
    %c0_i32 = arith.constant 0 : i32
    %c0_i32_0 = arith.constant 0 : i32
    %c0_i32_1 = arith.constant 0 : i32
    return %c0_i32, %c0_i32_0 : i32, i32
  }
  func.func @transform_3(%arg0: i32, %arg1: i32) -> (i32, i32, i32, i32, i32) {
    %c0_i32 = arith.constant 0 : i32
    %c0_i32_0 = arith.constant 0 : i32
    %c0_i32_1 = arith.constant 0 : i32
    %c0_i32_2 = arith.constant 0 : i32
    return %arg0, %arg1, %c0_i32, %c0_i32_0, %c0_i32_1 : i32, i32, i32, i32, i32
  }
}

</mosaic_0001>

<llo_original>
// kernel: tpu_custom_call.1
$region0: #{tpu_custom_call.1}
  #allocation0 [shape = 'u32[]', space=smem, size = 0x4, offset = 0x4, fixed_abs, tag = 'smem constant byte address 0x4 - core index']
  #allocation1 [shape = 'u32[144,128]{1,0:T(1,128)}', space=vmem, size = 0x12000, scoped, tag = 'internal scratch']
  %s0 = inlined_call_operand.vmem [shape: f32[2,18,18,4], index: 0, kind: input, shape index: {}]
  %s1 = inlined_call_operand.vmem [shape: f32[4,4,4,8], index: 1, kind: input, shape index: {}]
  %s2 = inlined_call_operand.vmem [shape: f32[1,8], index: 2, kind: input, shape index: {}]
  %s3 = inlined_call_operand.hbm [shape: f32[2,16,2,16,16], index: 3, kind: output, shape index: {}]
  %s4 = sld [smem:[#allocation0]]
  $region45: #{tpu_custom_call.1} parent=0
    _
  %s6 = ssub.s32 1, %s4
  %s7 = scalar_select 0, %s6, %s4
  $region1: #{tpu_custom_call.1} parent=0
    #allocation2 [shape = 'u8[262144]{0}', space=vmem, size = 0x40000, scoped, tag = 'output window, operand 0']
    #allocation3 [shape = 's32[2]{0}', space=sflag, size = 0x8, scoped, tag = 'scoped memory for tpu_custom_call.1']
    %8 = vsyncpa [#allocation3], 0
    %s9 = scalar_lea.sflag [#allocation3], 1
    %10 = vsyncpa %s9, 0
    loop: start=0, step=1, limit=6
    $region2: #{tpu_custom_call.1} parent=1 // loop_pre_header
      _
    $region3: #{tpu_custom_call.1} parent=1 // loop_header
      %s12 = sphi 0, %s16
      %p13 = scmp.ge.s32.totalorder %s12, 6
      %s19 = sphi 0, %s31
      %s20 = sphi 0, %s27
      %s21 = sphi 0, %s19
      %s22 = sphi 0, %s20
      %s23 = sphi 0, %s21
      %s24 = sphi 0, %s22
      %s34 = sphi 0, %s36
      %s37 = sphi 0, %s34
      %s38 = sphi 0, %s37
      %s54 = sphi 0, %s38
      %s58 = sphi 0, %s58
      %s60 = sphi 0, %s58
      %s61 = sphi 0, %s60
      %s75 = sphi 0, %s61
      %s79 = sphi 0, %s79
      %s81 = sphi 0, %s79
      %s82 = sphi 0, %s81
      %s96 = sphi 0, %s82
      %s104 = sphi 0, %s106
      %s107 = sphi 0, %s104
      %s108 = sphi 0, %s107
      %s124 = sphi 0, %s108
    $region4: #{tpu_custom_call.1} parent=1 // loop_header_branch
      %15 = sbr.rel (%p13) target = $region8
    $region5: #{tpu_custom_call.1} parent=1 // loop_body
      %s17 = ssub.s32 %s12, 1
      %s18 = ssub.s32 %s12, 2
      %s25 = sadd.s32 1, %s20
      %p26 = scmp.ge.s32.totalorder %s25, 2
      %s27 = scalar_select %p26, 0, %s25
      %s28 = sadd.s32 1, %s19
      %s29 = scalar_select %p26, %s28, %s19
      %p30 = scmp.ge.s32.totalorder %s29, 2
      %s31 = scalar_select %p30, 0, %s29
      %s32 = ssub.s32 %s19, %s31
      %p33 = scmp.eq.s32.totalorder %s32, 0
      %s35 = sadd.s32 %s34, 1
      %s36 = scalar_select %p33, %s34, %s35
      %p39 = pneg %p33
      %p40 = scmp.eq.s32.totalorder %s12, 3
      %p41 = por %p39, %p40
      %p42 = scmp.ne.s32.totalorder %s34, %s37
      %p43 = scmp.eq.s32.totalorder %s12, 0
      %p44 = por %p42, %p43
      %p45 = scmp.ne.s32.totalorder %s34, %s37
      %p46 = scmp.eq.s32.totalorder %s17, 3
      %p47 = por %p45, %p46
      %p48 = scmp.ne.s32.totalorder %s37, %s38
      %p49 = scmp.eq.s32.totalorder %s17, 0
      %p50 = por %p48, %p49
      %p51 = scmp.ne.s32.totalorder %s37, %s38
      %p52 = scmp.eq.s32.totalorder %s18, 3
      %p53 = por %p51, %p52
      %p55 = scmp.ne.s32.totalorder %s38, %s54
      %p56 = scmp.eq.s32.totalorder %s18, 0
      %p57 = por %p55, %p56
      %s59 = sadd.s32 %s58, 1
      %p62 = scmp.eq.s32.totalorder %s12, 3
      %p63 = scmp.ne.s32.totalorder %s58, %s60
      %p64 = scmp.eq.s32.totalorder %s12, 0
      %p65 = por %p63, %p64
      %p66 = scmp.ne.s32.totalorder %s58, %s60
      %p67 = scmp.eq.s32.totalorder %s17, 3
      %p68 = por %p66, %p67
      %p69 = scmp.ne.s32.totalorder %s60, %s61
      %p70 = scmp.eq.s32.totalorder %s17, 0
      %p71 = por %p69, %p70
      %p72 = scmp.ne.s32.totalorder %s60, %s61
      %p73 = scmp.eq.s32.totalorder %s18, 3
      %p74 = por %p72, %p73
      %p76 = scmp.ne.s32.totalorder %s61, %s75
      %p77 = scmp.eq.s32.totalorder %s18, 0
      %p78 = por %p76, %p77
      %s80 = sadd.s32 %s79, 1
      %p83 = scmp.eq.s32.totalorder %s12, 3
      %p84 = scmp.ne.s32.totalorder %s79, %s81
      %p85 = scmp.eq.s32.totalorder %s12, 0
      %p86 = por %p84, %p85
      %p87 = scmp.ne.s32.totalorder %s79, %s81
      %p88 = scmp.eq.s32.totalorder %s17, 3
      %p89 = por %p87, %p88
      %p90 = scmp.ne.s32.totalorder %s81, %s82
      %p91 = scmp.eq.s32.totalorder %s17, 0
      %p92 = por %p90, %p91
      %p93 = scmp.ne.s32.totalorder %s81, %s82
      %p94 = scmp.eq.s32.totalorder %s18, 3
      %p95 = por %p93, %p94
      %p97 = scmp.ne.s32.totalorder %s82, %s96
      %p98 = scmp.eq.s32.totalorder %s18, 0
      %p99 = por %p97, %p98
      %s100 = ssub.s32 %s19, %s31
      %s101 = ssub.s32 %s20, %s27
      %s102 = sor.u32 %s100, %s101
      %p103 = scmp.eq.s32.totalorder %s102, 0
      %s105 = sadd.s32 %s104, 1
      %s106 = scalar_select %p103, %s104, %s105
      %p109 = pneg %p103
      %p110 = scmp.eq.s32.totalorder %s12, 3
      %p111 = por %p109, %p110
      %p112 = scmp.ne.s32.totalorder %s104, %s107
      %p113 = scmp.eq.s32.totalorder %s12, 0
      %p114 = por %p112, %p113
      %p115 = scmp.ne.s32.totalorder %s104, %s107
      %p116 = scmp.eq.s32.totalorder %s17, 3
      %p117 = por %p115, %p116
      %p118 = scmp.ne.s32.totalorder %s107, %s108
      %p119 = scmp.eq.s32.totalorder %s17, 0
      %p120 = por %p118, %p119
      %p121 = scmp.ne.s32.totalorder %s107, %s108
      %p122 = scmp.eq.s32.totalorder %s18, 3
      %p123 = por %p121, %p122
      %p125 = scmp.ne.s32.totalorder %s108, %s124
      %p126 = scmp.eq.s32.totalorder %s18, 0
      %p127 = por %p125, %p126
      %p128 = scmp.le.s32.totalorder 1, %s12
      %p129 = scmp.lt.s32.totalorder %s12, 5
      %p130 = pnand %p128, %p129
      %p131 = pneg %p130
      // Predicated region
      $region9: #{tpu_custom_call.1} parent=5 // pred_check
        _
      $region10: #{tpu_custom_call.1} parent=5 // pred_check_branch
        %133 = sbr.rel (%p130) target = $region12
      $region11: #{tpu_custom_call.1} parent=5 // pred_region
        %s134 = ssub.s32 %s12, 1
        // Predicated region
        $region13: #{tpu_custom_call.1} parent=11 // pred_check
          %p135 = pneg %p71
        $region14: #{tpu_custom_call.1} parent=11 // pred_check_branch
          %137 = sbr.rel (%p135) target = $region16
        $region15: #{tpu_custom_call.1} parent=11 // pred_region
          _
        $region16: #{tpu_custom_call.1} parent=11 // pred_fallthru
          _
        // Predicated region
        $region17: #{tpu_custom_call.1} parent=11 // pred_check
          %p138 = pneg %p92
        $region18: #{tpu_custom_call.1} parent=11 // pred_check_branch
          %140 = sbr.rel (%p138) target = $region20
        $region19: #{tpu_custom_call.1} parent=11 // pred_region
          _
        $region20: #{tpu_custom_call.1} parent=11 // pred_fallthru
          _
      $region12: #{tpu_custom_call.1} parent=5 // pred_fallthru
        _
      %p141 = scmp.lt.s32.totalorder %s12, 4
      // Predicated region
      $region21: #{tpu_custom_call.1} parent=5 // pred_check
        %p142 = pneg %p141
      $region22: #{tpu_custom_call.1} parent=5 // pred_check_branch
        %144 = sbr.rel (%p142) target = $region24
      $region23: #{tpu_custom_call.1} parent=5 // pred_region
        // Predicated region
        $region25: #{tpu_custom_call.1} parent=23 // pred_check
          %p145 = pneg %p44
        $region26: #{tpu_custom_call.1} parent=23 // pred_check_branch
          %147 = sbr.rel (%p145) target = $region28
        $region27: #{tpu_custom_call.1} parent=23 // pred_region
          %p148 = scmp.lt.s32.totalorder %s19, 1
          %s149 = scalar_select %p148, %s19, 1
          %s150 = smul.addr %s149, 54
          %s151 = smul.addr %s150, 8
          %s152 = scalar_lea.vmem %s0, %s151
        $region28: #{tpu_custom_call.1} parent=23 // pred_fallthru
          _
      $region24: #{tpu_custom_call.1} parent=5 // pred_fallthru
        _
      %p153 = scmp.le.s32.totalorder 1, %s12
      %p154 = scmp.lt.s32.totalorder %s12, 5
      %p155 = pnand %p153, %p154
      %p156 = pneg %p155
      // Predicated region
      $region29: #{tpu_custom_call.1} parent=5 // pred_check
        _
      $region30: #{tpu_custom_call.1} parent=5 // pred_check_branch
        %158 = sbr.rel (%p155) target = $region32
      $region31: #{tpu_custom_call.1} parent=5 // pred_region
        %s159 = ssub.s32 %s12, 1
        %p160 = scmp.lt.s32.totalorder %s21, 1
        %s161 = scalar_select %p160, %s21, 1
        %s162 = smul.addr %s161, 54
        %s163 = smul.addr %s162, 8
        %s164 = scalar_lea.vmem %s0, %s163
        %p165 = pneg %p50
        %p166 = pneg %p47
        %p167 = pneg %p71
        %p168 = pneg %p68
        %p169 = pneg %p92
        %p170 = pneg %p89
        %p171 = pneg %p120
        %p172 = pneg %p117
        %s173 = sand.u32 %s107, 1
        %s174 = scalar_lea.sflag [#allocation3], %s173
        %s175 = sand.u32 %s107, 1
        %s176 = smul.addr %s175, 256
        %s177 = scalar_lea.vmem [#allocation2], %s176
        %p178 = scmp.lt.s32.totalorder %s21, 1
        %s179 = scalar_select %p178, %s21, 1
        %s180 = smul.addr %s179, 54
        %s181 = smul.addr %s180, 8
        %s182 = scalar_lea.vmem %s0, %s181
        %s183 = smul.u32 8, %s22
        %s184 = smul.u32 %s22, 8
        %v185 = vld [vmem:[%s2] sm:$0x1]
        %s186 = smul.u32 %s184, 24
        %s187 = scalar_lea.vmem %s182, %s186
        %v188 = vld [vmem:[%s187] sm:$0xff]
        %v189 = vld [vmem:[%s187 + $0x8] sm:$0xff]
        %v190 = vld [vmem:[%s187 + $0x18] sm:$0xff]
        %v191 = vld [vmem:[%s187 + $0x20] sm:$0xff]
        %v192 = vld [vmem:[%s187 + $0x30] sm:$0xff]
        %v193 = vld [vmem:[%s187 + $0x38] sm:$0xff]
        %v194 = vld [vmem:[%s187 + $0x48] sm:$0xff]
        %v195 = vld [vmem:[%s187 + $0x50] sm:$0xff]
        %v196 = vld [vmem:[%s187 + $0x60] sm:$0xff]
        %v197 = vld [vmem:[%s187 + $0x68] sm:$0xff]
        %v198 = vld [vmem:[%s187 + $0x78] sm:$0xff]
        %v199 = vld [vmem:[%s187 + $0x80] sm:$0xff]
        %v200 = vld [vmem:[%s187 + $0x90] sm:$0xff]
        %v201 = vld [vmem:[%s187 + $0x98] sm:$0xff]
        %v202 = vld [vmem:[%s187 + $0xa8] sm:$0xff]
        %v203 = vld [vmem:[%s187 + $0xb0] sm:$0xff]
        %v204 = vld [vmem:[%s1] sm:$0xf]
        %v205 = vld [vmem:[%s187 + $0x1] sm:$0xff]
        %v206 = vld [vmem:[%s187 + $0x9] sm:$0xff]
        %v207 = vld [vmem:[%s187 + $0x19] sm:$0xff]
        %v208 = vld [vmem:[%s187 + $0x21] sm:$0xff]
        %v209 = vld [vmem:[%s187 + $0x31] sm:$0xff]
        %v210 = vld [vmem:[%s187 + $0x39] sm:$0xff]
        %v211 = vld [vmem:[%s187 + $0x49] sm:$0xff]
        %v212 = vld [vmem:[%s187 + $0x51] sm:$0xff]
        %v213 = vld [vmem:[%s187 + $0x61] sm:$0xff]
        %v214 = vld [vmem:[%s187 + $0x69] sm:$0xff]
        %v215 = vld [vmem:[%s187 + $0x79] sm:$0xff]
        %v216 = vld [vmem:[%s187 + $0x81] sm:$0xff]
        %v217 = vld [vmem:[%s187 + $0x91] sm:$0xff]
        %v218 = vld [vmem:[%s187 + $0x99] sm:$0xff]
        %v219 = vld [vmem:[%s187 + $0xa9] sm:$0xff]
        %v220 = vld [vmem:[%s187 + $0xb1] sm:$0xff]
        %s221 = scalar_lea.vmem %s1, 4
        %v222 = vld [vmem:[%s221] sm:$0xf]
        %vm223 = vcmask 31744
        %v225 = vsel %vm223, %v205, 0
        %v228 = vsel %vm223, %v206, 0
        %v231 = vsel %vm223, %v207, 0
        %v234 = vsel %vm223, %v208, 0
        %v237 = vsel %vm223, %v209, 0
        %v240 = vsel %vm223, %v210, 0
        %v243 = vsel %vm223, %v211, 0
        %v246 = vsel %vm223, %v212, 0
        %v249 = vsel %vm223, %v213, 0
        %v252 = vsel %vm223, %v214, 0
        %v255 = vsel %vm223, %v215, 0
        %v258 = vsel %vm223, %v216, 0
        %v261 = vsel %vm223, %v217, 0
        %v264 = vsel %vm223, %v218, 0
        %v267 = vsel %vm223, %v219, 0
        %v270 = vsel %vm223, %v220, 0
        %vm272 = vcmask 1043456
        %v274 = vsel %vm272, %v222, 0
        %276 = vmatprep.subr.mxu0 0.0
        %277 = vmatpush1.msra.mxu0 %v274
        %278 = vmatprep.subr.mxu0 0.0
        %279 = vmatpush1.msra.mxu0 0.0
        %280 = vmatprep.subr.mxu0 0.0
        %281 = vmatpush1.msra.mxu0 0.0
        %282 = vmatprep.subr.mxu0 0.0
        %283 = vmatpush1.msra.mxu0 0.0
        %284 = vmatprep.subr.mxu0 0.0
        %285 = vmatpush1.msra.mxu0 0.0
        %286 = vmatprep.subr.mxu0 0.0
        %287 = vmatpush1.msra.mxu0 0.0
        %288 = vmatprep.subr.mxu0 0.0
        %289 = vmatpush1.msra.mxu0 0.0
        %290 = vmatprep.subr.mxu0 0.0
        %291 = vmatpush1.msra.mxu0 0.0
        %292 = vmatprep.subr.mxu0 0.0
        %293 = vmatpush1.msra.mxu0 0.0
        %294 = vmatprep.subr.mxu0 0.0
        %295 = vmatpush1.msra.mxu0 0.0
        %296 = vmatprep.subr.mxu0 0.0
        %297 = vmatpush1.msra.mxu0 0.0
        %298 = vmatprep.subr.mxu0 0.0
        %299 = vmatpush1.msra.mxu0 0.0
        %300 = vmatprep.subr.mxu0 0.0
        %301 = vmatpush1.msra.mxu0 0.0
        %302 = vmatprep.subr.mxu0 0.0
        %303 = vmatpush1.msra.mxu0 0.0
        %304 = vmatprep.subr.mxu0 0.0
        %305 = vmatpush1.msra.mxu0 0.0
        %306 = vmatprep.subr.mxu0 0.0
        %307 = vmatpush1.msra.mxu0 0.0
        %308 = vmatprep.subr.mxu0 0.0
        %309 = vmatpush1.msra.mxu0 0.0
        %310 = vmatprep.subr.mxu0 0.0
        %311 = vmatpush1.msra.mxu0 0.0
        %312 = vmatprep.subr.mxu0 0.0
        %313 = vmatpush1.msra.mxu0 0.0
        %314 = vmatprep.subr.mxu0 0.0
        %315 = vmatpush1.msra.mxu0 0.0
        %316 = vmatprep.subr.mxu0 0.0
        %317 = vmatpush1.msra.mxu0 0.0
        %318 = vmatprep.subr.mxu0 0.0
        %319 = vmatpush1.msra.mxu0 0.0
        %320 = vmatprep.subr.mxu0 0.0
        %321 = vmatpush1.msra.mxu0 0.0
        %322 = vmatprep.subr.mxu0 0.0
        %323 = vmatpush1.msra.mxu0 0.0
        %324 = vmatprep.subr.mxu0 0.0
        %325 = vmatpush1.msra.mxu0 0.0
        %326 = vmatprep.subr.mxu0 0.0
        %327 = vmatpush1.msra.mxu0 0.0
        %328 = vmatprep.subr.mxu0 0.0
        %329 = vmatpush1.msra.mxu0 0.0
        %330 = vmatprep.subr.mxu0 0.0
        %331 = vmatpush1.msra.mxu0 0.0
        %332 = vmatprep.subr.mxu0 0.0
        %333 = vmatpush1.msra.mxu0 0.0
        %334 = vmatprep.subr.mxu0 0.0
        %335 = vmatpush1.msra.mxu0 0.0
        %336 = vmatprep.subr.mxu0 0.0
        %337 = vmatpush1.msra.mxu0 0.0
        %338 = vmatprep.subr.mxu0 0.0
        %339 = vmatpush1.msra.mxu0 0.0
        %340 = vmatprep.mubr.f32.mxu0 0.0
        %341 = vmatmul.mubr.f32.gmra.mrb[0].mxu0 %v225
        %v342 = vpop.f32.mrb[0].mxu0
        %v343 = vadd.f32 0.0, %v342
        %v344 = vpop.f32.mrb[0].mxu0
        %345 = vmatprep.mubr.f32.mxu0 0.0
        %346 = vmatmul.mubr.f32.gmra.mrb[0].mxu0 %v228
        %v347 = vpop.f32.mrb[0].mxu0
        %v348 = vadd.f32 0.0, %v347
        %v349 = vpop.f32.mrb[0].mxu0
        %350 = vmatprep.mubr.f32.mxu0 0.0
        %351 = vmatmul.mubr.f32.gmra.mrb[0].mxu0 %v231
        %v352 = vpop.f32.mrb[0].mxu0
        %v353 = vadd.f32 0.0, %v352
        %v354 = vpop.f32.mrb[0].mxu0
        %355 = vmatprep.mubr.f32.mxu0 0.0
        %356 = vmatmul.mubr.f32.gmra.mrb[0].mxu0 %v234
        %v357 = vpop.f32.mrb[0].mxu0
        %v358 = vadd.f32 0.0, %v357
        %v359 = vpop.f32.mrb[0].mxu0
        %360 = vmatprep.mubr.f32.mxu0 0.0
        %361 = vmatmul.mubr.f32.gmra.mrb[0].mxu0 %v237
        %v362 = vpop.f32.mrb[0].mxu0
        %v363 = vadd.f32 0.0, %v362
        %v364 = vpop.f32.mrb[0].mxu0
        %365 = vmatprep.mubr.f32.mxu0 0.0
        %366 = vmatmul.mubr.f32.gmra.mrb[0].mxu0 %v240
        %v367 = vpop.f32.mrb[0].mxu0
        %v368 = vadd.f32 0.0, %v367
        %v369 = vpop.f32.mrb[0].mxu0
        %370 = vmatprep.mubr.f32.mxu0 0.0
        %371 = vmatmul.mubr.f32.gmra.mrb[0].mxu0 %v243
        %v372 = vpop.f32.mrb[0].mxu0
        %v373 = vadd.f32 0.0, %v372
        %v374 = vpop.f32.mrb[0].mxu0
        %375 = vmatprep.mubr.f32.mxu0 0.0
        %376 = vmatmul.mubr.f32.gmra.mrb[0].mxu0 %v246
        %v377 = vpop.f32.mrb[0].mxu0
        %v378 = vadd.f32 0.0, %v377
        %v379 = vpop.f32.mrb[0].mxu0
        %380 = vmatprep.mubr.f32.mxu0 0.0
        %381 = vmatmul.mubr.f32.gmra.mrb[0].mxu0 %v249
        %v382 = vpop.f32.mrb[0].mxu0
        %v383 = vadd.f32 0.0, %v382
        %v384 = vpop.f32.mrb[0].mxu0
        %385 = vmatprep.mubr.f32.mxu0 0.0
        %386 = vmatmul.mubr.f32.gmra.mrb[0].mxu0 %v252
        %v387 = vpop.f32.mrb[0].mxu0
        %v388 = vadd.f32 0.0, %v387
        %v389 = vpop.f32.mrb[0].mxu0
        %390 = vmatprep.mubr.f32.mxu0 0.0
        %391 = vmatmul.mubr.f32.gmra.mrb[0].mxu0 %v255
        %v392 = vpop.f32.mrb[0].mxu0
        %v393 = vadd.f32 0.0, %v392
        %v394 = vpop.f32.mrb[0].mxu0
        %395 = vmatprep.mubr.f32.mxu0 0.0
        %396 = vmatmul.mubr.f32.gmra.mrb[0].mxu0 %v258
        %v397 = vpop.f32.mrb[0].mxu0
        %v398 = vadd.f32 0.0, %v397
        %v399 = vpop.f32.mrb[0].mxu0
        %400 = vmatprep.mubr.f32.mxu0 0.0
        %401 = vmatmul.mubr.f32.gmra.mrb[0].mxu0 %v261
        %v402 = vpop.f32.mrb[0].mxu0
        %v403 = vadd.f32 0.0, %v402
        %v404 = vpop.f32.mrb[0].mxu0
        %405 = vmatprep.mubr.f32.mxu0 0.0
        %406 = vmatmul.mubr.f32.gmra.mrb[0].mxu0 %v264
        %v407 = vpop.f32.mrb[0].mxu0
        %v408 = vadd.f32 0.0, %v407
        %v409 = vpop.f32.mrb[0].mxu0
        %410 = vmatprep.mubr.f32.mxu0 0.0
        %411 = vmatmul.mubr.f32.gmra.mrb[0].mxu0 %v267
        %v412 = vpop.f32.mrb[0].mxu0
        %v413 = vadd.f32 0.0, %v412
        %v414 = vpop.f32.mrb[0].mxu0
        %415 = vmatprep.mubr.f32.mxu0 0.0
        %416 = vmatmul.mubr.f32.gmra.mrb[0].mxu0 %v270
        %v417 = vpop.f32.mrb[0].mxu0
        %v418 = vadd.f32 0.0, %v417
        %v419 = vpop.f32.mrb[0].mxu0
        %420 = vdwg.mxu0
        %v422 = vsel %vm223, %v188, 0
        %v425 = vsel %vm223, %v189, 0
        %v428 = vsel %vm223, %v190, 0
        %v431 = vsel %vm223, %v191, 0
        %v434 = vsel %vm223, %v192, 0
        %v437 = vsel %vm223, %v193, 0
        %v440 = vsel %vm223, %v194, 0
        %v443 = vsel %vm223, %v195, 0
        %v446 = vsel %vm223, %v196, 0
        %v449 = vsel %vm223, %v197, 0
        %v452 = vsel %vm223, %v198, 0
        %v455 = vsel %vm223, %v199, 0
        %v458 = vsel %vm223, %v200, 0
        %v461 = vsel %vm223, %v201, 0
        %v464 = vsel %vm223, %v202, 0
        %v467 = vsel %vm223, %v203, 0
        %v470 = vsel %vm272, %v204, 0
        %472 = vmatprep.subr.mxu0 0.0
        %473 = vmatpush1.msra.mxu0 %v470
        %474 = vmatprep.subr.mxu0 0.0
        %475 = vmatpush1.msra.mxu0 0.0
        %476 = vmatprep.subr.mxu0 0.0
        %477 = vmatpush1.msra.mxu0 0.0
        %478 = vmatprep.subr.mxu0 0.0
        %479 = vmatpush1.msra.mxu0 0.0
        %480 = vmatprep.subr.mxu0 0.0
        %481 = vmatpush1.msra.mxu0 0.0
        %482 = vmatprep.subr.mxu0 0.0
        %483 = vmatpush1.msra.mxu0 0.0
        %484 = vmatprep.subr.mxu0 0.0
        %485 = vmatpush1.msra.mxu0 0.0
        %486 = vmatprep.subr.mxu0 0.0
        %487 = vmatpush1.msra.mxu0 0.0
        %488 = vmatprep.subr.mxu0 0.0
        %489 = vmatpush1.msra.mxu0 0.0
        %490 = vmatprep.subr.mxu0 0.0
        %491 = vmatpush1.msra.mxu0 0.0
        %492 = vmatprep.subr.mxu0 0.0
        %493 = vmatpush1.msra.mxu0 0.0
        %494 = vmatprep.subr.mxu0 0.0
        %495 = vmatpush1.msra.mxu0 0.0
        %496 = vmatprep.subr.mxu0 0.0
        %497 = vmatpush1.msra.mxu0 0.0
        %498 = vmatprep.subr.mxu0 0.0
        %499 = vmatpush1.msra.mxu0 0.0
        %500 = vmatprep.subr.mxu0 0.0
        %501 = vmatpush1.msra.mxu0 0.0
        %502 = vmatprep.subr.mxu0 0.0
        %503 = vmatpush1.msra.mxu0 0.0
        %504 = vmatprep.subr.mxu0 0.0
        %505 = vmatpush1.msra.mxu0 0.0
        %506 = vmatprep.subr.mxu0 0.0
        %507 = vmatpush1.msra.mxu0 0.0
        %508 = vmatprep.subr.mxu0 0.0
        %509 = vmatpush1.msra.mxu0 0.0
        %510 = vmatprep.subr.mxu0 0.0
        %511 = vmatpush1.msra.mxu0 0.0
        %512 = vmatprep.subr.mxu0 0.0
        %513 = vmatpush1.msra.mxu0 0.0
        %514 = vmatprep.subr.mxu0 0.0
        %515 = vmatpush1.msra.mxu0 0.0
        %516 = vmatprep.subr.mxu0 0.0
        %517 = vmatpush1.msra.mxu0 0.0
        %518 = vmatprep.subr.mxu0 0.0
        %519 = vmatpush1.msra.mxu0 0.0
        %520 = vmatprep.subr.mxu0 0.0
        %521 = vmatpush1.msra.mxu0 0.0
        %522 = vmatprep.subr.mxu0 0.0
        %523 = vmatpush1.msra.mxu0 0.0
        %524 = vmatprep.subr.mxu0 0.0
        %525 = vmatpush1.msra.mxu0 0.0
        %526 = vmatprep.subr.mxu0 0.0
        %527 = vmatpush1.msra.mxu0 0.0
        %528 = vmatprep.subr.mxu0 0.0
        %529 = vmatpush1.msra.mxu0 0.0
        %530 = vmatprep.subr.mxu0 0.0
        %531 = vmatpush1.msra.mxu0 0.0
        %532 = vmatprep.subr.mxu0 0.0
        %533 = vmatpush1.msra.mxu0 0.0
        %534 = vmatprep.subr.mxu0 0.0
        %535 = vmatpush1.msra.mxu0 0.0
        %536 = vmatprep.mubr.f32.mxu0 0.0
        %537 = vmatmul.mubr.f32.gmra.mrb[0].mxu0 %v422
        %v538 = vpop.f32.mrb[0].mxu0
        %v539 = vadd.f32 %v343, %v538
        %v540 = vpop.f32.mrb[0].mxu0
        %541 = vmatprep.mubr.f32.mxu0 0.0
        %542 = vmatmul.mubr.f32.gmra.mrb[0].mxu0 %v425
        %v543 = vpop.f32.mrb[0].mxu0
        %v544 = vadd.f32 %v348, %v543
        %v545 = vpop.f32.mrb[0].mxu0
        %546 = vmatprep.mubr.f32.mxu0 0.0
        %547 = vmatmul.mubr.f32.gmra.mrb[0].mxu0 %v428
        %v548 = vpop.f32.mrb[0].mxu0
        %v549 = vadd.f32 %v353, %v548
        %v550 = vpop.f32.mrb[0].mxu0
        %551 = vmatprep.mubr.f32.mxu0 0.0
        %552 = vmatmul.mubr.f32.gmra.mrb[0].mxu0 %v431
        %v553 = vpop.f32.mrb[0].mxu0
        %v554 = vadd.f32 %v358, %v553
        %v555 = vpop.f32.mrb[0].mxu0
        %556 = vmatprep.mubr.f32.mxu0 0.0
        %557 = vmatmul.mubr.f32.gmra.mrb[0].mxu0 %v434
        %v558 = vpop.f32.mrb[0].mxu0
        %v559 = vadd.f32 %v363, %v558
        %v560 = vpop.f32.mrb[0].mxu0
        %561 = vmatprep.mubr.f32.mxu0 0.0
        %562 = vmatmul.mubr.f32.gmra.mrb[0].mxu0 %v437
        %v563 = vpop.f32.mrb[0].mxu0
        %v564 = vadd.f32 %v368, %v563
        %v565 = vpop.f32.mrb[0].mxu0
        %566 = vmatprep.mubr.f32.mxu0 0.0
        %567 = vmatmul.mubr.f32.gmra.mrb[0].mxu0 %v440
        %v568 = vpop.f32.mrb[0].mxu0
        %v569 = vadd.f32 %v373, %v568
        %v570 = vpop.f32.mrb[0].mxu0
        %571 = vmatprep.mubr.f32.mxu0 0.0
        %572 = vmatmul.mubr.f32.gmra.mrb[0].mxu0 %v443
        %v573 = vpop.f32.mrb[0].mxu0
        %v574 = vadd.f32 %v378, %v573
        %v575 = vpop.f32.mrb[0].mxu0
        %576 = vmatprep.mubr.f32.mxu0 0.0
        %577 = vmatmul.mubr.f32.gmra.mrb[0].mxu0 %v446
        %v578 = vpop.f32.mrb[0].mxu0
        %v579 = vadd.f32 %v383, %v578
        %v580 = vpop.f32.mrb[0].mxu0
        %581 = vmatprep.mubr.f32.mxu0 0.0
        %582 = vmatmul.mubr.f32.gmra.mrb[0].mxu0 %v449
        %v583 = vpop.f32.mrb[0].mxu0
        %v584 = vadd.f32 %v388, %v583
        %v585 = vpop.f32.mrb[0].mxu0
        %586 = vmatprep.mubr.f32.mxu0 0.0
        %587 = vmatmul.mubr.f32.gmra.mrb[0].mxu0 %v452
        %v588 = vpop.f32.mrb[0].mxu0
        %v589 = vadd.f32 %v393, %v588
        %v590 = vpop.f32.mrb[0].mxu0
        %591 = vmatprep.mubr.f32.mxu0 0.0
        %592 = vmatmul.mubr.f32.gmra.mrb[0].mxu0 %v455
        %v593 = vpop.f32.mrb[0].mxu0
        %v594 = vadd.f32 %v398, %v593
        %v595 = vpop.f32.mrb[0].mxu0
        %596 = vmatprep.mubr.f32.mxu0 0.0
        %597 = vmatmul.mubr.f32.gmra.mrb[0].mxu0 %v458
        %v598 = vpop.f32.mrb[0].mxu0
        %v599 = vadd.f32 %v403, %v598
        %v600 = vpop.f32.mrb[0].mxu0
        %601 = vmatprep.mubr.f32.mxu0 0.0
        %602 = vmatmul.mubr.f32.gmra.mrb[0].mxu0 %v461
        %v603 = vpop.f32.mrb[0].mxu0
        %v604 = vadd.f32 %v408, %v603
        %v605 = vpop.f32.mrb[0].mxu0
        %606 = vmatprep.mubr.f32.mxu0 0.0
        %607 = vmatmul.mubr.f32.gmra.mrb[0].mxu0 %v464
        %v608 = vpop.f32.mrb[0].mxu0
        %v609 = vadd.f32 %v413, %v608
        %v610 = vpop.f32.mrb[0].mxu0
        %611 = vmatprep.mubr.f32.mxu0 0.0
        %612 = vmatmul.mubr.f32.gmra.mrb[0].mxu0 %v467
        %v613 = vpop.f32.mrb[0].mxu0
        %v614 = vadd.f32 %v418, %v613
        %v615 = vpop.f32.mrb[0].mxu0
        %616 = vdwg.mxu0
        %s617 = scalar_lea.vmem %s1, 16
        %v618 = vld [vmem:[%s617] sm:$0xf]
        %v619 = vld [vmem:[%s187 + $0x2] sm:$0xff]
        %v620 = vld [vmem:[%s187 + $0xa] sm:$0xff]
        %v621 = vld [vmem:[%s187 + $0x1a] sm:$0xff]
        %v622 = vld [vmem:[%s187 + $0x22] sm:$0xff]
        %v623 = vld [vmem:[%s187 + $0x32] sm:$0xff]
        %v624 = vld [vmem:[%s187 + $0x3a] sm:$0xff]
        %v625 = vld [vmem:[%s187 + $0x4a] sm:$0xff]
        %v626 = vld [vmem:[%s187 + $0x52] sm:$0xff]
        %v627 = vld [vmem:[%s187 + $0x62] sm:$0xff]
        %v628 = vld [vmem:[%s187 + $0x6a] sm:$0xff]
        %v629 = vld [vmem:[%s187 + $0x7a] sm:$0xff]
        %v630 = vld [vmem:[%s187 + $0x82] sm:$0xff]
        %v631 = vld [vmem:[%s187 + $0x92] sm:$0xff]
        %v632 = vld [vmem:[%s187 + $0x9a] sm:$0xff]
        %v633 = vld [vmem:[%s187 + $0xaa] sm:$0xff]
        %v634 = vld [vmem:[%s187 + $0xb2] sm:$0xff]
        %s635 = scalar_lea.vmem %s1, 20
        %v636 = vld [vmem:[%s635] sm:$0xf]
        %v638 = vsel %vm223, %v619, 0
        %v641 = vsel %vm223, %v620, 0
        %v644 = vsel %vm223, %v621, 0
        %v647 = vsel %vm223, %v622, 0
        %v650 = vsel %vm223, %v623, 0
        %v653 = vsel %vm223, %v624, 0
        %v656 = vsel %vm223, %v625, 0
        %v659 = vsel %vm223, %v626, 0
        %v662 = vsel %vm223, %v627, 0
        %v665 = vsel %vm223, %v628, 0
        %v668 = vsel %vm223, %v629, 0
        %v671 = vsel %vm223, %v630, 0
        %v674 = vsel %vm223, %v631, 0
        %v677 = vsel %vm223, %v632, 0
        %v680 = vsel %vm223, %v633, 0
        %v683 = vsel %vm223, %v634, 0
        %v686 = vsel %vm272, %v636, 0
        %688 = vmatprep.subr.mxu0 0.0
        %689 = vmatpush1.msra.mxu0 %v686
        %690 = vmatprep.subr.mxu0 0.0
        %691 = vmatpush1.msra.mxu0 0.0
        %692 = vmatprep.subr.mxu0 0.0
        %693 = vmatpush1.msra.mxu0 0.0
        %694 = vmatprep.subr.mxu0 0.0
        %695 = vmatpush1.msra.mxu0 0.0
        %696 = vmatprep.subr.mxu0 0.0
        %697 = vmatpush1.msra.mxu0 0.0
        %698 = vmatprep.subr.mxu0 0.0
        %699 = vmatpush1.msra.mxu0 0.0
        %700 = vmatprep.subr.mxu0 0.0
        %701 = vmatpush1.msra.mxu0 0.0
        %702 = vmatprep.subr.mxu0 0.0
        %703 = vmatpush1.msra.mxu0 0.0
        %704 = vmatprep.subr.mxu0 0.0
        %705 = vmatpush1.msra.mxu0 0.0
        %706 = vmatprep.subr.mxu0 0.0
        %707 = vmatpush1.msra.mxu0 0.0
        %708 = vmatprep.subr.mxu0 0.0
        %709 = vmatpush1.msra.mxu0 0.0
        %710 = vmatprep.subr.mxu0 0.0
        %711 = vmatpush1.msra.mxu0 0.0
        %712 = vmatprep.subr.mxu0 0.0
        %713 = vmatpush1.msra.mxu0 0.0
        %714 = vmatprep.subr.mxu0 0.0
        %715 = vmatpush1.msra.mxu0 0.0
        %716 = vmatprep.subr.mxu0 0.0
        %717 = vmatpush1.msra.mxu0 0.0
        %718 = vmatprep.subr.mxu0 0.0
        %719 = vmatpush1.msra.mxu0 0.0
        %720 = vmatprep.subr.mxu0 0.0
        %721 = vmatpush1.msra.mxu0 0.0
        %722 = vmatprep.subr.mxu0 0.0
        %723 = vmatpush1.msra.mxu0 0.0
        %724 = vmatprep.subr.mxu0 0.0
        %725 = vmatpush1.msra.mxu0 0.0
        %726 = vmatprep.subr.mxu0 0.0
        %727 = vmatpush1.msra.mxu0 0.0
        %728 = vmatprep.subr.mxu0 0.0
        %729 = vmatpush1.msra.mxu0 0.0
        %730 = vmatprep.subr.mxu0 0.0
        %731 = vmatpush1.msra.mxu0 0.0
        %732 = vmatprep.subr.mxu0 0.0
        %733 = vmatpush1.msra.mxu0 0.0
        %734 = vmatprep.subr.mxu0 0.0
        %735 = vmatpush1.msra.mxu0 0.0
        %736 = vmatprep.subr.mxu0 0.0
        %737 = vmatpush1.msra.mxu0 0.0
        %738 = vmatprep.subr.mxu0 0.0
        %739 = vmatpush1.msra.mxu0 0.0
        %740 = vmatprep.subr.mxu0 0.0
        %741 = vmatpush1.msra.mxu0 0.0
        %742 = vmatprep.subr.mxu0 0.0
        %743 = vmatpush1.msra.mxu0 0.0
        %744 = vmatprep.subr.mxu0 0.0
        %745 = vmatpush1.msra.mxu0 0.0
        %746 = vmatprep.subr.mxu0 0.0
        %747 = vmatpush1.msra.mxu0 0.0
        %748 = vmatprep.subr.mxu0 0.0
        %749 = vmatpush1.msra.mxu0 0.0
        %750 = vmatprep.subr.mxu0 0.0
        %751 = vmatpush1.msra.mxu0 0.0
        %752 = vmatprep.mubr.f32.mxu0 0.0
        %753 = vmatmul.mubr.f32.gmra.mrb[0].mxu0 %v638
        %v754 = vpop.f32.mrb[0].mxu0
        %v755 = vadd.f32 0.0, %v754
        %v756 = vpop.f32.mrb[0].mxu0
        %757 = vmatprep.mubr.f32.mxu0 0.0
        %758 = vmatmul.mubr.f32.gmra.mrb[0].mxu0 %v641
        %v759 = vpop.f32.mrb[0].mxu0
        %v760 = vadd.f32 0.0, %v759
        %v761 = vpop.f32.mrb[0].mxu0
        %762 = vmatprep.mubr.f32.mxu0 0.0
        %763 = vmatmul.mubr.f32.gmra.mrb[0].mxu0 %v644
        %v764 = vpop.f32.mrb[0].mxu0
        %v765 = vadd.f32 0.0, %v764
        %v766 = vpop.f32.mrb[0].mxu0
        %767 = vmatprep.mubr.f32.mxu0 0.0
        %768 = vmatmul.mubr.f32.gmra.mrb[0].mxu0 %v647
        %v769 = vpop.f32.mrb[0].mxu0
        %v770 = vadd.f32 0.0, %v769
        %v771 = vpop.f32.mrb[0].mxu0
        %772 = vmatprep.mubr.f32.mxu0 0.0
        %773 = vmatmul.mubr.f32.gmra.mrb[0].mxu0 %v650
        %v774 = vpop.f32.mrb[0].mxu0
        %v775 = vadd.f32 0.0, %v774
        %v776 = vpop.f32.mrb[0].mxu0
        %777 = vmatprep.mubr.f32.mxu0 0.0
        %778 = vmatmul.mubr.f32.gmra.mrb[0].mxu0 %v653
        %v779 = vpop.f32.mrb[0].mxu0
        %v780 = vadd.f32 0.0, %v779
        %v781 = vpop.f32.mrb[0].mxu0
        %782 = vmatprep.mubr.f32.mxu0 0.0
        %783 = vmatmul.mubr.f32.gmra.mrb[0].mxu0 %v656
        %v784 = vpop.f32.mrb[0].mxu0
        %v785 = vadd.f32 0.0, %v784
        %v786 = vpop.f32.mrb[0].mxu0
        %787 = vmatprep.mubr.f32.mxu0 0.0
        %788 = vmatmul.mubr.f32.gmra.mrb[0].mxu0 %v659
        %v789 = vpop.f32.mrb[0].mxu0
        %v790 = vadd.f32 0.0, %v789
        %v791 = vpop.f32.mrb[0].mxu0
        %792 = vmatprep.mubr.f32.mxu0 0.0
        %793 = vmatmul.mubr.f32.gmra.mrb[0].mxu0 %v662
        %v794 = vpop.f32.mrb[0].mxu0
        %v795 = vadd.f32 0.0, %v794
        %v796 = vpop.f32.mrb[0].mxu0
        %797 = vmatprep.mubr.f32.mxu0 0.0
        %798 = vmatmul.mubr.f32.gmra.mrb[0].mxu0 %v665
        %v799 = vpop.f32.mrb[0].mxu0
        %v800 = vadd.f32 0.0, %v799
        %v801 = vpop.f32.mrb[0].mxu0
        %802 = vmatprep.mubr.f32.mxu0 0.0
        %803 = vmatmul.mubr.f32.gmra.mrb[0].mxu0 %v668
        %v804 = vpop.f32.mrb[0].mxu0
        %v805 = vadd.f32 0.0, %v804
        %v806 = vpop.f32.mrb[0].mxu0
        %807 = vmatprep.mubr.f32.mxu0 0.0
        %808 = vmatmul.mubr.f32.gmra.mrb[0].mxu0 %v671
        %v809 = vpop.f32.mrb[0].mxu0
        %v810 = vadd.f32 0.0, %v809
        %v811 = vpop.f32.mrb[0].mxu0
        %812 = vmatprep.mubr.f32.mxu0 0.0
        %813 = vmatmul.mubr.f32.gmra.mrb[0].mxu0 %v674
        %v814 = vpop.f32.mrb[0].mxu0
        %v815 = vadd.f32 0.0, %v814
        %v816 = vpop.f32.mrb[0].mxu0
        %817 = vmatprep.mubr.f32.mxu0 0.0
        %818 = vmatmul.mubr.f32.gmra.mrb[0].mxu0 %v677
        %v819 = vpop.f32.mrb[0].mxu0
        %v820 = vadd.f32 0.0, %v819
        %v821 = vpop.f32.mrb[0].mxu0
        %822 = vmatprep.mubr.f32.mxu0 0.0
        %823 = vmatmul.mubr.f32.gmra.mrb[0].mxu0 %v680
        %v824 = vpop.f32.mrb[0].mxu0
        %v825 = vadd.f32 0.0, %v824
        %v826 = vpop.f32.mrb[0].mxu0
        %827 = vmatprep.mubr.f32.mxu0 0.0
        %828 = vmatmul.mubr.f32.gmra.mrb[0].mxu0 %v683
        %v829 = vpop.f32.mrb[0].mxu0
        %v830 = vadd.f32 0.0, %v829
        %v831 = vpop.f32.mrb[0].mxu0
        %832 = vdwg.mxu0
        %v834 = vsel %vm272, %v618, 0
        %836 = vmatprep.subr.mxu0 0.0
        %837 = vmatpush1.msra.mxu0 %v834
        %838 = vmatprep.subr.mxu0 0.0
        %839 = vmatpush1.msra.mxu0 0.0
        %840 = vmatprep.subr.mxu0 0.0
        %841 = vmatpush1.msra.mxu0 0.0
        %842 = vmatprep.subr.mxu0 0.0
        %843 = vmatpush1.msra.mxu0 0.0
        %844 = vmatprep.subr.mxu0 0.0
        %845 = vmatpush1.msra.mxu0 0.0
        %846 = vmatprep.subr.mxu0 0.0
        %847 = vmatpush1.msra.mxu0 0.0
        %848 = vmatprep.subr.mxu0 0.0
        %849 = vmatpush1.msra.mxu0 0.0
        %850 = vmatprep.subr.mxu0 0.0
        %851 = vmatpush1.msra.mxu0 0.0
        %852 = vmatprep.subr.mxu0 0.0
        %853 = vmatpush1.msra.mxu0 0.0
        %854 = vmatprep.subr.mxu0 0.0
        %855 = vmatpush1.msra.mxu0 0.0
        %856 = vmatprep.subr.mxu0 0.0
        %857 = vmatpush1.msra.mxu0 0.0
        %858 = vmatprep.subr.mxu0 0.0
        %859 = vmatpush1.msra.mxu0 0.0
        %860 = vmatprep.subr.mxu0 0.0
        %861 = vmatpush1.msra.mxu0 0.0
        %862 = vmatprep.subr.mxu0 0.0
        %863 = vmatpush1.msra.mxu0 0.0
        %864 = vmatprep.subr.mxu0 0.0
        %865 = vmatpush1.msra.mxu0 0.0
        %866 = vmatprep.subr.mxu0 0.0
        %867 = vmatpush1.msra.mxu0 0.0
        %868 = vmatprep.subr.mxu0 0.0
        %869 = vmatpush1.msra.mxu0 0.0
        %870 = vmatprep.subr.mxu0 0.0
        %871 = vmatpush1.msra.mxu0 0.0
        %872 = vmatprep.subr.mxu0 0.0
        %873 = vmatpush1.msra.mxu0 0.0
        %874 = vmatprep.subr.mxu0 0.0
        %875 = vmatpush1.msra.mxu0 0.0
        %876 = vmatprep.subr.mxu0 0.0
        %877 = vmatpush1.msra.mxu0 0.0
        %878 = vmatprep.subr.mxu0 0.0
        %879 = vmatpush1.msra.mxu0 0.0
        %880 = vmatprep.subr.mxu0 0.0
        %881 = vmatpush1.msra.mxu0 0.0
        %882 = vmatprep.subr.mxu0 0.0
        %883 = vmatpush1.msra.mxu0 0.0
        %884 = vmatprep.subr.mxu0 0.0
        %885 = vmatpush1.msra.mxu0 0.0
        %886 = vmatprep.subr.mxu0 0.0
        %887 = vmatpush1.msra.mxu0 0.0
        %888 = vmatprep.subr.mxu0 0.0
        %889 = vmatpush1.msra.mxu0 0.0
        %890 = vmatprep.subr.mxu0 0.0
        %891 = vmatpush1.msra.mxu0 0.0
        %892 = vmatprep.subr.mxu0 0.0
        %893 = vmatpush1.msra.mxu0 0.0
        %894 = vmatprep.subr.mxu0 0.0
        %895 = vmatpush1.msra.mxu0 0.0
        %896 = vmatprep.subr.mxu0 0.0
        %897 = vmatpush1.msra.mxu0 0.0
        %898 = vmatprep.subr.mxu0 0.0
        %899 = vmatpush1.msra.mxu0 0.0
        %900 = vmatprep.mubr.f32.mxu0 0.0
        %901 = vmatmul.mubr.f32.gmra.mrb[0].mxu0 %v225
        %v902 = vpop.f32.mrb[0].mxu0
        %v903 = vadd.f32 %v755, %v902
        %v904 = vpop.f32.mrb[0].mxu0
        %905 = vmatprep.mubr.f32.mxu0 0.0
        %906 = vmatmul.mubr.f32.gmra.mrb[0].mxu0 %v228
        %v907 = vpop.f32.mrb[0].mxu0
        %v908 = vadd.f32 %v760, %v907
        %v909 = vpop.f32.mrb[0].mxu0
        %910 = vmatprep.mubr.f32.mxu0 0.0
        %911 = vmatmul.mubr.f32.gmra.mrb[0].mxu0 %v231
        %v912 = vpop.f32.mrb[0].mxu0
        %v913 = vadd.f32 %v765, %v912
        %v914 = vpop.f32.mrb[0].mxu0
        %915 = vmatprep.mubr.f32.mxu0 0.0
        %916 = vmatmul.mubr.f32.gmra.mrb[0].mxu0 %v234
        %v917 = vpop.f32.mrb[0].mxu0
        %v918 = vadd.f32 %v770, %v917
        %v919 = vpop.f32.mrb[0].mxu0
        %920 = vmatprep.mubr.f32.mxu0 0.0
        %921 = vmatmul.mubr.f32.gmra.mrb[0].mxu0 %v237
        %v922 = vpop.f32.mrb[0].mxu0
        %v923 = vadd.f32 %v775, %v922
        %v924 = vpop.f32.mrb[0].mxu0
        %925 = vmatprep.mubr.f32.mxu0 0.0
        %926 = vmatmul.mubr.f32.gmra.mrb[0].mxu0 %v240
        %v927 = vpop.f32.mrb[0].mxu0
        %v928 = vadd.f32 %v780, %v927
        %v929 = vpop.f32.mrb[0].mxu0
        %930 = vmatprep.mubr.f32.mxu0 0.0
        %931 = vmatmul.mubr.f32.gmra.mrb[0].mxu0 %v243
        %v932 = vpop.f32.mrb[0].mxu0
        %v933 = vadd.f32 %v785, %v932
        %v934 = vpop.f32.mrb[0].mxu0
        %935 = vmatprep.mubr.f32.mxu0 0.0
        %936 = vmatmul.mubr.f32.gmra.mrb[0].mxu0 %v246
        %v937 = vpop.f32.mrb[0].mxu0
        %v938 = vadd.f32 %v790, %v937
        %v939 = vpop.f32.mrb[0].mxu0
        %940 = vmatprep.mubr.f32.mxu0 0.0
        %941 = vmatmul.mubr.f32.gmra.mrb[0].mxu0 %v249
        %v942 = vpop.f32.mrb[0].mxu0
        %v943 = vadd.f32 %v795, %v942
        %v944 = vpop.f32.mrb[0].mxu0
        %945 = vmatprep.mubr.f32.mxu0 0.0
        %946 = vmatmul.mubr.f32.gmra.mrb[0].mxu0 %v252
        %v947 = vpop.f32.mrb[0].mxu0
        %v948 = vadd.f32 %v800, %v947
        %v949 = vpop.f32.mrb[0].mxu0
        %950 = vmatprep.mubr.f32.mxu0 0.0
        %951 = vmatmul.mubr.f32.gmra.mrb[0].mxu0 %v255
        %v952 = vpop.f32.mrb[0].mxu0
        %v953 = vadd.f32 %v805, %v952
        %v954 = vpop.f32.mrb[0].mxu0
        %955 = vmatprep.mubr.f32.mxu0 0.0
        %956 = vmatmul.mubr.f32.gmra.mrb[0].mxu0 %v258
        %v957 = vpop.f32.mrb[0].mxu0
        %v958 = vadd.f32 %v810, %v957
        %v959 = vpop.f32.mrb[0].mxu0
        %960 = vmatprep.mubr.f32.mxu0 0.0
        %961 = vmatmul.mubr.f32.gmra.mrb[0].mxu0 %v261
        %v962 = vpop.f32.mrb[0].mxu0
        %v963 = vadd.f32 %v815, %v962
        %v964 = vpop.f32.mrb[0].mxu0
        %965 = vmatprep.mubr.f32.mxu0 0.0
        %966 = vmatmul.mubr.f32.gmra.mrb[0].mxu0 %v264
        %v967 = vpop.f32.mrb[0].mxu0
        %v968 = vadd.f32 %v820, %v967
        %v969 = vpop.f32.mrb[0].mxu0
        %970 = vmatprep.mubr.f32.mxu0 0.0
        %971 = vmatmul.mubr.f32.gmra.mrb[0].mxu0 %v267
        %v972 = vpop.f32.mrb[0].mxu0
        %v973 = vadd.f32 %v825, %v972
        %v974 = vpop.f32.mrb[0].mxu0
        %975 = vmatprep.mubr.f32.mxu0 0.0
        %976 = vmatmul.mubr.f32.gmra.mrb[0].mxu0 %v270
        %v977 = vpop.f32.mrb[0].mxu0
        %v978 = vadd.f32 %v830, %v977
        %v979 = vpop.f32.mrb[0].mxu0
        %980 = vdwg.mxu0
        %s981 = sadd.s32 %s184, 1
        %s982 = smul.u32 %s981, 24
        %s983 = scalar_lea.vmem %s182, %s982
        %v984 = vld [vmem:[%s983] sm:$0xff]
        %v985 = vld [vmem:[%s983 + $0x8] sm:$0xff]
        %v986 = vld [vmem:[%s983 + $0x18] sm:$0xff]
        %v987 = vld [vmem:[%s983 + $0x20] sm:$0xff]
        %v988 = vld [vmem:[%s983 + $0x30] sm:$0xff]
        %v989 = vld [vmem:[%s983 + $0x38] sm:$0xff]
        %v990 = vld [vmem:[%s983 + $0x48] sm:$0xff]
        %v991 = vld [vmem:[%s983 + $0x50] sm:$0xff]
        %v992 = vld [vmem:[%s983 + $0x60] sm:$0xff]
        %v993 = vld [vmem:[%s983 + $0x68] sm:$0xff]
        %v994 = vld [vmem:[%s983 + $0x78] sm:$0xff]
        %v995 = vld [vmem:[%s983 + $0x80] sm:$0xff]
        %v996 = vld [vmem:[%s983 + $0x90] sm:$0xff]
        %v997 = vld [vmem:[%s983 + $0x98] sm:$0xff]
        %v998 = vld [vmem:[%s983 + $0xa8] sm:$0xff]
        %v999 = vld [vmem:[%s983 + $0xb0] sm:$0xff]
        %s1000 = scalar_lea.vmem %s1, 8
        %v1001 = vld [vmem:[%s1000] sm:$0xf]
        %v1003 = vsel %vm223, %v984, 0
        %v1006 = vsel %vm223, %v985, 0
        %v1009 = vsel %vm223, %v986, 0
        %v1012 = vsel %vm223, %v987, 0
        %v1015 = vsel %vm223, %v988, 0
        %v1018 = vsel %vm223, %v989, 0
        %v1021 = vsel %vm223, %v990, 0
        %v1024 = vsel %vm223, %v991, 0
        %v1027 = vsel %vm223, %v992, 0
        %v1030 = vsel %vm223, %v993, 0
        %v1033 = vsel %vm223, %v994, 0
        %v1036 = vsel %vm223, %v995, 0
        %v1039 = vsel %vm223, %v996, 0
        %v1042 = vsel %vm223, %v997, 0
        %v1045 = vsel %vm223, %v998, 0
        %v1048 = vsel %vm223, %v999, 0
        %v1051 = vsel %vm272, %v1001, 0
        %1053 = vmatprep.subr.mxu0 0.0
        %1054 = vmatpush1.msra.mxu0 %v1051
        %1055 = vmatprep.subr.mxu0 0.0
        %1056 = vmatpush1.msra.mxu0 0.0
        %1057 = vmatprep.subr.mxu0 0.0
        %1058 = vmatpush1.msra.mxu0 0.0
        %1059 = vmatprep.subr.mxu0 0.0
        %1060 = vmatpush1.msra.mxu0 0.0
        %1061 = vmatprep.subr.mxu0 0.0
        %1062 = vmatpush1.msra.mxu0 0.0
        %1063 = vmatprep.subr.mxu0 0.0
        %1064 = vmatpush1.msra.mxu0 0.0
        %1065 = vmatprep.subr.mxu0 0.0
        %1066 = vmatpush1.msra.mxu0 0.0
        %1067 = vmatprep.subr.mxu0 0.0
        %1068 = vmatpush1.msra.mxu0 0.0
        %1069 = vmatprep.subr.mxu0 0.0
        %1070 = vmatpush1.msra.mxu0 0.0
        %1071 = vmatprep.subr.mxu0 0.0
        %1072 = vmatpush1.msra.mxu0 0.0
        %1073 = vmatprep.subr.mxu0 0.0
        %1074 = vmatpush1.msra.mxu0 0.0
        %1075 = vmatprep.subr.mxu0 0.0
        %1076 = vmatpush1.msra.mxu0 0.0
        %1077 = vmatprep.subr.mxu0 0.0
        %1078 = vmatpush1.msra.mxu0 0.0
        %1079 = vmatprep.subr.mxu0 0.0
        %1080 = vmatpush1.msra.mxu0 0.0
        %1081 = vmatprep.subr.mxu0 0.0
        %1082 = vmatpush1.msra.mxu0 0.0
        %1083 = vmatprep.subr.mxu0 0.0
        %1084 = vmatpush1.msra.mxu0 0.0
        %1085 = vmatprep.subr.mxu0 0.0
        %1086 = vmatpush1.msra.mxu0 0.0
        %1087 = vmatprep.subr.mxu0 0.0
        %1088 = vmatpush1.msra.mxu0 0.0
        %1089 = vmatprep.subr.mxu0 0.0
        %1090 = vmatpush1.msra.mxu0 0.0
        %1091 = vmatprep.subr.mxu0 0.0
        %1092 = vmatpush1.msra.mxu0 0.0
        %1093 = vmatprep.subr.mxu0 0.0
        %1094 = vmatpush1.msra.mxu0 0.0
        %1095 = vmatprep.subr.mxu0 0.0
        %1096 = vmatpush1.msra.mxu0 0.0
        %1097 = vmatprep.subr.mxu0 0.0
        %1098 = vmatpush1.msra.mxu0 0.0
        %1099 = vmatprep.subr.mxu0 0.0
        %1100 = vmatpush1.msra.mxu0 0.0
        %1101 = vmatprep.subr.mxu0 0.0
        %1102 = vmatpush1.msra.mxu0 0.0
        %1103 = vmatprep.subr.mxu0 0.0
        %1104 = vmatpush1.msra.mxu0 0.0
        %1105 = vmatprep.subr.mxu0 0.0
        %1106 = vmatpush1.msra.mxu0 0.0
        %1107 = vmatprep.subr.mxu0 0.0
        %1108 = vmatpush1.msra.mxu0 0.0
        %1109 = vmatprep.subr.mxu0 0.0
        %1110 = vmatpush1.msra.mxu0 0.0
        %1111 = vmatprep.subr.mxu0 0.0
        %1112 = vmatpush1.msra.mxu0 0.0
        %1113 = vmatprep.subr.mxu0 0.0
        %1114 = vmatpush1.msra.mxu0 0.0
        %1115 = vmatprep.subr.mxu0 0.0
        %1116 = vmatpush1.msra.mxu0 0.0
        %1117 = vmatprep.mubr.f32.mxu0 0.0
        %1118 = vmatmul.mubr.f32.gmra.mrb[0].mxu0 %v1003
        %v1119 = vpop.f32.mrb[0].mxu0
        %v1120 = vadd.f32 0.0, %v1119
        %v1121 = vpop.f32.mrb[0].mxu0
        %1122 = vmatprep.mubr.f32.mxu0 0.0
        %1123 = vmatmul.mubr.f32.gmra.mrb[0].mxu0 %v1006
        %v1124 = vpop.f32.mrb[0].mxu0
        %v1125 = vadd.f32 0.0, %v1124
        %v1126 = vpop.f32.mrb[0].mxu0
        %1127 = vmatprep.mubr.f32.mxu0 0.0
        %1128 = vmatmul.mubr.f32.gmra.mrb[0].mxu0 %v1009
        %v1129 = vpop.f32.mrb[0].mxu0
        %v1130 = vadd.f32 0.0, %v1129
        %v1131 = vpop.f32.mrb[0].mxu0
        %1132 = vmatprep.mubr.f32.mxu0 0.0
        %1133 = vmatmul.mubr.f32.gmra.mrb[0].mxu0 %v1012
        %v1134 = vpop.f32.mrb[0].mxu0
        %v1135 = vadd.f32 0.0, %v1134
        %v1136 = vpop.f32.mrb[0].mxu0
        %1137 = vmatprep.mubr.f32.mxu0 0.0
        %1138 = vmatmul.mubr.f32.gmra.mrb[0].mxu0 %v1015
        %v1139 = vpop.f32.mrb[0].mxu0
        %v1140 = vadd.f32 0.0, %v1139
        %v1141 = vpop.f32.mrb[0].mxu0
        %1142 = vmatprep.mubr.f32.mxu0 0.0
        %1143 = vmatmul.mubr.f32.gmra.mrb[0].mxu0 %v1018
        %v1144 = vpop.f32.mrb[0].mxu0
        %v1145 = vadd.f32 0.0, %v1144
        %v1146 = vpop.f32.mrb[0].mxu0
        %1147 = vmatprep.mubr.f32.mxu0 0.0
        %1148 = vmatmul.mubr.f32.gmra.mrb[0].mxu0 %v1021
        %v1149 = vpop.f32.mrb[0].mxu0
        %v1150 = vadd.f32 0.0, %v1149
        %v1151 = vpop.f32.mrb[0].mxu0
        %1152 = vmatprep.mubr.f32.mxu0 0.0
        %1153 = vmatmul.mubr.f32.gmra.mrb[0].mxu0 %v1024
        %v1154 = vpop.f32.mrb[0].mxu0
        %v1155 = vadd.f32 0.0, %v1154
        %v1156 = vpop.f32.mrb[0].mxu0
        %1157 = vmatprep.mubr.f32.mxu0 0.0
        %1158 = vmatmul.mubr.f32.gmra.mrb[0].mxu0 %v1027
        %v1159 = vpop.f32.mrb[0].mxu0
        %v1160 = vadd.f32 0.0, %v1159
        %v1161 = vpop.f32.mrb[0].mxu0
        %1162 = vmatprep.mubr.f32.mxu0 0.0
        %1163 = vmatmul.mubr.f32.gmra.mrb[0].mxu0 %v1030
        %v1164 = vpop.f32.mrb[0].mxu0
        %v1165 = vadd.f32 0.0, %v1164
        %v1166 = vpop.f32.mrb[0].mxu0
        %1167 = vmatprep.mubr.f32.mxu0 0.0
        %1168 = vmatmul.mubr.f32.gmra.mrb[0].mxu0 %v1033
        %v1169 = vpop.f32.mrb[0].mxu0
        %v1170 = vadd.f32 0.0, %v1169
        %v1171 = vpop.f32.mrb[0].mxu0
        %1172 = vmatprep.mubr.f32.mxu0 0.0
        %1173 = vmatmul.mubr.f32.gmra.mrb[0].mxu0 %v1036
        %v1174 = vpop.f32.mrb[0].mxu0
        %v1175 = vadd.f32 0.0, %v1174
        %v1176 = vpop.f32.mrb[0].mxu0
        %1177 = vmatprep.mubr.f32.mxu0 0.0
        %1178 = vmatmul.mubr.f32.gmra.mrb[0].mxu0 %v1039
        %v1179 = vpop.f32.mrb[0].mxu0
        %v1180 = vadd.f32 0.0, %v1179
        %v1181 = vpop.f32.mrb[0].mxu0
        %1182 = vmatprep.mubr.f32.mxu0 0.0
        %1183 = vmatmul.mubr.f32.gmra.mrb[0].mxu0 %v1042
        %v1184 = vpop.f32.mrb[0].mxu0
        %v1185 = vadd.f32 0.0, %v1184
        %v1186 = vpop.f32.mrb[0].mxu0
        %1187 = vmatprep.mubr.f32.mxu0 0.0
        %1188 = vmatmul.mubr.f32.gmra.mrb[0].mxu0 %v1045
        %v1189 = vpop.f32.mrb[0].mxu0
        %v1190 = vadd.f32 0.0, %v1189
        %v1191 = vpop.f32.mrb[0].mxu0
        %1192 = vmatprep.mubr.f32.mxu0 0.0
        %1193 = vmatmul.mubr.f32.gmra.mrb[0].mxu0 %v1048
        %v1194 = vpop.f32.mrb[0].mxu0
        %v1195 = vadd.f32 0.0, %v1194
        %v1196 = vpop.f32.mrb[0].mxu0
        %1197 = vdwg.mxu0
        %v1198 = vadd.f32 %v539, %v1120
        %v1199 = vadd.f32 %v544, %v1125
        %v1200 = vadd.f32 %v549, %v1130
        %v1201 = vadd.f32 %v554, %v1135
        %v1202 = vadd.f32 %v559, %v1140
        %v1203 = vadd.f32 %v564, %v1145
        %v1204 = vadd.f32 %v569, %v1150
        %v1205 = vadd.f32 %v574, %v1155
        %v1206 = vadd.f32 %v579, %v1160
        %v1207 = vadd.f32 %v584, %v1165
        %v1208 = vadd.f32 %v589, %v1170
        %v1209 = vadd.f32 %v594, %v1175
        %v1210 = vadd.f32 %v599, %v1180
        %v1211 = vadd.f32 %v604, %v1185
        %v1212 = vadd.f32 %v609, %v1190
        %v1213 = vadd.f32 %v614, %v1195
        %s1214 = scalar_lea.vmem %s1, 32
        %v1215 = vld [vmem:[%s1214] sm:$0xf]
        %v1216 = vld [vmem:[%s983 + $0x1] sm:$0xff]
        %v1217 = vld [vmem:[%s983 + $0x9] sm:$0xff]
        %v1218 = vld [vmem:[%s983 + $0x19] sm:$0xff]
        %v1219 = vld [vmem:[%s983 + $0x21] sm:$0xff]
        %v1220 = vld [vmem:[%s983 + $0x31] sm:$0xff]
        %v1221 = vld [vmem:[%s983 + $0x39] sm:$0xff]
        %v1222 = vld [vmem:[%s983 + $0x49] sm:$0xff]
        %v1223 = vld [vmem:[%s983 + $0x51] sm:$0xff]
        %v1224 = vld [vmem:[%s983 + $0x61] sm:$0xff]
        %v1225 = vld [vmem:[%s983 + $0x69] sm:$0xff]
        %v1226 = vld [vmem:[%s983 + $0x79] sm:$0xff]
        %v1227 = vld [vmem:[%s983 + $0x81] sm:$0xff]
        %v1228 = vld [vmem:[%s983 + $0x91] sm:$0xff]
        %v1229 = vld [vmem:[%s983 + $0x99] sm:$0xff]
        %v1230 = vld [vmem:[%s983 + $0xa9] sm:$0xff]
        %v1231 = vld [vmem:[%s983 + $0xb1] sm:$0xff]
        %s1232 = scalar_lea.vmem %s1, 12
        %v1233 = vld [vmem:[%s1232] sm:$0xf]
        %v1235 = vsel %vm223, %v1216, 0
        %v1238 = vsel %vm223, %v1217, 0
        %v1241 = vsel %vm223, %v1218, 0
        %v1244 = vsel %vm223, %v1219, 0
        %v1247 = vsel %vm223, %v1220, 0
        %v1250 = vsel %vm223, %v1221, 0
        %v1253 = vsel %vm223, %v1222, 0
        %v1256 = vsel %vm223, %v1223, 0
        %v1259 = vsel %vm223, %v1224, 0
        %v1262 = vsel %vm223, %v1225, 0
        %v1265 = vsel %vm223, %v1226, 0
        %v1268 = vsel %vm223, %v1227, 0
        %v1271 = vsel %vm223, %v1228, 0
        %v1274 = vsel %vm223, %v1229, 0
        %v1277 = vsel %vm223, %v1230, 0
        %v1280 = vsel %vm223, %v1231, 0
        %v1283 = vsel %vm272, %v1233, 0
        %1285 = vmatprep.subr.mxu0 0.0
        %1286 = vmatpush1.msra.mxu0 %v1283
        %1287 = vmatprep.subr.mxu0 0.0
        %1288 = vmatpush1.msra.mxu0 0.0
        %1289 = vmatprep.subr.mxu0 0.0
        %1290 = vmatpush1.msra.mxu0 0.0
        %1291 = vmatprep.subr.mxu0 0.0
        %1292 = vmatpush1.msra.mxu0 0.0
        %1293 = vmatprep.subr.mxu0 0.0
        %1294 = vmatpush1.msra.mxu0 0.0
        %1295 = vmatprep.subr.mxu0 0.0
        %1296 = vmatpush1.msra.mxu0 0.0
        %1297 = vmatprep.subr.mxu0 0.0
        %1298 = vmatpush1.msra.mxu0 0.0
        %1299 = vmatprep.subr.mxu0 0.0
        %1300 = vmatpush1.msra.mxu0 0.0
        %1301 = vmatprep.subr.mxu0 0.0
        %1302 = vmatpush1.msra.mxu0 0.0
        %1303 = vmatprep.subr.mxu0 0.0
        %1304 = vmatpush1.msra.mxu0 0.0
        %1305 = vmatprep.subr.mxu0 0.0
        %1306 = vmatpush1.msra.mxu0 0.0
        %1307 = vmatprep.subr.mxu0 0.0
        %1308 = vmatpush1.msra.mxu0 0.0
        %1309 = vmatprep.subr.mxu0 0.0
        %1310 = vmatpush1.msra.mxu0 0.0
        %1311 = vmatprep.subr.mxu0 0.0
        %1312 = vmatpush1.msra.mxu0 0.0
        %1313 = vmatprep.subr.mxu0 0.0
        %1314 = vmatpush1.msra.mxu0 0.0
        %1315 = vmatprep.subr.mxu0 0.0
        %1316 = vmatpush1.msra.mxu0 0.0
        %1317 = vmatprep.subr.mxu0 0.0
        %1318 = vmatpush1.msra.mxu0 0.0
        %1319 = vmatprep.subr.mxu0 0.0
        %1320 = vmatpush1.msra.mxu0 0.0
        %1321 = vmatprep.subr.mxu0 0.0
        %1322 = vmatpush1.msra.mxu0 0.0
        %1323 = vmatprep.subr.mxu0 0.0
        %1324 = vmatpush1.msra.mxu0 0.0
        %1325 = vmatprep.subr.mxu0 0.0
        %1326 = vmatpush1.msra.mxu0 0.0
        %1327 = vmatprep.subr.mxu0 0.0
        %1328 = vmatpush1.msra.mxu0 0.0
        %1329 = vmatprep.subr.mxu0 0.0
        %1330 = vmatpush1.msra.mxu0 0.0
        %1331 = vmatprep.subr.mxu0 0.0
        %1332 = vmatpush1.msra.mxu0 0.0
        %1333 = vmatprep.subr.mxu0 0.0
        %1334 = vmatpush1.msra.mxu0 0.0
        %1335 = vmatprep.subr.mxu0 0.0
        %1336 = vmatpush1.msra.mxu0 0.0
        %1337 = vmatprep.subr.mxu0 0.0
        %1338 = vmatpush1.msra.mxu0 0.0
        %1339 = vmatprep.subr.mxu0 0.0
        %1340 = vmatpush1.msra.mxu0 0.0
        %1341 = vmatprep.subr.mxu0 0.0
        %1342 = vmatpush1.msra.mxu0 0.0
        %1343 = vmatprep.subr.mxu0 0.0
        %1344 = vmatpush1.msra.mxu0 0.0
        %1345 = vmatprep.subr.mxu0 0.0
        %1346 = vmatpush1.msra.mxu0 0.0
        %1347 = vmatprep.subr.mxu0 0.0
        %1348 = vmatpush1.msra.mxu0 0.0
        %1349 = vmatprep.mubr.f32.mxu0 0.0
        %1350 = vmatmul.mubr.f32.gmra.mrb[0].mxu0 %v1235
        %v1351 = vpop.f32.mrb[0].mxu0
        %v1352 = vadd.f32 0.0, %v1351
        %v1353 = vpop.f32.mrb[0].mxu0
        %1354 = vmatprep.mubr.f32.mxu0 0.0
        %1355 = vmatmul.mubr.f32.gmra.mrb[0].mxu0 %v1238
        %v1356 = vpop.f32.mrb[0].mxu0
        %v1357 = vadd.f32 0.0, %v1356
        %v1358 = vpop.f32.mrb[0].mxu0
        %1359 = vmatprep.mubr.f32.mxu0 0.0
        %1360 = vmatmul.mubr.f32.gmra.mrb[0].mxu0 %v1241
        %v1361 = vpop.f32.mrb[0].mxu0
        %v1362 = vadd.f32 0.0, %v1361
        %v1363 = vpop.f32.mrb[0].mxu0
        %1364 = vmatprep.mubr.f32.mxu0 0.0
        %1365 = vmatmul.mubr.f32.gmra.mrb[0].mxu0 %v1244
        %v1366 = vpop.f32.mrb[0].mxu0
        %v1367 = vadd.f32 0.0, %v1366
        %v1368 = vpop.f32.mrb[0].mxu0
        %1369 = vmatprep.mubr.f32.mxu0 0.0
        %1370 = vmatmul.mubr.f32.gmra.mrb[0].mxu0 %v1247
        %v1371 = vpop.f32.mrb[0].mxu0
        %v1372 = vadd.f32 0.0, %v1371
        %v1373 = vpop.f32.mrb[0].mxu0
        %1374 = vmatprep.mubr.f32.mxu0 0.0
        %1375 = vmatmul.mubr.f32.gmra.mrb[0].mxu0 %v1250
        %v1376 = vpop.f32.mrb[0].mxu0
        %v1377 = vadd.f32 0.0, %v1376
        %v1378 = vpop.f32.mrb[0].mxu0
        %1379 = vmatprep.mubr.f32.mxu0 0.0
        %1380 = vmatmul.mubr.f32.gmra.mrb[0].mxu0 %v1253
        %v1381 = vpop.f32.mrb[0].mxu0
        %v1382 = vadd.f32 0.0, %v1381
        %v1383 = vpop.f32.mrb[0].mxu0
        %1384 = vmatprep.mubr.f32.mxu0 0.0
        %1385 = vmatmul.mubr.f32.gmra.mrb[0].mxu0 %v1256
        %v1386 = vpop.f32.mrb[0].mxu0
        %v1387 = vadd.f32 0.0, %v1386
        %v1388 = vpop.f32.mrb[0].mxu0
        %1389 = vmatprep.mubr.f32.mxu0 0.0
        %1390 = vmatmul.mubr.f32.gmra.mrb[0].mxu0 %v1259
        %v1391 = vpop.f32.mrb[0].mxu0
        %v1392 = vadd.f32 0.0, %v1391
        %v1393 = vpop.f32.mrb[0].mxu0
        %1394 = vmatprep.mubr.f32.mxu0 0.0
        %1395 = vmatmul.mubr.f32.gmra.mrb[0].mxu0 %v1262
        %v1396 = vpop.f32.mrb[0].mxu0
        %v1397 = vadd.f32 0.0, %v1396
        %v1398 = vpop.f32.mrb[0].mxu0
        %1399 = vmatprep.mubr.f32.mxu0 0.0
        %1400 = vmatmul.mubr.f32.gmra.mrb[0].mxu0 %v1265
        %v1401 = vpop.f32.mrb[0].mxu0
        %v1402 = vadd.f32 0.0, %v1401
        %v1403 = vpop.f32.mrb[0].mxu0
        %1404 = vmatprep.mubr.f32.mxu0 0.0
        %1405 = vmatmul.mubr.f32.gmra.mrb[0].mxu0 %v1268
        %v1406 = vpop.f32.mrb[0].mxu0
        %v1407 = vadd.f32 0.0, %v1406
        %v1408 = vpop.f32.mrb[0].mxu0
        %1409 = vmatprep.mubr.f32.mxu0 0.0
        %1410 = vmatmul.mubr.f32.gmra.mrb[0].mxu0 %v1271
        %v1411 = vpop.f32.mrb[0].mxu0
        %v1412 = vadd.f32 0.0, %v1411
        %v1413 = vpop.f32.mrb[0].mxu0
        %1414 = vmatprep.mubr.f32.mxu0 0.0
        %1415 = vmatmul.mubr.f32.gmra.mrb[0].mxu0 %v1274
        %v1416 = vpop.f32.mrb[0].mxu0
        %v1417 = vadd.f32 0.0, %v1416
        %v1418 = vpop.f32.mrb[0].mxu0
        %1419 = vmatprep.mubr.f32.mxu0 0.0
        %1420 = vmatmul.mubr.f32.gmra.mrb[0].mxu0 %v1277
        %v1421 = vpop.f32.mrb[0].mxu0
        %v1422 = vadd.f32 0.0, %v1421
        %v1423 = vpop.f32.mrb[0].mxu0
        %1424 = vmatprep.mubr.f32.mxu0 0.0
        %1425 = vmatmul.mubr.f32.gmra.mrb[0].mxu0 %v1280
        %v1426 = vpop.f32.mrb[0].mxu0
        %v1427 = vadd.f32 0.0, %v1426
        %v1428 = vpop.f32.mrb[0].mxu0
        %1429 = vdwg.mxu0
        %v1430 = vadd.f32 %v1198, %v1352
        %v1431 = vadd.f32 %v1199, %v1357
        %v1432 = vadd.f32 %v1200, %v1362
        %v1433 = vadd.f32 %v1201, %v1367
        %v1434 = vadd.f32 %v1202, %v1372
        %v1435 = vadd.f32 %v1203, %v1377
        %v1436 = vadd.f32 %v1204, %v1382
        %v1437 = vadd.f32 %v1205, %v1387
        %v1438 = vadd.f32 %v1206, %v1392
        %v1439 = vadd.f32 %v1207, %v1397
        %v1440 = vadd.f32 %v1208, %v1402
        %v1441 = vadd.f32 %v1209, %v1407
        %v1442 = vadd.f32 %v1210, %v1412
        %v1443 = vadd.f32 %v1211, %v1417
        %v1444 = vadd.f32 %v1212, %v1422
        %v1445 = vadd.f32 %v1213, %v1427
        %s1446 = scalar_lea.vmem %s1, 24
        %v1447 = vld [vmem:[%s1446] sm:$0xf]
        %v1449 = vsel %vm272, %v1447, 0
        %1451 = vmatprep.subr.mxu0 0.0
        %1452 = vmatpush1.msra.mxu0 %v1449
        %1453 = vmatprep.subr.mxu0 0.0
        %1454 = vmatpush1.msra.mxu0 0.0
        %1455 = vmatprep.subr.mxu0 0.0
        %1456 = vmatpush1.msra.mxu0 0.0
        %1457 = vmatprep.subr.mxu0 0.0
        %1458 = vmatpush1.msra.mxu0 0.0
        %1459 = vmatprep.subr.mxu0 0.0
        %1460 = vmatpush1.msra.mxu0 0.0
        %1461 = vmatprep.subr.mxu0 0.0
        %1462 = vmatpush1.msra.mxu0 0.0
        %1463 = vmatprep.subr.mxu0 0.0
        %1464 = vmatpush1.msra.mxu0 0.0
        %1465 = vmatprep.subr.mxu0 0.0
        %1466 = vmatpush1.msra.mxu0 0.0
        %1467 = vmatprep.subr.mxu0 0.0
        %1468 = vmatpush1.msra.mxu0 0.0
        %1469 = vmatprep.subr.mxu0 0.0
        %1470 = vmatpush1.msra.mxu0 0.0
        %1471 = vmatprep.subr.mxu0 0.0
        %1472 = vmatpush1.msra.mxu0 0.0
        %1473 = vmatprep.subr.mxu0 0.0
        %1474 = vmatpush1.msra.mxu0 0.0
        %1475 = vmatprep.subr.mxu0 0.0
        %1476 = vmatpush1.msra.mxu0 0.0
        %1477 = vmatprep.subr.mxu0 0.0
        %1478 = vmatpush1.msra.mxu0 0.0
        %1479 = vmatprep.subr.mxu0 0.0
        %1480 = vmatpush1.msra.mxu0 0.0
        %1481 = vmatprep.subr.mxu0 0.0
        %1482 = vmatpush1.msra.mxu0 0.0
        %1483 = vmatprep.subr.mxu0 0.0
        %1484 = vmatpush1.msra.mxu0 0.0
        %1485 = vmatprep.subr.mxu0 0.0
        %1486 = vmatpush1.msra.mxu0 0.0
        %1487 = vmatprep.subr.mxu0 0.0
        %1488 = vmatpush1.msra.mxu0 0.0
        %1489 = vmatprep.subr.mxu0 0.0
        %1490 = vmatpush1.msra.mxu0 0.0
        %1491 = vmatprep.subr.mxu0 0.0
        %1492 = vmatpush1.msra.mxu0 0.0
        %1493 = vmatprep.subr.mxu0 0.0
        %1494 = vmatpush1.msra.mxu0 0.0
        %1495 = vmatprep.subr.mxu0 0.0
        %1496 = vmatpush1.msra.mxu0 0.0
        %1497 = vmatprep.subr.mxu0 0.0
        %1498 = vmatpush1.msra.mxu0 0.0
        %1499 = vmatprep.subr.mxu0 0.0
        %1500 = vmatpush1.msra.mxu0 0.0
        %1501 = vmatprep.subr.mxu0 0.0
        %1502 = vmatpush1.msra.mxu0 0.0
        %1503 = vmatprep.subr.mxu0 0.0
        %1504 = vmatpush1.msra.mxu0 0.0
        %1505 = vmatprep.subr.mxu0 0.0
        %1506 = vmatpush1.msra.mxu0 0.0
        %1507 = vmatprep.subr.mxu0 0.0
        %1508 = vmatpush1.msra.mxu0 0.0
        %1509 = vmatprep.subr.mxu0 0.0
        %1510 = vmatpush1.msra.mxu0 0.0
        %1511 = vmatprep.subr.mxu0 0.0
        %1512 = vmatpush1.msra.mxu0 0.0
        %1513 = vmatprep.subr.mxu0 0.0
        %1514 = vmatpush1.msra.mxu0 0.0
        %1515 = vmatprep.mubr.f32.mxu0 0.0
        %1516 = vmatmul.mubr.f32.gmra.mrb[0].mxu0 %v1235
        %v1517 = vpop.f32.mrb[0].mxu0
        %v1518 = vadd.f32 0.0, %v1517
        %v1519 = vpop.f32.mrb[0].mxu0
        %1520 = vmatprep.mubr.f32.mxu0 0.0
        %1521 = vmatmul.mubr.f32.gmra.mrb[0].mxu0 %v1238
        %v1522 = vpop.f32.mrb[0].mxu0
        %v1523 = vadd.f32 0.0, %v1522
        %v1524 = vpop.f32.mrb[0].mxu0
        %1525 = vmatprep.mubr.f32.mxu0 0.0
        %1526 = vmatmul.mubr.f32.gmra.mrb[0].mxu0 %v1241
        %v1527 = vpop.f32.mrb[0].mxu0
        %v1528 = vadd.f32 0.0, %v1527
        %v1529 = vpop.f32.mrb[0].mxu0
        %1530 = vmatprep.mubr.f32.mxu0 0.0
        %1531 = vmatmul.mubr.f32.gmra.mrb[0].mxu0 %v1244
        %v1532 = vpop.f32.mrb[0].mxu0
        %v1533 = vadd.f32 0.0, %v1532
        %v1534 = vpop.f32.mrb[0].mxu0
        %1535 = vmatprep.mubr.f32.mxu0 0.0
        %1536 = vmatmul.mubr.f32.gmra.mrb[0].mxu0 %v1247
        %v1537 = vpop.f32.mrb[0].mxu0
        %v1538 = vadd.f32 0.0, %v1537
        %v1539 = vpop.f32.mrb[0].mxu0
        %1540 = vmatprep.mubr.f32.mxu0 0.0
        %1541 = vmatmul.mubr.f32.gmra.mrb[0].mxu0 %v1250
        %v1542 = vpop.f32.mrb[0].mxu0
        %v1543 = vadd.f32 0.0, %v1542
        %v1544 = vpop.f32.mrb[0].mxu0
        %1545 = vmatprep.mubr.f32.mxu0 0.0
        %1546 = vmatmul.mubr.f32.gmra.mrb[0].mxu0 %v1253
        %v1547 = vpop.f32.mrb[0].mxu0
        %v1548 = vadd.f32 0.0, %v1547
        %v1549 = vpop.f32.mrb[0].mxu0
        %1550 = vmatprep.mubr.f32.mxu0 0.0
        %1551 = vmatmul.mubr.f32.gmra.mrb[0].mxu0 %v1256
        %v1552 = vpop.f32.mrb[0].mxu0
        %v1553 = vadd.f32 0.0, %v1552
        %v1554 = vpop.f32.mrb[0].mxu0
        %1555 = vmatprep.mubr.f32.mxu0 0.0
        %1556 = vmatmul.mubr.f32.gmra.mrb[0].mxu0 %v1259
        %v1557 = vpop.f32.mrb[0].mxu0
        %v1558 = vadd.f32 0.0, %v1557
        %v1559 = vpop.f32.mrb[0].mxu0
        %1560 = vmatprep.mubr.f32.mxu0 0.0
        %1561 = vmatmul.mubr.f32.gmra.mrb[0].mxu0 %v1262
        %v1562 = vpop.f32.mrb[0].mxu0
        %v1563 = vadd.f32 0.0, %v1562
        %v1564 = vpop.f32.mrb[0].mxu0
        %1565 = vmatprep.mubr.f32.mxu0 0.0
        %1566 = vmatmul.mubr.f32.gmra.mrb[0].mxu0 %v1265
        %v1567 = vpop.f32.mrb[0].mxu0
        %v1568 = vadd.f32 0.0, %v1567
        %v1569 = vpop.f32.mrb[0].mxu0
        %1570 = vmatprep.mubr.f32.mxu0 0.0
        %1571 = vmatmul.mubr.f32.gmra.mrb[0].mxu0 %v1268
        %v1572 = vpop.f32.mrb[0].mxu0
        %v1573 = vadd.f32 0.0, %v1572
        %v1574 = vpop.f32.mrb[0].mxu0
        %1575 = vmatprep.mubr.f32.mxu0 0.0
        %1576 = vmatmul.mubr.f32.gmra.mrb[0].mxu0 %v1271
        %v1577 = vpop.f32.mrb[0].mxu0
        %v1578 = vadd.f32 0.0, %v1577
        %v1579 = vpop.f32.mrb[0].mxu0
        %1580 = vmatprep.mubr.f32.mxu0 0.0
        %1581 = vmatmul.mubr.f32.gmra.mrb[0].mxu0 %v1274
        %v1582 = vpop.f32.mrb[0].mxu0
        %v1583 = vadd.f32 0.0, %v1582
        %v1584 = vpop.f32.mrb[0].mxu0
        %1585 = vmatprep.mubr.f32.mxu0 0.0
        %1586 = vmatmul.mubr.f32.gmra.mrb[0].mxu0 %v1277
        %v1587 = vpop.f32.mrb[0].mxu0
        %v1588 = vadd.f32 0.0, %v1587
        %v1589 = vpop.f32.mrb[0].mxu0
        %1590 = vmatprep.mubr.f32.mxu0 0.0
        %1591 = vmatmul.mubr.f32.gmra.mrb[0].mxu0 %v1280
        %v1592 = vpop.f32.mrb[0].mxu0
        %v1593 = vadd.f32 0.0, %v1592
        %v1594 = vpop.f32.mrb[0].mxu0
        %1595 = vdwg.mxu0
        %v1596 = vadd.f32 %v903, %v1518
        %v1597 = vadd.f32 %v908, %v1523
        %v1598 = vadd.f32 %v913, %v1528
        %v1599 = vadd.f32 %v918, %v1533
        %v1600 = vadd.f32 %v923, %v1538
        %v1601 = vadd.f32 %v928, %v1543
        %v1602 = vadd.f32 %v933, %v1548
        %v1603 = vadd.f32 %v938, %v1553
        %v1604 = vadd.f32 %v943, %v1558
        %v1605 = vadd.f32 %v948, %v1563
        %v1606 = vadd.f32 %v953, %v1568
        %v1607 = vadd.f32 %v958, %v1573
        %v1608 = vadd.f32 %v963, %v1578
        %v1609 = vadd.f32 %v968, %v1583
        %v1610 = vadd.f32 %v973, %v1588
        %v1611 = vadd.f32 %v978, %v1593
        %s1612 = scalar_lea.vmem %s1, 36
        %v1613 = vld [vmem:[%s1612] sm:$0xf]
        %v1615 = vsel %vm272, %v1613, 0
        %1617 = vmatprep.subr.mxu0 0.0
        %1618 = vmatpush1.msra.mxu0 %v1615
        %1619 = vmatprep.subr.mxu0 0.0
        %1620 = vmatpush1.msra.mxu0 0.0
        %1621 = vmatprep.subr.mxu0 0.0
        %1622 = vmatpush1.msra.mxu0 0.0
        %1623 = vmatprep.subr.mxu0 0.0
        %1624 = vmatpush1.msra.mxu0 0.0
        %1625 = vmatprep.subr.mxu0 0.0
        %1626 = vmatpush1.msra.mxu0 0.0
        %1627 = vmatprep.subr.mxu0 0.0
        %1628 = vmatpush1.msra.mxu0 0.0
        %1629 = vmatprep.subr.mxu0 0.0
        %1630 = vmatpush1.msra.mxu0 0.0
        %1631 = vmatprep.subr.mxu0 0.0
        %1632 = vmatpush1.msra.mxu0 0.0
        %1633 = vmatprep.subr.mxu0 0.0
        %1634 = vmatpush1.msra.mxu0 0.0
        %1635 = vmatprep.subr.mxu0 0.0
        %1636 = vmatpush1.msra.mxu0 0.0
        %1637 = vmatprep.subr.mxu0 0.0
        %1638 = vmatpush1.msra.mxu0 0.0
        %1639 = vmatprep.subr.mxu0 0.0
        %1640 = vmatpush1.msra.mxu0 0.0
        %1641 = vmatprep.subr.mxu0 0.0
        %1642 = vmatpush1.msra.mxu0 0.0
        %1643 = vmatprep.subr.mxu0 0.0
        %1644 = vmatpush1.msra.mxu0 0.0
        %1645 = vmatprep.subr.mxu0 0.0
        %1646 = vmatpush1.msra.mxu0 0.0
        %1647 = vmatprep.subr.mxu0 0.0
        %1648 = vmatpush1.msra.mxu0 0.0
        %1649 = vmatprep.subr.mxu0 0.0
        %1650 = vmatpush1.msra.mxu0 0.0
        %1651 = vmatprep.subr.mxu0 0.0
        %1652 = vmatpush1.msra.mxu0 0.0
        %1653 = vmatprep.subr.mxu0 0.0
        %1654 = vmatpush1.msra.mxu0 0.0
        %1655 = vmatprep.subr.mxu0 0.0
        %1656 = vmatpush1.msra.mxu0 0.0
        %1657 = vmatprep.subr.mxu0 0.0
        %1658 = vmatpush1.msra.mxu0 0.0
        %1659 = vmatprep.subr.mxu0 0.0
        %1660 = vmatpush1.msra.mxu0 0.0
        %1661 = vmatprep.subr.mxu0 0.0
        %1662 = vmatpush1.msra.mxu0 0.0
        %1663 = vmatprep.subr.mxu0 0.0
        %1664 = vmatpush1.msra.mxu0 0.0
        %1665 = vmatprep.subr.mxu0 0.0
        %1666 = vmatpush1.msra.mxu0 0.0
        %1667 = vmatprep.subr.mxu0 0.0
        %1668 = vmatpush1.msra.mxu0 0.0
        %1669 = vmatprep.subr.mxu0 0.0
        %1670 = vmatpush1.msra.mxu0 0.0
        %1671 = vmatprep.subr.mxu0 0.0
        %1672 = vmatpush1.msra.mxu0 0.0
        %1673 = vmatprep.subr.mxu0 0.0
        %1674 = vmatpush1.msra.mxu0 0.0
        %1675 = vmatprep.subr.mxu0 0.0
        %1676 = vmatpush1.msra.mxu0 0.0
        %1677 = vmatprep.subr.mxu0 0.0
        %1678 = vmatpush1.msra.mxu0 0.0
        %1679 = vmatprep.subr.mxu0 0.0
        %1680 = vmatpush1.msra.mxu0 0.0
        %1681 = vmatprep.mubr.f32.mxu0 0.0
        %1682 = vmatmul.mubr.f32.gmra.mrb[0].mxu0 %v1235
        %v1683 = vpop.f32.mrb[0].mxu0
        %v1684 = vadd.f32 0.0, %v1683
        %v1685 = vpop.f32.mrb[0].mxu0
        %1686 = vmatprep.mubr.f32.mxu0 0.0
        %1687 = vmatmul.mubr.f32.gmra.mrb[0].mxu0 %v1238
        %v1688 = vpop.f32.mrb[0].mxu0
        %v1689 = vadd.f32 0.0, %v1688
        %v1690 = vpop.f32.mrb[0].mxu0
        %1691 = vmatprep.mubr.f32.mxu0 0.0
        %1692 = vmatmul.mubr.f32.gmra.mrb[0].mxu0 %v1241
        %v1693 = vpop.f32.mrb[0].mxu0
        %v1694 = vadd.f32 0.0, %v1693
        %v1695 = vpop.f32.mrb[0].mxu0
        %1696 = vmatprep.mubr.f32.mxu0 0.0
        %1697 = vmatmul.mubr.f32.gmra.mrb[0].mxu0 %v1244
        %v1698 = vpop.f32.mrb[0].mxu0
        %v1699 = vadd.f32 0.0, %v1698
        %v1700 = vpop.f32.mrb[0].mxu0
        %1701 = vmatprep.mubr.f32.mxu0 0.0
        %1702 = vmatmul.mubr.f32.gmra.mrb[0].mxu0 %v1247
        %v1703 = vpop.f32.mrb[0].mxu0
        %v1704 = vadd.f32 0.0, %v1703
        %v1705 = vpop.f32.mrb[0].mxu0
        %1706 = vmatprep.mubr.f32.mxu0 0.0
        %1707 = vmatmul.mubr.f32.gmra.mrb[0].mxu0 %v1250
        %v1708 = vpop.f32.mrb[0].mxu0
        %v1709 = vadd.f32 0.0, %v1708
        %v1710 = vpop.f32.mrb[0].mxu0
        %1711 = vmatprep.mubr.f32.mxu0 0.0
        %1712 = vmatmul.mubr.f32.gmra.mrb[0].mxu0 %v1253
        %v1713 = vpop.f32.mrb[0].mxu0
        %v1714 = vadd.f32 0.0, %v1713
        %v1715 = vpop.f32.mrb[0].mxu0
        %1716 = vmatprep.mubr.f32.mxu0 0.0
        %1717 = vmatmul.mubr.f32.gmra.mrb[0].mxu0 %v1256
        %v1718 = vpop.f32.mrb[0].mxu0
        %v1719 = vadd.f32 0.0, %v1718
        %v1720 = vpop.f32.mrb[0].mxu0
        %1721 = vmatprep.mubr.f32.mxu0 0.0
        %1722 = vmatmul.mubr.f32.gmra.mrb[0].mxu0 %v1259
        %v1723 = vpop.f32.mrb[0].mxu0
        %v1724 = vadd.f32 0.0, %v1723
        %v1725 = vpop.f32.mrb[0].mxu0
        %1726 = vmatprep.mubr.f32.mxu0 0.0
        %1727 = vmatmul.mubr.f32.gmra.mrb[0].mxu0 %v1262
        %v1728 = vpop.f32.mrb[0].mxu0
        %v1729 = vadd.f32 0.0, %v1728
        %v1730 = vpop.f32.mrb[0].mxu0
        %1731 = vmatprep.mubr.f32.mxu0 0.0
        %1732 = vmatmul.mubr.f32.gmra.mrb[0].mxu0 %v1265
        %v1733 = vpop.f32.mrb[0].mxu0
        %v1734 = vadd.f32 0.0, %v1733
        %v1735 = vpop.f32.mrb[0].mxu0
        %1736 = vmatprep.mubr.f32.mxu0 0.0
        %1737 = vmatmul.mubr.f32.gmra.mrb[0].mxu0 %v1268
        %v1738 = vpop.f32.mrb[0].mxu0
        %v1739 = vadd.f32 0.0, %v1738
        %v1740 = vpop.f32.mrb[0].mxu0
        %1741 = vmatprep.mubr.f32.mxu0 0.0
        %1742 = vmatmul.mubr.f32.gmra.mrb[0].mxu0 %v1271
        %v1743 = vpop.f32.mrb[0].mxu0
        %v1744 = vadd.f32 0.0, %v1743
        %v1745 = vpop.f32.mrb[0].mxu0
        %1746 = vmatprep.mubr.f32.mxu0 0.0
        %1747 = vmatmul.mubr.f32.gmra.mrb[0].mxu0 %v1274
        %v1748 = vpop.f32.mrb[0].mxu0
        %v1749 = vadd.f32 0.0, %v1748
        %v1750 = vpop.f32.mrb[0].mxu0
        %1751 = vmatprep.mubr.f32.mxu0 0.0
        %1752 = vmatmul.mubr.f32.gmra.mrb[0].mxu0 %v1277
        %v1753 = vpop.f32.mrb[0].mxu0
        %v1754 = vadd.f32 0.0, %v1753
        %v1755 = vpop.f32.mrb[0].mxu0
        %1756 = vmatprep.mubr.f32.mxu0 0.0
        %1757 = vmatmul.mubr.f32.gmra.mrb[0].mxu0 %v1280
        %v1758 = vpop.f32.mrb[0].mxu0
        %v1759 = vadd.f32 0.0, %v1758
        %v1760 = vpop.f32.mrb[0].mxu0
        %1761 = vdwg.mxu0
        %v1763 = vsel %vm272, %v1215, 0
        %1765 = vmatprep.subr.mxu0 0.0
        %1766 = vmatpush1.msra.mxu0 %v1763
        %1767 = vmatprep.subr.mxu0 0.0
        %1768 = vmatpush1.msra.mxu0 0.0
        %1769 = vmatprep.subr.mxu0 0.0
        %1770 = vmatpush1.msra.mxu0 0.0
        %1771 = vmatprep.subr.mxu0 0.0
        %1772 = vmatpush1.msra.mxu0 0.0
        %1773 = vmatprep.subr.mxu0 0.0
        %1774 = vmatpush1.msra.mxu0 0.0
        %1775 = vmatprep.subr.mxu0 0.0
        %1776 = vmatpush1.msra.mxu0 0.0
        %1777 = vmatprep.subr.mxu0 0.0
        %1778 = vmatpush1.msra.mxu0 0.0
        %1779 = vmatprep.subr.mxu0 0.0
        %1780 = vmatpush1.msra.mxu0 0.0
        %1781 = vmatprep.subr.mxu0 0.0
        %1782 = vmatpush1.msra.mxu0 0.0
        %1783 = vmatprep.subr.mxu0 0.0
        %1784 = vmatpush1.msra.mxu0 0.0
        %1785 = vmatprep.subr.mxu0 0.0
        %1786 = vmatpush1.msra.mxu0 0.0
        %1787 = vmatprep.subr.mxu0 0.0
        %1788 = vmatpush1.msra.mxu0 0.0
        %1789 = vmatprep.subr.mxu0 0.0
        %1790 = vmatpush1.msra.mxu0 0.0
        %1791 = vmatprep.subr.mxu0 0.0
        %1792 = vmatpush1.msra.mxu0 0.0
        %1793 = vmatprep.subr.mxu0 0.0
        %1794 = vmatpush1.msra.mxu0 0.0
        %1795 = vmatprep.subr.mxu0 0.0
        %1796 = vmatpush1.msra.mxu0 0.0
        %1797 = vmatprep.subr.mxu0 0.0
        %1798 = vmatpush1.msra.mxu0 0.0
        %1799 = vmatprep.subr.mxu0 0.0
        %1800 = vmatpush1.msra.mxu0 0.0
        %1801 = vmatprep.subr.mxu0 0.0
        %1802 = vmatpush1.msra.mxu0 0.0
        %1803 = vmatprep.subr.mxu0 0.0
        %1804 = vmatpush1.msra.mxu0 0.0
        %1805 = vmatprep.subr.mxu0 0.0
        %1806 = vmatpush1.msra.mxu0 0.0
        %1807 = vmatprep.subr.mxu0 0.0
        %1808 = vmatpush1.msra.mxu0 0.0
        %1809 = vmatprep.subr.mxu0 0.0
        %1810 = vmatpush1.msra.mxu0 0.0
        %1811 = vmatprep.subr.mxu0 0.0
        %1812 = vmatpush1.msra.mxu0 0.0
        %1813 = vmatprep.subr.mxu0 0.0
        %1814 = vmatpush1.msra.mxu0 0.0
        %1815 = vmatprep.subr.mxu0 0.0
        %1816 = vmatpush1.msra.mxu0 0.0
        %1817 = vmatprep.subr.mxu0 0.0
        %1818 = vmatpush1.msra.mxu0 0.0
        %1819 = vmatprep.subr.mxu0 0.0
        %1820 = vmatpush1.msra.mxu0 0.0
        %1821 = vmatprep.subr.mxu0 0.0
        %1822 = vmatpush1.msra.mxu0 0.0
        %1823 = vmatprep.subr.mxu0 0.0
        %1824 = vmatpush1.msra.mxu0 0.0
        %1825 = vmatprep.subr.mxu0 0.0
        %1826 = vmatpush1.msra.mxu0 0.0
        %1827 = vmatprep.subr.mxu0 0.0
        %1828 = vmatpush1.msra.mxu0 0.0
        %1829 = vmatprep.mubr.f32.mxu0 0.0
        %1830 = vmatmul.mubr.f32.gmra.mrb[0].mxu0 %v1003
        %v1831 = vpop.f32.mrb[0].mxu0
        %v1832 = vadd.f32 %v1684, %v1831
        %v1833 = vpop.f32.mrb[0].mxu0
        %1834 = vmatprep.mubr.f32.mxu0 0.0
        %1835 = vmatmul.mubr.f32.gmra.mrb[0].mxu0 %v1006
        %v1836 = vpop.f32.mrb[0].mxu0
        %v1837 = vadd.f32 %v1689, %v1836
        %v1838 = vpop.f32.mrb[0].mxu0
        %1839 = vmatprep.mubr.f32.mxu0 0.0
        %1840 = vmatmul.mubr.f32.gmra.mrb[0].mxu0 %v1009
        %v1841 = vpop.f32.mrb[0].mxu0
        %v1842 = vadd.f32 %v1694, %v1841
        %v1843 = vpop.f32.mrb[0].mxu0
        %1844 = vmatprep.mubr.f32.mxu0 0.0
        %1845 = vmatmul.mubr.f32.gmra.mrb[0].mxu0 %v1012
        %v1846 = vpop.f32.mrb[0].mxu0
        %v1847 = vadd.f32 %v1699, %v1846
        %v1848 = vpop.f32.mrb[0].mxu0
        %1849 = vmatprep.mubr.f32.mxu0 0.0
        %1850 = vmatmul.mubr.f32.gmra.mrb[0].mxu0 %v1015
        %v1851 = vpop.f32.mrb[0].mxu0
        %v1852 = vadd.f32 %v1704, %v1851
        %v1853 = vpop.f32.mrb[0].mxu0
        %1854 = vmatprep.mubr.f32.mxu0 0.0
        %1855 = vmatmul.mubr.f32.gmra.mrb[0].mxu0 %v1018
        %v1856 = vpop.f32.mrb[0].mxu0
        %v1857 = vadd.f32 %v1709, %v1856
        %v1858 = vpop.f32.mrb[0].mxu0
        %1859 = vmatprep.mubr.f32.mxu0 0.0
        %1860 = vmatmul.mubr.f32.gmra.mrb[0].mxu0 %v1021
        %v1861 = vpop.f32.mrb[0].mxu0
        %v1862 = vadd.f32 %v1714, %v1861
        %v1863 = vpop.f32.mrb[0].mxu0
        %1864 = vmatprep.mubr.f32.mxu0 0.0
        %1865 = vmatmul.mubr.f32.gmra.mrb[0].mxu0 %v1024
        %v1866 = vpop.f32.mrb[0].mxu0
        %v1867 = vadd.f32 %v1719, %v1866
        %v1868 = vpop.f32.mrb[0].mxu0
        %1869 = vmatprep.mubr.f32.mxu0 0.0
        %1870 = vmatmul.mubr.f32.gmra.mrb[0].mxu0 %v1027
        %v1871 = vpop.f32.mrb[0].mxu0
        %v1872 = vadd.f32 %v1724, %v1871
        %v1873 = vpop.f32.mrb[0].mxu0
        %1874 = vmatprep.mubr.f32.mxu0 0.0
        %1875 = vmatmul.mubr.f32.gmra.mrb[0].mxu0 %v1030
        %v1876 = vpop.f32.mrb[0].mxu0
        %v1877 = vadd.f32 %v1729, %v1876
        %v1878 = vpop.f32.mrb[0].mxu0
        %1879 = vmatprep.mubr.f32.mxu0 0.0
        %1880 = vmatmul.mubr.f32.gmra.mrb[0].mxu0 %v1033
        %v1881 = vpop.f32.mrb[0].mxu0
        %v1882 = vadd.f32 %v1734, %v1881
        %v1883 = vpop.f32.mrb[0].mxu0
        %1884 = vmatprep.mubr.f32.mxu0 0.0
        %1885 = vmatmul.mubr.f32.gmra.mrb[0].mxu0 %v1036
        %v1886 = vpop.f32.mrb[0].mxu0
        %v1887 = vadd.f32 %v1739, %v1886
        %v1888 = vpop.f32.mrb[0].mxu0
        %1889 = vmatprep.mubr.f32.mxu0 0.0
        %1890 = vmatmul.mubr.f32.gmra.mrb[0].mxu0 %v1039
        %v1891 = vpop.f32.mrb[0].mxu0
        %v1892 = vadd.f32 %v1744, %v1891
        %v1893 = vpop.f32.mrb[0].mxu0
        %1894 = vmatprep.mubr.f32.mxu0 0.0
        %1895 = vmatmul.mubr.f32.gmra.mrb[0].mxu0 %v1042
        %v1896 = vpop.f32.mrb[0].mxu0
        %v1897 = vadd.f32 %v1749, %v1896
        %v1898 = vpop.f32.mrb[0].mxu0
        %1899 = vmatprep.mubr.f32.mxu0 0.0
        %1900 = vmatmul.mubr.f32.gmra.mrb[0].mxu0 %v1045
        %v1901 = vpop.f32.mrb[0].mxu0
        %v1902 = vadd.f32 %v1754, %v1901
        %v1903 = vpop.f32.mrb[0].mxu0
        %1904 = vmatprep.mubr.f32.mxu0 0.0
        %1905 = vmatmul.mubr.f32.gmra.mrb[0].mxu0 %v1048
        %v1906 = vpop.f32.mrb[0].mxu0
        %v1907 = vadd.f32 %v1759, %v1906
        %v1908 = vpop.f32.mrb[0].mxu0
        %1909 = vdwg.mxu0
        %s1910 = scalar_lea.vmem %s1, 48
        %v1911 = vld [vmem:[%s1910] sm:$0xf]
        %v1912 = vld [vmem:[%s983 + $0x2] sm:$0xff]
        %v1913 = vld [vmem:[%s983 + $0xa] sm:$0xff]
        %v1914 = vld [vmem:[%s983 + $0x1a] sm:$0xff]
        %v1915 = vld [vmem:[%s983 + $0x22] sm:$0xff]
        %v1916 = vld [vmem:[%s983 + $0x32] sm:$0xff]
        %v1917 = vld [vmem:[%s983 + $0x3a] sm:$0xff]
        %v1918 = vld [vmem:[%s983 + $0x4a] sm:$0xff]
        %v1919 = vld [vmem:[%s983 + $0x52] sm:$0xff]
        %v1920 = vld [vmem:[%s983 + $0x62] sm:$0xff]
        %v1921 = vld [vmem:[%s983 + $0x6a] sm:$0xff]
        %v1922 = vld [vmem:[%s983 + $0x7a] sm:$0xff]
        %v1923 = vld [vmem:[%s983 + $0x82] sm:$0xff]
        %v1924 = vld [vmem:[%s983 + $0x92] sm:$0xff]
        %v1925 = vld [vmem:[%s983 + $0x9a] sm:$0xff]
        %v1926 = vld [vmem:[%s983 + $0xaa] sm:$0xff]
        %v1927 = vld [vmem:[%s983 + $0xb2] sm:$0xff]
        %s1928 = scalar_lea.vmem %s1, 28
        %v1929 = vld [vmem:[%s1928] sm:$0xf]
        %v1931 = vsel %vm223, %v1912, 0
        %v1934 = vsel %vm223, %v1913, 0
        %v1937 = vsel %vm223, %v1914, 0
        %v1940 = vsel %vm223, %v1915, 0
        %v1943 = vsel %vm223, %v1916, 0
        %v1946 = vsel %vm223, %v1917, 0
        %v1949 = vsel %vm223, %v1918, 0
        %v1952 = vsel %vm223, %v1919, 0
        %v1955 = vsel %vm223, %v1920, 0
        %v1958 = vsel %vm223, %v1921, 0
        %v1961 = vsel %vm223, %v1922, 0
        %v1964 = vsel %vm223, %v1923, 0
        %v1967 = vsel %vm223, %v1924, 0
        %v1970 = vsel %vm223, %v1925, 0
        %v1973 = vsel %vm223, %v1926, 0
        %v1976 = vsel %vm223, %v1927, 0
        %v1979 = vsel %vm272, %v1929, 0
        %1981 = vmatprep.subr.mxu0 0.0
        %1982 = vmatpush1.msra.mxu0 %v1979
        %1983 = vmatprep.subr.mxu0 0.0
        %1984 = vmatpush1.msra.mxu0 0.0
        %1985 = vmatprep.subr.mxu0 0.0
        %1986 = vmatpush1.msra.mxu0 0.0
        %1987 = vmatprep.subr.mxu0 0.0
        %1988 = vmatpush1.msra.mxu0 0.0
        %1989 = vmatprep.subr.mxu0 0.0
        %1990 = vmatpush1.msra.mxu0 0.0
        %1991 = vmatprep.subr.mxu0 0.0
        %1992 = vmatpush1.msra.mxu0 0.0
        %1993 = vmatprep.subr.mxu0 0.0
        %1994 = vmatpush1.msra.mxu0 0.0
        %1995 = vmatprep.subr.mxu0 0.0
        %1996 = vmatpush1.msra.mxu0 0.0
        %1997 = vmatprep.subr.mxu0 0.0
        %1998 = vmatpush1.msra.mxu0 0.0
        %1999 = vmatprep.subr.mxu0 0.0
        %2000 = vmatpush1.msra.mxu0 0.0
        %2001 = vmatprep.subr.mxu0 0.0
        %2002 = vmatpush1.msra.mxu0 0.0
        %2003 = vmatprep.subr.mxu0 0.0
        %2004 = vmatpush1.msra.mxu0 0.0
        %2005 = vmatprep.subr.mxu0 0.0
        %2006 = vmatpush1.msra.mxu0 0.0
        %2007 = vmatprep.subr.mxu0 0.0
        %2008 = vmatpush1.msra.mxu0 0.0
        %2009 = vmatprep.subr.mxu0 0.0
        %2010 = vmatpush1.msra.mxu0 0.0
        %2011 = vmatprep.subr.mxu0 0.0
        %2012 = vmatpush1.msra.mxu0 0.0
        %2013 = vmatprep.subr.mxu0 0.0
        %2014 = vmatpush1.msra.mxu0 0.0
        %2015 = vmatprep.subr.mxu0 0.0
        %2016 = vmatpush1.msra.mxu0 0.0
        %2017 = vmatprep.subr.mxu0 0.0
        %2018 = vmatpush1.msra.mxu0 0.0
        %2019 = vmatprep.subr.mxu0 0.0
        %2020 = vmatpush1.msra.mxu0 0.0
        %2021 = vmatprep.subr.mxu0 0.0
        %2022 = vmatpush1.msra.mxu0 0.0
        %2023 = vmatprep.subr.mxu0 0.0
        %2024 = vmatpush1.msra.mxu0 0.0
        %2025 = vmatprep.subr.mxu0 0.0
        %2026 = vmatpush1.msra.mxu0 0.0
        %2027 = vmatprep.subr.mxu0 0.0
        %2028 = vmatpush1.msra.mxu0 0.0
        %2029 = vmatprep.subr.mxu0 0.0
        %2030 = vmatpush1.msra.mxu0 0.0
        %2031 = vmatprep.subr.mxu0 0.0
        %2032 = vmatpush1.msra.mxu0 0.0
        %2033 = vmatprep.subr.mxu0 0.0
        %2034 = vmatpush1.msra.mxu0 0.0
        %2035 = vmatprep.subr.mxu0 0.0
        %2036 = vmatpush1.msra.mxu0 0.0
        %2037 = vmatprep.subr.mxu0 0.0
        %2038 = vmatpush1.msra.mxu0 0.0
        %2039 = vmatprep.subr.mxu0 0.0
        %2040 = vmatpush1.msra.mxu0 0.0
        %2041 = vmatprep.subr.mxu0 0.0
        %2042 = vmatpush1.msra.mxu0 0.0
        %2043 = vmatprep.subr.mxu0 0.0
        %2044 = vmatpush1.msra.mxu0 0.0
        %2045 = vmatprep.mubr.f32.mxu0 0.0
        %2046 = vmatmul.mubr.f32.gmra.mrb[0].mxu0 %v1931
        %v2047 = vpop.f32.mrb[0].mxu0
        %v2048 = vadd.f32 0.0, %v2047
        %v2049 = vpop.f32.mrb[0].mxu0
        %2050 = vmatprep.mubr.f32.mxu0 0.0
        %2051 = vmatmul.mubr.f32.gmra.mrb[0].mxu0 %v1934
        %v2052 = vpop.f32.mrb[0].mxu0
        %v2053 = vadd.f32 0.0, %v2052
        %v2054 = vpop.f32.mrb[0].mxu0
        %2055 = vmatprep.mubr.f32.mxu0 0.0
        %2056 = vmatmul.mubr.f32.gmra.mrb[0].mxu0 %v1937
        %v2057 = vpop.f32.mrb[0].mxu0
        %v2058 = vadd.f32 0.0, %v2057
        %v2059 = vpop.f32.mrb[0].mxu0
        %2060 = vmatprep.mubr.f32.mxu0 0.0
        %2061 = vmatmul.mubr.f32.gmra.mrb[0].mxu0 %v1940
        %v2062 = vpop.f32.mrb[0].mxu0
        %v2063 = vadd.f32 0.0, %v2062
        %v2064 = vpop.f32.mrb[0].mxu0
        %2065 = vmatprep.mubr.f32.mxu0 0.0
        %2066 = vmatmul.mubr.f32.gmra.mrb[0].mxu0 %v1943
        %v2067 = vpop.f32.mrb[0].mxu0
        %v2068 = vadd.f32 0.0, %v2067
        %v2069 = vpop.f32.mrb[0].mxu0
        %2070 = vmatprep.mubr.f32.mxu0 0.0
        %2071 = vmatmul.mubr.f32.gmra.mrb[0].mxu0 %v1946
        %v2072 = vpop.f32.mrb[0].mxu0
        %v2073 = vadd.f32 0.0, %v2072
        %v2074 = vpop.f32.mrb[0].mxu0
        %2075 = vmatprep.mubr.f32.mxu0 0.0
        %2076 = vmatmul.mubr.f32.gmra.mrb[0].mxu0 %v1949
        %v2077 = vpop.f32.mrb[0].mxu0
        %v2078 = vadd.f32 0.0, %v2077
        %v2079 = vpop.f32.mrb[0].mxu0
        %2080 = vmatprep.mubr.f32.mxu0 0.0
        %2081 = vmatmul.mubr.f32.gmra.mrb[0].mxu0 %v1952
        %v2082 = vpop.f32.mrb[0].mxu0
        %v2083 = vadd.f32 0.0, %v2082
        %v2084 = vpop.f32.mrb[0].mxu0
        %2085 = vmatprep.mubr.f32.mxu0 0.0
        %2086 = vmatmul.mubr.f32.gmra.mrb[0].mxu0 %v1955
        %v2087 = vpop.f32.mrb[0].mxu0
        %v2088 = vadd.f32 0.0, %v2087
        %v2089 = vpop.f32.mrb[0].mxu0
        %2090 = vmatprep.mubr.f32.mxu0 0.0
        %2091 = vmatmul.mubr.f32.gmra.mrb[0].mxu0 %v1958
        %v2092 = vpop.f32.mrb[0].mxu0
        %v2093 = vadd.f32 0.0, %v2092
        %v2094 = vpop.f32.mrb[0].mxu0
        %2095 = vmatprep.mubr.f32.mxu0 0.0
        %2096 = vmatmul.mubr.f32.gmra.mrb[0].mxu0 %v1961
        %v2097 = vpop.f32.mrb[0].mxu0
        %v2098 = vadd.f32 0.0, %v2097
        %v2099 = vpop.f32.mrb[0].mxu0
        %2100 = vmatprep.mubr.f32.mxu0 0.0
        %2101 = vmatmul.mubr.f32.gmra.mrb[0].mxu0 %v1964
        %v2102 = vpop.f32.mrb[0].mxu0
        %v2103 = vadd.f32 0.0, %v2102
        %v2104 = vpop.f32.mrb[0].mxu0
        %2105 = vmatprep.mubr.f32.mxu0 0.0
        %2106 = vmatmul.mubr.f32.gmra.mrb[0].mxu0 %v1967
        %v2107 = vpop.f32.mrb[0].mxu0
        %v2108 = vadd.f32 0.0, %v2107
        %v2109 = vpop.f32.mrb[0].mxu0
        %2110 = vmatprep.mubr.f32.mxu0 0.0
        %2111 = vmatmul.mubr.f32.gmra.mrb[0].mxu0 %v1970
        %v2112 = vpop.f32.mrb[0].mxu0
        %v2113 = vadd.f32 0.0, %v2112
        %v2114 = vpop.f32.mrb[0].mxu0
        %2115 = vmatprep.mubr.f32.mxu0 0.0
        %2116 = vmatmul.mubr.f32.gmra.mrb[0].mxu0 %v1973
        %v2117 = vpop.f32.mrb[0].mxu0
        %v2118 = vadd.f32 0.0, %v2117
        %v2119 = vpop.f32.mrb[0].mxu0
        %2120 = vmatprep.mubr.f32.mxu0 0.0
        %2121 = vmatmul.mubr.f32.gmra.mrb[0].mxu0 %v1976
        %v2122 = vpop.f32.mrb[0].mxu0
        %v2123 = vadd.f32 0.0, %v2122
        %v2124 = vpop.f32.mrb[0].mxu0
        %2125 = vdwg.mxu0
        %v2126 = vadd.f32 %v1596, %v2048
        %v2127 = vadd.f32 %v1597, %v2053
        %v2128 = vadd.f32 %v1598, %v2058
        %v2129 = vadd.f32 %v1599, %v2063
        %v2130 = vadd.f32 %v1600, %v2068
        %v2131 = vadd.f32 %v1601, %v2073
        %v2132 = vadd.f32 %v1602, %v2078
        %v2133 = vadd.f32 %v1603, %v2083
        %v2134 = vadd.f32 %v1604, %v2088
        %v2135 = vadd.f32 %v1605, %v2093
        %v2136 = vadd.f32 %v1606, %v2098
        %v2137 = vadd.f32 %v1607, %v2103
        %v2138 = vadd.f32 %v1608, %v2108
        %v2139 = vadd.f32 %v1609, %v2113
        %v2140 = vadd.f32 %v1610, %v2118
        %v2141 = vadd.f32 %v1611, %v2123
        %s2142 = scalar_lea.vmem %s1, 52
        %v2143 = vld [vmem:[%s2142] sm:$0xf]
        %v2145 = vsel %vm272, %v2143, 0
        %2147 = vmatprep.subr.mxu0 0.0
        %2148 = vmatpush1.msra.mxu0 %v2145
        %2149 = vmatprep.subr.mxu0 0.0
        %2150 = vmatpush1.msra.mxu0 0.0
        %2151 = vmatprep.subr.mxu0 0.0
        %2152 = vmatpush1.msra.mxu0 0.0
        %2153 = vmatprep.subr.mxu0 0.0
        %2154 = vmatpush1.msra.mxu0 0.0
        %2155 = vmatprep.subr.mxu0 0.0
        %2156 = vmatpush1.msra.mxu0 0.0
        %2157 = vmatprep.subr.mxu0 0.0
        %2158 = vmatpush1.msra.mxu0 0.0
        %2159 = vmatprep.subr.mxu0 0.0
        %2160 = vmatpush1.msra.mxu0 0.0
        %2161 = vmatprep.subr.mxu0 0.0
        %2162 = vmatpush1.msra.mxu0 0.0
        %2163 = vmatprep.subr.mxu0 0.0
        %2164 = vmatpush1.msra.mxu0 0.0
        %2165 = vmatprep.subr.mxu0 0.0
        %2166 = vmatpush1.msra.mxu0 0.0
        %2167 = vmatprep.subr.mxu0 0.0
        %2168 = vmatpush1.msra.mxu0 0.0
        %2169 = vmatprep.subr.mxu0 0.0
        %2170 = vmatpush1.msra.mxu0 0.0
        %2171 = vmatprep.subr.mxu0 0.0
        %2172 = vmatpush1.msra.mxu0 0.0
        %2173 = vmatprep.subr.mxu0 0.0
        %2174 = vmatpush1.msra.mxu0 0.0
        %2175 = vmatprep.subr.mxu0 0.0
        %2176 = vmatpush1.msra.mxu0 0.0
        %2177 = vmatprep.subr.mxu0 0.0
        %2178 = vmatpush1.msra.mxu0 0.0
        %2179 = vmatprep.subr.mxu0 0.0
        %2180 = vmatpush1.msra.mxu0 0.0
        %2181 = vmatprep.subr.mxu0 0.0
        %2182 = vmatpush1.msra.mxu0 0.0
        %2183 = vmatprep.subr.mxu0 0.0
        %2184 = vmatpush1.msra.mxu0 0.0
        %2185 = vmatprep.subr.mxu0 0.0
        %2186 = vmatpush1.msra.mxu0 0.0
        %2187 = vmatprep.subr.mxu0 0.0
        %2188 = vmatpush1.msra.mxu0 0.0
        %2189 = vmatprep.subr.mxu0 0.0
        %2190 = vmatpush1.msra.mxu0 0.0
        %2191 = vmatprep.subr.mxu0 0.0
        %2192 = vmatpush1.msra.mxu0 0.0
        %2193 = vmatprep.subr.mxu0 0.0
        %2194 = vmatpush1.msra.mxu0 0.0
        %2195 = vmatprep.subr.mxu0 0.0
        %2196 = vmatpush1.msra.mxu0 0.0
        %2197 = vmatprep.subr.mxu0 0.0
        %2198 = vmatpush1.msra.mxu0 0.0
        %2199 = vmatprep.subr.mxu0 0.0
        %2200 = vmatpush1.msra.mxu0 0.0
        %2201 = vmatprep.subr.mxu0 0.0
        %2202 = vmatpush1.msra.mxu0 0.0
        %2203 = vmatprep.subr.mxu0 0.0
        %2204 = vmatpush1.msra.mxu0 0.0
        %2205 = vmatprep.subr.mxu0 0.0
        %2206 = vmatpush1.msra.mxu0 0.0
        %2207 = vmatprep.subr.mxu0 0.0
        %2208 = vmatpush1.msra.mxu0 0.0
        %2209 = vmatprep.subr.mxu0 0.0
        %2210 = vmatpush1.msra.mxu0 0.0
        %2211 = vmatprep.mubr.f32.mxu0 0.0
        %2212 = vmatmul.mubr.f32.gmra.mrb[0].mxu0 %v1931
        %v2213 = vpop.f32.mrb[0].mxu0
        %v2214 = vadd.f32 0.0, %v2213
        %v2215 = vpop.f32.mrb[0].mxu0
        %2216 = vmatprep.mubr.f32.mxu0 0.0
        %2217 = vmatmul.mubr.f32.gmra.mrb[0].mxu0 %v1934
        %v2218 = vpop.f32.mrb[0].mxu0
        %v2219 = vadd.f32 0.0, %v2218
        %v2220 = vpop.f32.mrb[0].mxu0
        %2221 = vmatprep.mubr.f32.mxu0 0.0
        %2222 = vmatmul.mubr.f32.gmra.mrb[0].mxu0 %v1937
        %v2223 = vpop.f32.mrb[0].mxu0
        %v2224 = vadd.f32 0.0, %v2223
        %v2225 = vpop.f32.mrb[0].mxu0
        %2226 = vmatprep.mubr.f32.mxu0 0.0
        %2227 = vmatmul.mubr.f32.gmra.mrb[0].mxu0 %v1940
        %v2228 = vpop.f32.mrb[0].mxu0
        %v2229 = vadd.f32 0.0, %v2228
        %v2230 = vpop.f32.mrb[0].mxu0
        %2231 = vmatprep.mubr.f32.mxu0 0.0
        %2232 = vmatmul.mubr.f32.gmra.mrb[0].mxu0 %v1943
        %v2233 = vpop.f32.mrb[0].mxu0
        %v2234 = vadd.f32 0.0, %v2233
        %v2235 = vpop.f32.mrb[0].mxu0
        %2236 = vmatprep.mubr.f32.mxu0 0.0
        %2237 = vmatmul.mubr.f32.gmra.mrb[0].mxu0 %v1946
        %v2238 = vpop.f32.mrb[0].mxu0
        %v2239 = vadd.f32 0.0, %v2238
        %v2240 = vpop.f32.mrb[0].mxu0
        %2241 = vmatprep.mubr.f32.mxu0 0.0
        %2242 = vmatmul.mubr.f32.gmra.mrb[0].mxu0 %v1949
        %v2243 = vpop.f32.mrb[0].mxu0
        %v2244 = vadd.f32 0.0, %v2243
        %v2245 = vpop.f32.mrb[0].mxu0
        %2246 = vmatprep.mubr.f32.mxu0 0.0
        %2247 = vmatmul.mubr.f32.gmra.mrb[0].mxu0 %v1952
        %v2248 = vpop.f32.mrb[0].mxu0
        %v2249 = vadd.f32 0.0, %v2248
        %v2250 = vpop.f32.mrb[0].mxu0
        %2251 = vmatprep.mubr.f32.mxu0 0.0
        %2252 = vmatmul.mubr.f32.gmra.mrb[0].mxu0 %v1955
        %v2253 = vpop.f32.mrb[0].mxu0
        %v2254 = vadd.f32 0.0, %v2253
        %v2255 = vpop.f32.mrb[0].mxu0
        %2256 = vmatprep.mubr.f32.mxu0 0.0
        %2257 = vmatmul.mubr.f32.gmra.mrb[0].mxu0 %v1958
        %v2258 = vpop.f32.mrb[0].mxu0
        %v2259 = vadd.f32 0.0, %v2258
        %v2260 = vpop.f32.mrb[0].mxu0
        %2261 = vmatprep.mubr.f32.mxu0 0.0
        %2262 = vmatmul.mubr.f32.gmra.mrb[0].mxu0 %v1961
        %v2263 = vpop.f32.mrb[0].mxu0
        %v2264 = vadd.f32 0.0, %v2263
        %v2265 = vpop.f32.mrb[0].mxu0
        %2266 = vmatprep.mubr.f32.mxu0 0.0
        %2267 = vmatmul.mubr.f32.gmra.mrb[0].mxu0 %v1964
        %v2268 = vpop.f32.mrb[0].mxu0
        %v2269 = vadd.f32 0.0, %v2268
        %v2270 = vpop.f32.mrb[0].mxu0
        %2271 = vmatprep.mubr.f32.mxu0 0.0
        %2272 = vmatmul.mubr.f32.gmra.mrb[0].mxu0 %v1967
        %v2273 = vpop.f32.mrb[0].mxu0
        %v2274 = vadd.f32 0.0, %v2273
        %v2275 = vpop.f32.mrb[0].mxu0
        %2276 = vmatprep.mubr.f32.mxu0 0.0
        %2277 = vmatmul.mubr.f32.gmra.mrb[0].mxu0 %v1970
        %v2278 = vpop.f32.mrb[0].mxu0
        %v2279 = vadd.f32 0.0, %v2278
        %v2280 = vpop.f32.mrb[0].mxu0
        %2281 = vmatprep.mubr.f32.mxu0 0.0
        %2282 = vmatmul.mubr.f32.gmra.mrb[0].mxu0 %v1973
        %v2283 = vpop.f32.mrb[0].mxu0
        %v2284 = vadd.f32 0.0, %v2283
        %v2285 = vpop.f32.mrb[0].mxu0
        %2286 = vmatprep.mubr.f32.mxu0 0.0
        %2287 = vmatmul.mubr.f32.gmra.mrb[0].mxu0 %v1976
        %v2288 = vpop.f32.mrb[0].mxu0
        %v2289 = vadd.f32 0.0, %v2288
        %v2290 = vpop.f32.mrb[0].mxu0
        %2291 = vdwg.mxu0
        %v2293 = vsel %vm272, %v1911, 0
        %2295 = vmatprep.subr.mxu0 0.0
        %2296 = vmatpush1.msra.mxu0 %v2293
        %2297 = vmatprep.subr.mxu0 0.0
        %2298 = vmatpush1.msra.mxu0 0.0
        %2299 = vmatprep.subr.mxu0 0.0
        %2300 = vmatpush1.msra.mxu0 0.0
        %2301 = vmatprep.subr.mxu0 0.0
        %2302 = vmatpush1.msra.mxu0 0.0
        %2303 = vmatprep.subr.mxu0 0.0
        %2304 = vmatpush1.msra.mxu0 0.0
        %2305 = vmatprep.subr.mxu0 0.0
        %2306 = vmatpush1.msra.mxu0 0.0
        %2307 = vmatprep.subr.mxu0 0.0
        %2308 = vmatpush1.msra.mxu0 0.0
        %2309 = vmatprep.subr.mxu0 0.0
        %2310 = vmatpush1.msra.mxu0 0.0
        %2311 = vmatprep.subr.mxu0 0.0
        %2312 = vmatpush1.msra.mxu0 0.0
        %2313 = vmatprep.subr.mxu0 0.0
        %2314 = vmatpush1.msra.mxu0 0.0
        %2315 = vmatprep.subr.mxu0 0.0
        %2316 = vmatpush1.msra.mxu0 0.0
        %2317 = vmatprep.subr.mxu0 0.0
        %2318 = vmatpush1.msra.mxu0 0.0
        %2319 = vmatprep.subr.mxu0 0.0
        %2320 = vmatpush1.msra.mxu0 0.0
        %2321 = vmatprep.subr.mxu0 0.0
        %2322 = vmatpush1.msra.mxu0 0.0
        %2323 = vmatprep.subr.mxu0 0.0
        %2324 = vmatpush1.msra.mxu0 0.0
        %2325 = vmatprep.subr.mxu0 0.0
        %2326 = vmatpush1.msra.mxu0 0.0
        %2327 = vmatprep.subr.mxu0 0.0
        %2328 = vmatpush1.msra.mxu0 0.0
        %2329 = vmatprep.subr.mxu0 0.0
        %2330 = vmatpush1.msra.mxu0 0.0
        %2331 = vmatprep.subr.mxu0 0.0
        %2332 = vmatpush1.msra.mxu0 0.0
        %2333 = vmatprep.subr.mxu0 0.0
        %2334 = vmatpush1.msra.mxu0 0.0
        %2335 = vmatprep.subr.mxu0 0.0
        %2336 = vmatpush1.msra.mxu0 0.0
        %2337 = vmatprep.subr.mxu0 0.0
        %2338 = vmatpush1.msra.mxu0 0.0
        %2339 = vmatprep.subr.mxu0 0.0
        %2340 = vmatpush1.msra.mxu0 0.0
        %2341 = vmatprep.subr.mxu0 0.0
        %2342 = vmatpush1.msra.mxu0 0.0
        %2343 = vmatprep.subr.mxu0 0.0
        %2344 = vmatpush1.msra.mxu0 0.0
        %2345 = vmatprep.subr.mxu0 0.0
        %2346 = vmatpush1.msra.mxu0 0.0
        %2347 = vmatprep.subr.mxu0 0.0
        %2348 = vmatpush1.msra.mxu0 0.0
        %2349 = vmatprep.subr.mxu0 0.0
        %2350 = vmatpush1.msra.mxu0 0.0
        %2351 = vmatprep.subr.mxu0 0.0
        %2352 = vmatpush1.msra.mxu0 0.0
        %2353 = vmatprep.subr.mxu0 0.0
        %2354 = vmatpush1.msra.mxu0 0.0
        %2355 = vmatprep.subr.mxu0 0.0
        %2356 = vmatpush1.msra.mxu0 0.0
        %2357 = vmatprep.subr.mxu0 0.0
        %2358 = vmatpush1.msra.mxu0 0.0
        %2359 = vmatprep.mubr.f32.mxu0 0.0
        %2360 = vmatmul.mubr.f32.gmra.mrb[0].mxu0 %v1235
        %v2361 = vpop.f32.mrb[0].mxu0
        %v2362 = vadd.f32 %v2214, %v2361
        %v2363 = vpop.f32.mrb[0].mxu0
        %2364 = vmatprep.mubr.f32.mxu0 0.0
        %2365 = vmatmul.mubr.f32.gmra.mrb[0].mxu0 %v1238
        %v2366 = vpop.f32.mrb[0].mxu0
        %v2367 = vadd.f32 %v2219, %v2366
        %v2368 = vpop.f32.mrb[0].mxu0
        %2369 = vmatprep.mubr.f32.mxu0 0.0
        %2370 = vmatmul.mubr.f32.gmra.mrb[0].mxu0 %v1241
        %v2371 = vpop.f32.mrb[0].mxu0
        %v2372 = vadd.f32 %v2224, %v2371
        %v2373 = vpop.f32.mrb[0].mxu0
        %2374 = vmatprep.mubr.f32.mxu0 0.0
        %2375 = vmatmul.mubr.f32.gmra.mrb[0].mxu0 %v1244
        %v2376 = vpop.f32.mrb[0].mxu0
        %v2377 = vadd.f32 %v2229, %v2376
        %v2378 = vpop.f32.mrb[0].mxu0
        %2379 = vmatprep.mubr.f32.mxu0 0.0
        %2380 = vmatmul.mubr.f32.gmra.mrb[0].mxu0 %v1247
        %v2381 = vpop.f32.mrb[0].mxu0
        %v2382 = vadd.f32 %v2234, %v2381
        %v2383 = vpop.f32.mrb[0].mxu0
        %2384 = vmatprep.mubr.f32.mxu0 0.0
        %2385 = vmatmul.mubr.f32.gmra.mrb[0].mxu0 %v1250
        %v2386 = vpop.f32.mrb[0].mxu0
        %v2387 = vadd.f32 %v2239, %v2386
        %v2388 = vpop.f32.mrb[0].mxu0
        %2389 = vmatprep.mubr.f32.mxu0 0.0
        %2390 = vmatmul.mubr.f32.gmra.mrb[0].mxu0 %v1253
        %v2391 = vpop.f32.mrb[0].mxu0
        %v2392 = vadd.f32 %v2244, %v2391
        %v2393 = vpop.f32.mrb[0].mxu0
        %2394 = vmatprep.mubr.f32.mxu0 0.0
        %2395 = vmatmul.mubr.f32.gmra.mrb[0].mxu0 %v1256
        %v2396 = vpop.f32.mrb[0].mxu0
        %v2397 = vadd.f32 %v2249, %v2396
        %v2398 = vpop.f32.mrb[0].mxu0
        %2399 = vmatprep.mubr.f32.mxu0 0.0
        %2400 = vmatmul.mubr.f32.gmra.mrb[0].mxu0 %v1259
        %v2401 = vpop.f32.mrb[0].mxu0
        %v2402 = vadd.f32 %v2254, %v2401
        %v2403 = vpop.f32.mrb[0].mxu0
        %2404 = vmatprep.mubr.f32.mxu0 0.0
        %2405 = vmatmul.mubr.f32.gmra.mrb[0].mxu0 %v1262
        %v2406 = vpop.f32.mrb[0].mxu0
        %v2407 = vadd.f32 %v2259, %v2406
        %v2408 = vpop.f32.mrb[0].mxu0
        %2409 = vmatprep.mubr.f32.mxu0 0.0
        %2410 = vmatmul.mubr.f32.gmra.mrb[0].mxu0 %v1265
        %v2411 = vpop.f32.mrb[0].mxu0
        %v2412 = vadd.f32 %v2264, %v2411
        %v2413 = vpop.f32.mrb[0].mxu0
        %2414 = vmatprep.mubr.f32.mxu0 0.0
        %2415 = vmatmul.mubr.f32.gmra.mrb[0].mxu0 %v1268
        %v2416 = vpop.f32.mrb[0].mxu0
        %v2417 = vadd.f32 %v2269, %v2416
        %v2418 = vpop.f32.mrb[0].mxu0
        %2419 = vmatprep.mubr.f32.mxu0 0.0
        %2420 = vmatmul.mubr.f32.gmra.mrb[0].mxu0 %v1271
        %v2421 = vpop.f32.mrb[0].mxu0
        %v2422 = vadd.f32 %v2274, %v2421
        %v2423 = vpop.f32.mrb[0].mxu0
        %2424 = vmatprep.mubr.f32.mxu0 0.0
        %2425 = vmatmul.mubr.f32.gmra.mrb[0].mxu0 %v1274
        %v2426 = vpop.f32.mrb[0].mxu0
        %v2427 = vadd.f32 %v2279, %v2426
        %v2428 = vpop.f32.mrb[0].mxu0
        %2429 = vmatprep.mubr.f32.mxu0 0.0
        %2430 = vmatmul.mubr.f32.gmra.mrb[0].mxu0 %v1277
        %v2431 = vpop.f32.mrb[0].mxu0
        %v2432 = vadd.f32 %v2284, %v2431
        %v2433 = vpop.f32.mrb[0].mxu0
        %2434 = vmatprep.mubr.f32.mxu0 0.0
        %2435 = vmatmul.mubr.f32.gmra.mrb[0].mxu0 %v1280
        %v2436 = vpop.f32.mrb[0].mxu0
        %v2437 = vadd.f32 %v2289, %v2436
        %v2438 = vpop.f32.mrb[0].mxu0
        %2439 = vdwg.mxu0
        %s2440 = sadd.s32 %s184, 2
        %s2441 = smul.u32 %s2440, 24
        %s2442 = scalar_lea.vmem %s182, %s2441
        %v2443 = vld [vmem:[%s2442] sm:$0xff]
        %v2444 = vld [vmem:[%s2442 + $0x8] sm:$0xff]
        %v2445 = vld [vmem:[%s2442 + $0x18] sm:$0xff]
        %v2446 = vld [vmem:[%s2442 + $0x20] sm:$0xff]
        %v2447 = vld [vmem:[%s2442 + $0x30] sm:$0xff]
        %v2448 = vld [vmem:[%s2442 + $0x38] sm:$0xff]
        %v2449 = vld [vmem:[%s2442 + $0x48] sm:$0xff]
        %v2450 = vld [vmem:[%s2442 + $0x50] sm:$0xff]
        %v2451 = vld [vmem:[%s2442 + $0x60] sm:$0xff]
        %v2452 = vld [vmem:[%s2442 + $0x68] sm:$0xff]
        %v2453 = vld [vmem:[%s2442 + $0x78] sm:$0xff]
        %v2454 = vld [vmem:[%s2442 + $0x80] sm:$0xff]
        %v2455 = vld [vmem:[%s2442 + $0x90] sm:$0xff]
        %v2456 = vld [vmem:[%s2442 + $0x98] sm:$0xff]
        %v2457 = vld [vmem:[%s2442 + $0xa8] sm:$0xff]
        %v2458 = vld [vmem:[%s2442 + $0xb0] sm:$0xff]
        %s2459 = scalar_lea.vmem %s1, 40
        %v2460 = vld [vmem:[%s2459] sm:$0xf]
        %v2462 = vsel %vm223, %v2443, 0
        %v2465 = vsel %vm223, %v2444, 0
        %v2468 = vsel %vm223, %v2445, 0
        %v2471 = vsel %vm223, %v2446, 0
        %v2474 = vsel %vm223, %v2447, 0
        %v2477 = vsel %vm223, %v2448, 0
        %v2480 = vsel %vm223, %v2449, 0
        %v2483 = vsel %vm223, %v2450, 0
        %v2486 = vsel %vm223, %v2451, 0
        %v2489 = vsel %vm223, %v2452, 0
        %v2492 = vsel %vm223, %v2453, 0
        %v2495 = vsel %vm223, %v2454, 0
        %v2498 = vsel %vm223, %v2455, 0
        %v2501 = vsel %vm223, %v2456, 0
        %v2504 = vsel %vm223, %v2457, 0
        %v2507 = vsel %vm223, %v2458, 0
        %v2510 = vsel %vm272, %v2460, 0
        %2512 = vmatprep.subr.mxu0 0.0
        %2513 = vmatpush1.msra.mxu0 %v2510
        %2514 = vmatprep.subr.mxu0 0.0
        %2515 = vmatpush1.msra.mxu0 0.0
        %2516 = vmatprep.subr.mxu0 0.0
        %2517 = vmatpush1.msra.mxu0 0.0
        %2518 = vmatprep.subr.mxu0 0.0
        %2519 = vmatpush1.msra.mxu0 0.0
        %2520 = vmatprep.subr.mxu0 0.0
        %2521 = vmatpush1.msra.mxu0 0.0
        %2522 = vmatprep.subr.mxu0 0.0
        %2523 = vmatpush1.msra.mxu0 0.0
        %2524 = vmatprep.subr.mxu0 0.0
        %2525 = vmatpush1.msra.mxu0 0.0
        %2526 = vmatprep.subr.mxu0 0.0
        %2527 = vmatpush1.msra.mxu0 0.0
        %2528 = vmatprep.subr.mxu0 0.0
        %2529 = vmatpush1.msra.mxu0 0.0
        %2530 = vmatprep.subr.mxu0 0.0
        %2531 = vmatpush1.msra.mxu0 0.0
        %2532 = vmatprep.subr.mxu0 0.0
        %2533 = vmatpush1.msra.mxu0 0.0
        %2534 = vmatprep.subr.mxu0 0.0
        %2535 = vmatpush1.msra.mxu0 0.0
        %2536 = vmatprep.subr.mxu0 0.0
        %2537 = vmatpush1.msra.mxu0 0.0
        %2538 = vmatprep.subr.mxu0 0.0
        %2539 = vmatpush1.msra.mxu0 0.0
        %2540 = vmatprep.subr.mxu0 0.0
        %2541 = vmatpush1.msra.mxu0 0.0
        %2542 = vmatprep.subr.mxu0 0.0
        %2543 = vmatpush1.msra.mxu0 0.0
        %2544 = vmatprep.subr.mxu0 0.0
        %2545 = vmatpush1.msra.mxu0 0.0
        %2546 = vmatprep.subr.mxu0 0.0
        %2547 = vmatpush1.msra.mxu0 0.0
        %2548 = vmatprep.subr.mxu0 0.0
        %2549 = vmatpush1.msra.mxu0 0.0
        %2550 = vmatprep.subr.mxu0 0.0
        %2551 = vmatpush1.msra.mxu0 0.0
        %2552 = vmatprep.subr.mxu0 0.0
        %2553 = vmatpush1.msra.mxu0 0.0
        %2554 = vmatprep.subr.mxu0 0.0
        %2555 = vmatpush1.msra.mxu0 0.0
        %2556 = vmatprep.subr.mxu0 0.0
        %2557 = vmatpush1.msra.mxu0 0.0
        %2558 = vmatprep.subr.mxu0 0.0
        %2559 = vmatpush1.msra.mxu0 0.0
        %2560 = vmatprep.subr.mxu0 0.0
        %2561 = vmatpush1.msra.mxu0 0.0
        %2562 = vmatprep.subr.mxu0 0.0
        %2563 = vmatpush1.msra.mxu0 0.0
        %2564 = vmatprep.subr.mxu0 0.0
        %2565 = vmatpush1.msra.mxu0 0.0
        %2566 = vmatprep.subr.mxu0 0.0
        %2567 = vmatpush1.msra.mxu0 0.0
        %2568 = vmatprep.subr.mxu0 0.0
        %2569 = vmatpush1.msra.mxu0 0.0
        %2570 = vmatprep.subr.mxu0 0.0
        %2571 = vmatpush1.msra.mxu0 0.0
        %2572 = vmatprep.subr.mxu0 0.0
        %2573 = vmatpush1.msra.mxu0 0.0
        %2574 = vmatprep.subr.mxu0 0.0
        %2575 = vmatpush1.msra.mxu0 0.0
        %2576 = vmatprep.mubr.f32.mxu0 0.0
        %2577 = vmatmul.mubr.f32.gmra.mrb[0].mxu0 %v2462
        %v2578 = vpop.f32.mrb[0].mxu0
        %v2579 = vadd.f32 0.0, %v2578
        %v2580 = vpop.f32.mrb[0].mxu0
        %2581 = vmatprep.mubr.f32.mxu0 0.0
        %2582 = vmatmul.mubr.f32.gmra.mrb[0].mxu0 %v2465
        %v2583 = vpop.f32.mrb[0].mxu0
        %v2584 = vadd.f32 0.0, %v2583
        %v2585 = vpop.f32.mrb[0].mxu0
        %2586 = vmatprep.mubr.f32.mxu0 0.0
        %2587 = vmatmul.mubr.f32.gmra.mrb[0].mxu0 %v2468
        %v2588 = vpop.f32.mrb[0].mxu0
        %v2589 = vadd.f32 0.0, %v2588
        %v2590 = vpop.f32.mrb[0].mxu0
        %2591 = vmatprep.mubr.f32.mxu0 0.0
        %2592 = vmatmul.mubr.f32.gmra.mrb[0].mxu0 %v2471
        %v2593 = vpop.f32.mrb[0].mxu0
        %v2594 = vadd.f32 0.0, %v2593
        %v2595 = vpop.f32.mrb[0].mxu0
        %2596 = vmatprep.mubr.f32.mxu0 0.0
        %2597 = vmatmul.mubr.f32.gmra.mrb[0].mxu0 %v2474
        %v2598 = vpop.f32.mrb[0].mxu0
        %v2599 = vadd.f32 0.0, %v2598
        %v2600 = vpop.f32.mrb[0].mxu0
        %2601 = vmatprep.mubr.f32.mxu0 0.0
        %2602 = vmatmul.mubr.f32.gmra.mrb[0].mxu0 %v2477
        %v2603 = vpop.f32.mrb[0].mxu0
        %v2604 = vadd.f32 0.0, %v2603
        %v2605 = vpop.f32.mrb[0].mxu0
        %2606 = vmatprep.mubr.f32.mxu0 0.0
        %2607 = vmatmul.mubr.f32.gmra.mrb[0].mxu0 %v2480
        %v2608 = vpop.f32.mrb[0].mxu0
        %v2609 = vadd.f32 0.0, %v2608
        %v2610 = vpop.f32.mrb[0].mxu0
        %2611 = vmatprep.mubr.f32.mxu0 0.0
        %2612 = vmatmul.mubr.f32.gmra.mrb[0].mxu0 %v2483
        %v2613 = vpop.f32.mrb[0].mxu0
        %v2614 = vadd.f32 0.0, %v2613
        %v2615 = vpop.f32.mrb[0].mxu0
        %2616 = vmatprep.mubr.f32.mxu0 0.0
        %2617 = vmatmul.mubr.f32.gmra.mrb[0].mxu0 %v2486
        %v2618 = vpop.f32.mrb[0].mxu0
        %v2619 = vadd.f32 0.0, %v2618
        %v2620 = vpop.f32.mrb[0].mxu0
        %2621 = vmatprep.mubr.f32.mxu0 0.0
        %2622 = vmatmul.mubr.f32.gmra.mrb[0].mxu0 %v2489
        %v2623 = vpop.f32.mrb[0].mxu0
        %v2624 = vadd.f32 0.0, %v2623
        %v2625 = vpop.f32.mrb[0].mxu0
        %2626 = vmatprep.mubr.f32.mxu0 0.0
        %2627 = vmatmul.mubr.f32.gmra.mrb[0].mxu0 %v2492
        %v2628 = vpop.f32.mrb[0].mxu0
        %v2629 = vadd.f32 0.0, %v2628
        %v2630 = vpop.f32.mrb[0].mxu0
        %2631 = vmatprep.mubr.f32.mxu0 0.0
        %2632 = vmatmul.mubr.f32.gmra.mrb[0].mxu0 %v2495
        %v2633 = vpop.f32.mrb[0].mxu0
        %v2634 = vadd.f32 0.0, %v2633
        %v2635 = vpop.f32.mrb[0].mxu0
        %2636 = vmatprep.mubr.f32.mxu0 0.0
        %2637 = vmatmul.mubr.f32.gmra.mrb[0].mxu0 %v2498
        %v2638 = vpop.f32.mrb[0].mxu0
        %v2639 = vadd.f32 0.0, %v2638
        %v2640 = vpop.f32.mrb[0].mxu0
        %2641 = vmatprep.mubr.f32.mxu0 0.0
        %2642 = vmatmul.mubr.f32.gmra.mrb[0].mxu0 %v2501
        %v2643 = vpop.f32.mrb[0].mxu0
        %v2644 = vadd.f32 0.0, %v2643
        %v2645 = vpop.f32.mrb[0].mxu0
        %2646 = vmatprep.mubr.f32.mxu0 0.0
        %2647 = vmatmul.mubr.f32.gmra.mrb[0].mxu0 %v2504
        %v2648 = vpop.f32.mrb[0].mxu0
        %v2649 = vadd.f32 0.0, %v2648
        %v2650 = vpop.f32.mrb[0].mxu0
        %2651 = vmatprep.mubr.f32.mxu0 0.0
        %2652 = vmatmul.mubr.f32.gmra.mrb[0].mxu0 %v2507
        %v2653 = vpop.f32.mrb[0].mxu0
        %v2654 = vadd.f32 0.0, %v2653
        %v2655 = vpop.f32.mrb[0].mxu0
        %2656 = vdwg.mxu0
        %v2657 = vadd.f32 %v1832, %v2579
        %v2658 = vadd.f32 %v1837, %v2584
        %v2659 = vadd.f32 %v1842, %v2589
        %v2660 = vadd.f32 %v1847, %v2594
        %v2661 = vadd.f32 %v1852, %v2599
        %v2662 = vadd.f32 %v1857, %v2604
        %v2663 = vadd.f32 %v1862, %v2609
        %v2664 = vadd.f32 %v1867, %v2614
        %v2665 = vadd.f32 %v1872, %v2619
        %v2666 = vadd.f32 %v1877, %v2624
        %v2667 = vadd.f32 %v1882, %v2629
        %v2668 = vadd.f32 %v1887, %v2634
        %v2669 = vadd.f32 %v1892, %v2639
        %v2670 = vadd.f32 %v1897, %v2644
        %v2671 = vadd.f32 %v1902, %v2649
        %v2672 = vadd.f32 %v1907, %v2654
        %v2673 = vld [vmem:[%s2442 + $0x1] sm:$0xff]
        %v2674 = vld [vmem:[%s2442 + $0x9] sm:$0xff]
        %v2675 = vld [vmem:[%s2442 + $0x19] sm:$0xff]
        %v2676 = vld [vmem:[%s2442 + $0x21] sm:$0xff]
        %v2677 = vld [vmem:[%s2442 + $0x31] sm:$0xff]
        %v2678 = vld [vmem:[%s2442 + $0x39] sm:$0xff]
        %v2679 = vld [vmem:[%s2442 + $0x49] sm:$0xff]
        %v2680 = vld [vmem:[%s2442 + $0x51] sm:$0xff]
        %v2681 = vld [vmem:[%s2442 + $0x61] sm:$0xff]
        %v2682 = vld [vmem:[%s2442 + $0x69] sm:$0xff]
        %v2683 = vld [vmem:[%s2442 + $0x79] sm:$0xff]
        %v2684 = vld [vmem:[%s2442 + $0x81] sm:$0xff]
        %v2685 = vld [vmem:[%s2442 + $0x91] sm:$0xff]
        %v2686 = vld [vmem:[%s2442 + $0x99] sm:$0xff]
        %v2687 = vld [vmem:[%s2442 + $0xa9] sm:$0xff]
        %v2688 = vld [vmem:[%s2442 + $0xb1] sm:$0xff]
        %s2689 = scalar_lea.vmem %s1, 44
        %v2690 = vld [vmem:[%s2689] sm:$0xf]
        %v2692 = vsel %vm223, %v2673, 0
        %v2695 = vsel %vm223, %v2674, 0
        %v2698 = vsel %vm223, %v2675, 0
        %v2701 = vsel %vm223, %v2676, 0
        %v2704 = vsel %vm223, %v2677, 0
        %v2707 = vsel %vm223, %v2678, 0
        %v2710 = vsel %vm223, %v2679, 0
        %v2713 = vsel %vm223, %v2680, 0
        %v2716 = vsel %vm223, %v2681, 0
        %v2719 = vsel %vm223, %v2682, 0
        %v2722 = vsel %vm223, %v2683, 0
        %v2725 = vsel %vm223, %v2684, 0
        %v2728 = vsel %vm223, %v2685, 0
        %v2731 = vsel %vm223, %v2686, 0
        %v2734 = vsel %vm223, %v2687, 0
        %v2737 = vsel %vm223, %v2688, 0
        %v2740 = vsel %vm272, %v2690, 0
        %2742 = vmatprep.subr.mxu0 0.0
        %2743 = vmatpush1.msra.mxu0 %v2740
        %2744 = vmatprep.subr.mxu0 0.0
        %2745 = vmatpush1.msra.mxu0 0.0
        %2746 = vmatprep.subr.mxu0 0.0
        %2747 = vmatpush1.msra.mxu0 0.0
        %2748 = vmatprep.subr.mxu0 0.0
        %2749 = vmatpush1.msra.mxu0 0.0
        %2750 = vmatprep.subr.mxu0 0.0
        %2751 = vmatpush1.msra.mxu0 0.0
        %2752 = vmatprep.subr.mxu0 0.0
        %2753 = vmatpush1.msra.mxu0 0.0
        %2754 = vmatprep.subr.mxu0 0.0
        %2755 = vmatpush1.msra.mxu0 0.0
        %2756 = vmatprep.subr.mxu0 0.0
        %2757 = vmatpush1.msra.mxu0 0.0
        %2758 = vmatprep.subr.mxu0 0.0
        %2759 = vmatpush1.msra.mxu0 0.0
        %2760 = vmatprep.subr.mxu0 0.0
        %2761 = vmatpush1.msra.mxu0 0.0
        %2762 = vmatprep.subr.mxu0 0.0
        %2763 = vmatpush1.msra.mxu0 0.0
        %2764 = vmatprep.subr.mxu0 0.0
        %2765 = vmatpush1.msra.mxu0 0.0
        %2766 = vmatprep.subr.mxu0 0.0
        %2767 = vmatpush1.msra.mxu0 0.0
        %2768 = vmatprep.subr.mxu0 0.0
        %2769 = vmatpush1.msra.mxu0 0.0
        %2770 = vmatprep.subr.mxu0 0.0
        %2771 = vmatpush1.msra.mxu0 0.0
        %2772 = vmatprep.subr.mxu0 0.0
        %2773 = vmatpush1.msra.mxu0 0.0
        %2774 = vmatprep.subr.mxu0 0.0
        %2775 = vmatpush1.msra.mxu0 0.0
        %2776 = vmatprep.subr.mxu0 0.0
        %2777 = vmatpush1.msra.mxu0 0.0
        %2778 = vmatprep.subr.mxu0 0.0
        %2779 = vmatpush1.msra.mxu0 0.0
        %2780 = vmatprep.subr.mxu0 0.0
        %2781 = vmatpush1.msra.mxu0 0.0
        %2782 = vmatprep.subr.mxu0 0.0
        %2783 = vmatpush1.msra.mxu0 0.0
        %2784 = vmatprep.subr.mxu0 0.0
        %2785 = vmatpush1.msra.mxu0 0.0
        %2786 = vmatprep.subr.mxu0 0.0
        %2787 = vmatpush1.msra.mxu0 0.0
        %2788 = vmatprep.subr.mxu0 0.0
        %2789 = vmatpush1.msra.mxu0 0.0
        %2790 = vmatprep.subr.mxu0 0.0
        %2791 = vmatpush1.msra.mxu0 0.0
        %2792 = vmatprep.subr.mxu0 0.0
        %2793 = vmatpush1.msra.mxu0 0.0
        %2794 = vmatprep.subr.mxu0 0.0
        %2795 = vmatpush1.msra.mxu0 0.0
        %2796 = vmatprep.subr.mxu0 0.0
        %2797 = vmatpush1.msra.mxu0 0.0
        %2798 = vmatprep.subr.mxu0 0.0
        %2799 = vmatpush1.msra.mxu0 0.0
        %2800 = vmatprep.subr.mxu0 0.0
        %2801 = vmatpush1.msra.mxu0 0.0
        %2802 = vmatprep.subr.mxu0 0.0
        %2803 = vmatpush1.msra.mxu0 0.0
        %2804 = vmatprep.subr.mxu0 0.0
        %2805 = vmatpush1.msra.mxu0 0.0
        %2806 = vmatprep.mubr.f32.mxu0 0.0
        %2807 = vmatmul.mubr.f32.gmra.mrb[0].mxu0 %v2692
        %v2808 = vpop.f32.mrb[0].mxu0
        %v2809 = vadd.f32 0.0, %v2808
        %v2810 = vpop.f32.mrb[0].mxu0
        %2811 = vmatprep.mubr.f32.mxu0 0.0
        %2812 = vmatmul.mubr.f32.gmra.mrb[0].mxu0 %v2695
        %v2813 = vpop.f32.mrb[0].mxu0
        %v2814 = vadd.f32 0.0, %v2813
        %v2815 = vpop.f32.mrb[0].mxu0
        %2816 = vmatprep.mubr.f32.mxu0 0.0
        %2817 = vmatmul.mubr.f32.gmra.mrb[0].mxu0 %v2698
        %v2818 = vpop.f32.mrb[0].mxu0
        %v2819 = vadd.f32 0.0, %v2818
        %v2820 = vpop.f32.mrb[0].mxu0
        %2821 = vmatprep.mubr.f32.mxu0 0.0
        %2822 = vmatmul.mubr.f32.gmra.mrb[0].mxu0 %v2701
        %v2823 = vpop.f32.mrb[0].mxu0
        %v2824 = vadd.f32 0.0, %v2823
        %v2825 = vpop.f32.mrb[0].mxu0
        %2826 = vmatprep.mubr.f32.mxu0 0.0
        %2827 = vmatmul.mubr.f32.gmra.mrb[0].mxu0 %v2704
        %v2828 = vpop.f32.mrb[0].mxu0
        %v2829 = vadd.f32 0.0, %v2828
        %v2830 = vpop.f32.mrb[0].mxu0
        %2831 = vmatprep.mubr.f32.mxu0 0.0
        %2832 = vmatmul.mubr.f32.gmra.mrb[0].mxu0 %v2707
        %v2833 = vpop.f32.mrb[0].mxu0
        %v2834 = vadd.f32 0.0, %v2833
        %v2835 = vpop.f32.mrb[0].mxu0
        %2836 = vmatprep.mubr.f32.mxu0 0.0
        %2837 = vmatmul.mubr.f32.gmra.mrb[0].mxu0 %v2710
        %v2838 = vpop.f32.mrb[0].mxu0
        %v2839 = vadd.f32 0.0, %v2838
        %v2840 = vpop.f32.mrb[0].mxu0
        %2841 = vmatprep.mubr.f32.mxu0 0.0
        %2842 = vmatmul.mubr.f32.gmra.mrb[0].mxu0 %v2713
        %v2843 = vpop.f32.mrb[0].mxu0
        %v2844 = vadd.f32 0.0, %v2843
        %v2845 = vpop.f32.mrb[0].mxu0
        %2846 = vmatprep.mubr.f32.mxu0 0.0
        %2847 = vmatmul.mubr.f32.gmra.mrb[0].mxu0 %v2716
        %v2848 = vpop.f32.mrb[0].mxu0
        %v2849 = vadd.f32 0.0, %v2848
        %v2850 = vpop.f32.mrb[0].mxu0
        %2851 = vmatprep.mubr.f32.mxu0 0.0
        %2852 = vmatmul.mubr.f32.gmra.mrb[0].mxu0 %v2719
        %v2853 = vpop.f32.mrb[0].mxu0
        %v2854 = vadd.f32 0.0, %v2853
        %v2855 = vpop.f32.mrb[0].mxu0
        %2856 = vmatprep.mubr.f32.mxu0 0.0
        %2857 = vmatmul.mubr.f32.gmra.mrb[0].mxu0 %v2722
        %v2858 = vpop.f32.mrb[0].mxu0
        %v2859 = vadd.f32 0.0, %v2858
        %v2860 = vpop.f32.mrb[0].mxu0
        %2861 = vmatprep.mubr.f32.mxu0 0.0
        %2862 = vmatmul.mubr.f32.gmra.mrb[0].mxu0 %v2725
        %v2863 = vpop.f32.mrb[0].mxu0
        %v2864 = vadd.f32 0.0, %v2863
        %v2865 = vpop.f32.mrb[0].mxu0
        %2866 = vmatprep.mubr.f32.mxu0 0.0
        %2867 = vmatmul.mubr.f32.gmra.mrb[0].mxu0 %v2728
        %v2868 = vpop.f32.mrb[0].mxu0
        %v2869 = vadd.f32 0.0, %v2868
        %v2870 = vpop.f32.mrb[0].mxu0
        %2871 = vmatprep.mubr.f32.mxu0 0.0
        %2872 = vmatmul.mubr.f32.gmra.mrb[0].mxu0 %v2731
        %v2873 = vpop.f32.mrb[0].mxu0
        %v2874 = vadd.f32 0.0, %v2873
        %v2875 = vpop.f32.mrb[0].mxu0
        %2876 = vmatprep.mubr.f32.mxu0 0.0
        %2877 = vmatmul.mubr.f32.gmra.mrb[0].mxu0 %v2734
        %v2878 = vpop.f32.mrb[0].mxu0
        %v2879 = vadd.f32 0.0, %v2878
        %v2880 = vpop.f32.mrb[0].mxu0
        %2881 = vmatprep.mubr.f32.mxu0 0.0
        %2882 = vmatmul.mubr.f32.gmra.mrb[0].mxu0 %v2737
        %v2883 = vpop.f32.mrb[0].mxu0
        %v2884 = vadd.f32 0.0, %v2883
        %v2885 = vpop.f32.mrb[0].mxu0
        %2886 = vdwg.mxu0
        %v2887 = vadd.f32 %v2657, %v2809
        %v2888 = vadd.f32 %v2658, %v2814
        %v2889 = vadd.f32 %v2659, %v2819
        %v2890 = vadd.f32 %v2660, %v2824
        %v2891 = vadd.f32 %v2661, %v2829
        %v2892 = vadd.f32 %v2662, %v2834
        %v2893 = vadd.f32 %v2663, %v2839
        %v2894 = vadd.f32 %v2664, %v2844
        %v2895 = vadd.f32 %v2665, %v2849
        %v2896 = vadd.f32 %v2666, %v2854
        %v2897 = vadd.f32 %v2667, %v2859
        %v2898 = vadd.f32 %v2668, %v2864
        %v2899 = vadd.f32 %v2669, %v2869
        %v2900 = vadd.f32 %v2670, %v2874
        %v2901 = vadd.f32 %v2671, %v2879
        %v2902 = vadd.f32 %v2672, %v2884
        %s2903 = scalar_lea.vmem %s1, 56
        %v2904 = vld [vmem:[%s2903] sm:$0xf]
        %v2906 = vsel %vm272, %v2904, 0
        %2908 = vmatprep.subr.mxu0 0.0
        %2909 = vmatpush1.msra.mxu0 %v2906
        %2910 = vmatprep.subr.mxu0 0.0
        %2911 = vmatpush1.msra.mxu0 0.0
        %2912 = vmatprep.subr.mxu0 0.0
        %2913 = vmatpush1.msra.mxu0 0.0
        %2914 = vmatprep.subr.mxu0 0.0
        %2915 = vmatpush1.msra.mxu0 0.0
        %2916 = vmatprep.subr.mxu0 0.0
        %2917 = vmatpush1.msra.mxu0 0.0
        %2918 = vmatprep.subr.mxu0 0.0
        %2919 = vmatpush1.msra.mxu0 0.0
        %2920 = vmatprep.subr.mxu0 0.0
        %2921 = vmatpush1.msra.mxu0 0.0
        %2922 = vmatprep.subr.mxu0 0.0
        %2923 = vmatpush1.msra.mxu0 0.0
        %2924 = vmatprep.subr.mxu0 0.0
        %2925 = vmatpush1.msra.mxu0 0.0
        %2926 = vmatprep.subr.mxu0 0.0
        %2927 = vmatpush1.msra.mxu0 0.0
        %2928 = vmatprep.subr.mxu0 0.0
        %2929 = vmatpush1.msra.mxu0 0.0
        %2930 = vmatprep.subr.mxu0 0.0
        %2931 = vmatpush1.msra.mxu0 0.0
        %2932 = vmatprep.subr.mxu0 0.0
        %2933 = vmatpush1.msra.mxu0 0.0
        %2934 = vmatprep.subr.mxu0 0.0
        %2935 = vmatpush1.msra.mxu0 0.0
        %2936 = vmatprep.subr.mxu0 0.0
        %2937 = vmatpush1.msra.mxu0 0.0
        %2938 = vmatprep.subr.mxu0 0.0
        %2939 = vmatpush1.msra.mxu0 0.0
        %2940 = vmatprep.subr.mxu0 0.0
        %2941 = vmatpush1.msra.mxu0 0.0
        %2942 = vmatprep.subr.mxu0 0.0
        %2943 = vmatpush1.msra.mxu0 0.0
        %2944 = vmatprep.subr.mxu0 0.0
        %2945 = vmatpush1.msra.mxu0 0.0
        %2946 = vmatprep.subr.mxu0 0.0
        %2947 = vmatpush1.msra.mxu0 0.0
        %2948 = vmatprep.subr.mxu0 0.0
        %2949 = vmatpush1.msra.mxu0 0.0
        %2950 = vmatprep.subr.mxu0 0.0
        %2951 = vmatpush1.msra.mxu0 0.0
        %2952 = vmatprep.subr.mxu0 0.0
        %2953 = vmatpush1.msra.mxu0 0.0
        %2954 = vmatprep.subr.mxu0 0.0
        %2955 = vmatpush1.msra.mxu0 0.0
        %2956 = vmatprep.subr.mxu0 0.0
        %2957 = vmatpush1.msra.mxu0 0.0
        %2958 = vmatprep.subr.mxu0 0.0
        %2959 = vmatpush1.msra.mxu0 0.0
        %2960 = vmatprep.subr.mxu0 0.0
        %2961 = vmatpush1.msra.mxu0 0.0
        %2962 = vmatprep.subr.mxu0 0.0
        %2963 = vmatpush1.msra.mxu0 0.0
        %2964 = vmatprep.subr.mxu0 0.0
        %2965 = vmatpush1.msra.mxu0 0.0
        %2966 = vmatprep.subr.mxu0 0.0
        %2967 = vmatpush1.msra.mxu0 0.0
        %2968 = vmatprep.subr.mxu0 0.0
        %2969 = vmatpush1.msra.mxu0 0.0
        %2970 = vmatprep.subr.mxu0 0.0
        %2971 = vmatpush1.msra.mxu0 0.0
        %2972 = vmatprep.mubr.f32.mxu0 0.0
        %2973 = vmatmul.mubr.f32.gmra.mrb[0].mxu0 %v2692
        %v2974 = vpop.f32.mrb[0].mxu0
        %v2975 = vadd.f32 0.0, %v2974
        %v2976 = vpop.f32.mrb[0].mxu0
        %2977 = vmatprep.mubr.f32.mxu0 0.0
        %2978 = vmatmul.mubr.f32.gmra.mrb[0].mxu0 %v2695
        %v2979 = vpop.f32.mrb[0].mxu0
        %v2980 = vadd.f32 0.0, %v2979
        %v2981 = vpop.f32.mrb[0].mxu0
        %2982 = vmatprep.mubr.f32.mxu0 0.0
        %2983 = vmatmul.mubr.f32.gmra.mrb[0].mxu0 %v2698
        %v2984 = vpop.f32.mrb[0].mxu0
        %v2985 = vadd.f32 0.0, %v2984
        %v2986 = vpop.f32.mrb[0].mxu0
        %2987 = vmatprep.mubr.f32.mxu0 0.0
        %2988 = vmatmul.mubr.f32.gmra.mrb[0].mxu0 %v2701
        %v2989 = vpop.f32.mrb[0].mxu0
        %v2990 = vadd.f32 0.0, %v2989
        %v2991 = vpop.f32.mrb[0].mxu0
        %2992 = vmatprep.mubr.f32.mxu0 0.0
        %2993 = vmatmul.mubr.f32.gmra.mrb[0].mxu0 %v2704
        %v2994 = vpop.f32.mrb[0].mxu0
        %v2995 = vadd.f32 0.0, %v2994
        %v2996 = vpop.f32.mrb[0].mxu0
        %2997 = vmatprep.mubr.f32.mxu0 0.0
        %2998 = vmatmul.mubr.f32.gmra.mrb[0].mxu0 %v2707
        %v2999 = vpop.f32.mrb[0].mxu0
        %v3000 = vadd.f32 0.0, %v2999
        %v3001 = vpop.f32.mrb[0].mxu0
        %3002 = vmatprep.mubr.f32.mxu0 0.0
        %3003 = vmatmul.mubr.f32.gmra.mrb[0].mxu0 %v2710
        %v3004 = vpop.f32.mrb[0].mxu0
        %v3005 = vadd.f32 0.0, %v3004
        %v3006 = vpop.f32.mrb[0].mxu0
        %3007 = vmatprep.mubr.f32.mxu0 0.0
        %3008 = vmatmul.mubr.f32.gmra.mrb[0].mxu0 %v2713
        %v3009 = vpop.f32.mrb[0].mxu0
        %v3010 = vadd.f32 0.0, %v3009
        %v3011 = vpop.f32.mrb[0].mxu0
        %3012 = vmatprep.mubr.f32.mxu0 0.0
        %3013 = vmatmul.mubr.f32.gmra.mrb[0].mxu0 %v2716
        %v3014 = vpop.f32.mrb[0].mxu0
        %v3015 = vadd.f32 0.0, %v3014
        %v3016 = vpop.f32.mrb[0].mxu0
        %3017 = vmatprep.mubr.f32.mxu0 0.0
        %3018 = vmatmul.mubr.f32.gmra.mrb[0].mxu0 %v2719
        %v3019 = vpop.f32.mrb[0].mxu0
        %v3020 = vadd.f32 0.0, %v3019
        %v3021 = vpop.f32.mrb[0].mxu0
        %3022 = vmatprep.mubr.f32.mxu0 0.0
        %3023 = vmatmul.mubr.f32.gmra.mrb[0].mxu0 %v2722
        %v3024 = vpop.f32.mrb[0].mxu0
        %v3025 = vadd.f32 0.0, %v3024
        %v3026 = vpop.f32.mrb[0].mxu0
        %3027 = vmatprep.mubr.f32.mxu0 0.0
        %3028 = vmatmul.mubr.f32.gmra.mrb[0].mxu0 %v2725
        %v3029 = vpop.f32.mrb[0].mxu0
        %v3030 = vadd.f32 0.0, %v3029
        %v3031 = vpop.f32.mrb[0].mxu0
        %3032 = vmatprep.mubr.f32.mxu0 0.0
        %3033 = vmatmul.mubr.f32.gmra.mrb[0].mxu0 %v2728
        %v3034 = vpop.f32.mrb[0].mxu0
        %v3035 = vadd.f32 0.0, %v3034
        %v3036 = vpop.f32.mrb[0].mxu0
        %3037 = vmatprep.mubr.f32.mxu0 0.0
        %3038 = vmatmul.mubr.f32.gmra.mrb[0].mxu0 %v2731
        %v3039 = vpop.f32.mrb[0].mxu0
        %v3040 = vadd.f32 0.0, %v3039
        %v3041 = vpop.f32.mrb[0].mxu0
        %3042 = vmatprep.mubr.f32.mxu0 0.0
        %3043 = vmatmul.mubr.f32.gmra.mrb[0].mxu0 %v2734
        %v3044 = vpop.f32.mrb[0].mxu0
        %v3045 = vadd.f32 0.0, %v3044
        %v3046 = vpop.f32.mrb[0].mxu0
        %3047 = vmatprep.mubr.f32.mxu0 0.0
        %3048 = vmatmul.mubr.f32.gmra.mrb[0].mxu0 %v2737
        %v3049 = vpop.f32.mrb[0].mxu0
        %v3050 = vadd.f32 0.0, %v3049
        %v3051 = vpop.f32.mrb[0].mxu0
        %3052 = vdwg.mxu0
        %v3053 = vadd.f32 %v2362, %v2975
        %v3054 = vadd.f32 %v2367, %v2980
        %v3055 = vadd.f32 %v2372, %v2985
        %v3056 = vadd.f32 %v2377, %v2990
        %v3057 = vadd.f32 %v2382, %v2995
        %v3058 = vadd.f32 %v2387, %v3000
        %v3059 = vadd.f32 %v2392, %v3005
        %v3060 = vadd.f32 %v2397, %v3010
        %v3061 = vadd.f32 %v2402, %v3015
        %v3062 = vadd.f32 %v2407, %v3020
        %v3063 = vadd.f32 %v2412, %v3025
        %v3064 = vadd.f32 %v2417, %v3030
        %v3065 = vadd.f32 %v2422, %v3035
        %v3066 = vadd.f32 %v2427, %v3040
        %v3067 = vadd.f32 %v2432, %v3045
        %v3068 = vadd.f32 %v2437, %v3050
        %v3069 = vld [vmem:[%s2442 + $0x2] sm:$0xff]
        %v3070 = vld [vmem:[%s2442 + $0xa] sm:$0xff]
        %v3071 = vld [vmem:[%s2442 + $0x1a] sm:$0xff]
        %v3072 = vld [vmem:[%s2442 + $0x22] sm:$0xff]
        %v3073 = vld [vmem:[%s2442 + $0x32] sm:$0xff]
        %v3074 = vld [vmem:[%s2442 + $0x3a] sm:$0xff]
        %v3075 = vld [vmem:[%s2442 + $0x4a] sm:$0xff]
        %v3076 = vld [vmem:[%s2442 + $0x52] sm:$0xff]
        %v3077 = vld [vmem:[%s2442 + $0x62] sm:$0xff]
        %v3078 = vld [vmem:[%s2442 + $0x6a] sm:$0xff]
        %v3079 = vld [vmem:[%s2442 + $0x7a] sm:$0xff]
        %v3080 = vld [vmem:[%s2442 + $0x82] sm:$0xff]
        %v3081 = vld [vmem:[%s2442 + $0x92] sm:$0xff]
        %v3082 = vld [vmem:[%s2442 + $0x9a] sm:$0xff]
        %v3083 = vld [vmem:[%s2442 + $0xaa] sm:$0xff]
        %v3084 = vld [vmem:[%s2442 + $0xb2] sm:$0xff]
        %s3085 = scalar_lea.vmem %s1, 60
        %v3086 = vld [vmem:[%s3085] sm:$0xf]
        %v3088 = vsel %vm223, %v3069, 0
        %v3091 = vsel %vm223, %v3070, 0
        %v3094 = vsel %vm223, %v3071, 0
        %v3097 = vsel %vm223, %v3072, 0
        %v3100 = vsel %vm223, %v3073, 0
        %v3103 = vsel %vm223, %v3074, 0
        %v3106 = vsel %vm223, %v3075, 0
        %v3109 = vsel %vm223, %v3076, 0
        %v3112 = vsel %vm223, %v3077, 0
        %v3115 = vsel %vm223, %v3078, 0
        %v3118 = vsel %vm223, %v3079, 0
        %v3121 = vsel %vm223, %v3080, 0
        %v3124 = vsel %vm223, %v3081, 0
        %v3127 = vsel %vm223, %v3082, 0
        %v3130 = vsel %vm223, %v3083, 0
        %v3133 = vsel %vm223, %v3084, 0
        %v3136 = vsel %vm272, %v3086, 0
        %3138 = vmatprep.subr.mxu0 0.0
        %3139 = vmatpush1.msra.mxu0 %v3136
        %3140 = vmatprep.subr.mxu0 0.0
        %3141 = vmatpush1.msra.mxu0 0.0
        %3142 = vmatprep.subr.mxu0 0.0
        %3143 = vmatpush1.msra.mxu0 0.0
        %3144 = vmatprep.subr.mxu0 0.0
        %3145 = vmatpush1.msra.mxu0 0.0
        %3146 = vmatprep.subr.mxu0 0.0
        %3147 = vmatpush1.msra.mxu0 0.0
        %3148 = vmatprep.subr.mxu0 0.0
        %3149 = vmatpush1.msra.mxu0 0.0
        %3150 = vmatprep.subr.mxu0 0.0
        %3151 = vmatpush1.msra.mxu0 0.0
        %3152 = vmatprep.subr.mxu0 0.0
        %3153 = vmatpush1.msra.mxu0 0.0
        %3154 = vmatprep.subr.mxu0 0.0
        %3155 = vmatpush1.msra.mxu0 0.0
        %3156 = vmatprep.subr.mxu0 0.0
        %3157 = vmatpush1.msra.mxu0 0.0
        %3158 = vmatprep.subr.mxu0 0.0
        %3159 = vmatpush1.msra.mxu0 0.0
        %3160 = vmatprep.subr.mxu0 0.0
        %3161 = vmatpush1.msra.mxu0 0.0
        %3162 = vmatprep.subr.mxu0 0.0
        %3163 = vmatpush1.msra.mxu0 0.0
        %3164 = vmatprep.subr.mxu0 0.0
        %3165 = vmatpush1.msra.mxu0 0.0
        %3166 = vmatprep.subr.mxu0 0.0
        %3167 = vmatpush1.msra.mxu0 0.0
        %3168 = vmatprep.subr.mxu0 0.0
        %3169 = vmatpush1.msra.mxu0 0.0
        %3170 = vmatprep.subr.mxu0 0.0
        %3171 = vmatpush1.msra.mxu0 0.0
        %3172 = vmatprep.subr.mxu0 0.0
        %3173 = vmatpush1.msra.mxu0 0.0
        %3174 = vmatprep.subr.mxu0 0.0
        %3175 = vmatpush1.msra.mxu0 0.0
        %3176 = vmatprep.subr.mxu0 0.0
        %3177 = vmatpush1.msra.mxu0 0.0
        %3178 = vmatprep.subr.mxu0 0.0
        %3179 = vmatpush1.msra.mxu0 0.0
        %3180 = vmatprep.subr.mxu0 0.0
        %3181 = vmatpush1.msra.mxu0 0.0
        %3182 = vmatprep.subr.mxu0 0.0
        %3183 = vmatpush1.msra.mxu0 0.0
        %3184 = vmatprep.subr.mxu0 0.0
        %3185 = vmatpush1.msra.mxu0 0.0
        %3186 = vmatprep.subr.mxu0 0.0
        %3187 = vmatpush1.msra.mxu0 0.0
        %3188 = vmatprep.subr.mxu0 0.0
        %3189 = vmatpush1.msra.mxu0 0.0
        %3190 = vmatprep.subr.mxu0 0.0
        %3191 = vmatpush1.msra.mxu0 0.0
        %3192 = vmatprep.subr.mxu0 0.0
        %3193 = vmatpush1.msra.mxu0 0.0
        %3194 = vmatprep.subr.mxu0 0.0
        %3195 = vmatpush1.msra.mxu0 0.0
        %3196 = vmatprep.subr.mxu0 0.0
        %3197 = vmatpush1.msra.mxu0 0.0
        %3198 = vmatprep.subr.mxu0 0.0
        %3199 = vmatpush1.msra.mxu0 0.0
        %3200 = vmatprep.subr.mxu0 0.0
        %3201 = vmatpush1.msra.mxu0 0.0
        %3202 = vmatprep.mubr.f32.mxu0 0.0
        %3203 = vmatmul.mubr.f32.gmra.mrb[0].mxu0 %v3088
        %v3204 = vpop.f32.mrb[0].mxu0
        %v3205 = vadd.f32 0.0, %v3204
        %v3206 = vpop.f32.mrb[0].mxu0
        %3207 = vmatprep.mubr.f32.mxu0 0.0
        %3208 = vmatmul.mubr.f32.gmra.mrb[0].mxu0 %v3091
        %v3209 = vpop.f32.mrb[0].mxu0
        %v3210 = vadd.f32 0.0, %v3209
        %v3211 = vpop.f32.mrb[0].mxu0
        %3212 = vmatprep.mubr.f32.mxu0 0.0
        %3213 = vmatmul.mubr.f32.gmra.mrb[0].mxu0 %v3094
        %v3214 = vpop.f32.mrb[0].mxu0
        %v3215 = vadd.f32 0.0, %v3214
        %v3216 = vpop.f32.mrb[0].mxu0
        %3217 = vmatprep.mubr.f32.mxu0 0.0
        %3218 = vmatmul.mubr.f32.gmra.mrb[0].mxu0 %v3097
        %v3219 = vpop.f32.mrb[0].mxu0
        %v3220 = vadd.f32 0.0, %v3219
        %v3221 = vpop.f32.mrb[0].mxu0
        %3222 = vmatprep.mubr.f32.mxu0 0.0
        %3223 = vmatmul.mubr.f32.gmra.mrb[0].mxu0 %v3100
        %v3224 = vpop.f32.mrb[0].mxu0
        %v3225 = vadd.f32 0.0, %v3224
        %v3226 = vpop.f32.mrb[0].mxu0
        %3227 = vmatprep.mubr.f32.mxu0 0.0
        %3228 = vmatmul.mubr.f32.gmra.mrb[0].mxu0 %v3103
        %v3229 = vpop.f32.mrb[0].mxu0
        %v3230 = vadd.f32 0.0, %v3229
        %v3231 = vpop.f32.mrb[0].mxu0
        %3232 = vmatprep.mubr.f32.mxu0 0.0
        %3233 = vmatmul.mubr.f32.gmra.mrb[0].mxu0 %v3106
        %v3234 = vpop.f32.mrb[0].mxu0
        %v3235 = vadd.f32 0.0, %v3234
        %v3236 = vpop.f32.mrb[0].mxu0
        %3237 = vmatprep.mubr.f32.mxu0 0.0
        %3238 = vmatmul.mubr.f32.gmra.mrb[0].mxu0 %v3109
        %v3239 = vpop.f32.mrb[0].mxu0
        %v3240 = vadd.f32 0.0, %v3239
        %v3241 = vpop.f32.mrb[0].mxu0
        %3242 = vmatprep.mubr.f32.mxu0 0.0
        %3243 = vmatmul.mubr.f32.gmra.mrb[0].mxu0 %v3112
        %v3244 = vpop.f32.mrb[0].mxu0
        %v3245 = vadd.f32 0.0, %v3244
        %v3246 = vpop.f32.mrb[0].mxu0
        %3247 = vmatprep.mubr.f32.mxu0 0.0
        %3248 = vmatmul.mubr.f32.gmra.mrb[0].mxu0 %v3115
        %v3249 = vpop.f32.mrb[0].mxu0
        %v3250 = vadd.f32 0.0, %v3249
        %v3251 = vpop.f32.mrb[0].mxu0
        %3252 = vmatprep.mubr.f32.mxu0 0.0
        %3253 = vmatmul.mubr.f32.gmra.mrb[0].mxu0 %v3118
        %v3254 = vpop.f32.mrb[0].mxu0
        %v3255 = vadd.f32 0.0, %v3254
        %v3256 = vpop.f32.mrb[0].mxu0
        %3257 = vmatprep.mubr.f32.mxu0 0.0
        %3258 = vmatmul.mubr.f32.gmra.mrb[0].mxu0 %v3121
        %v3259 = vpop.f32.mrb[0].mxu0
        %v3260 = vadd.f32 0.0, %v3259
        %v3261 = vpop.f32.mrb[0].mxu0
        %3262 = vmatprep.mubr.f32.mxu0 0.0
        %3263 = vmatmul.mubr.f32.gmra.mrb[0].mxu0 %v3124
        %v3264 = vpop.f32.mrb[0].mxu0
        %v3265 = vadd.f32 0.0, %v3264
        %v3266 = vpop.f32.mrb[0].mxu0
        %3267 = vmatprep.mubr.f32.mxu0 0.0
        %3268 = vmatmul.mubr.f32.gmra.mrb[0].mxu0 %v3127
        %v3269 = vpop.f32.mrb[0].mxu0
        %v3270 = vadd.f32 0.0, %v3269
        %v3271 = vpop.f32.mrb[0].mxu0
        %3272 = vmatprep.mubr.f32.mxu0 0.0
        %3273 = vmatmul.mubr.f32.gmra.mrb[0].mxu0 %v3130
        %v3274 = vpop.f32.mrb[0].mxu0
        %v3275 = vadd.f32 0.0, %v3274
        %v3276 = vpop.f32.mrb[0].mxu0
        %3277 = vmatprep.mubr.f32.mxu0 0.0
        %3278 = vmatmul.mubr.f32.gmra.mrb[0].mxu0 %v3133
        %v3279 = vpop.f32.mrb[0].mxu0
        %v3280 = vadd.f32 0.0, %v3279
        %v3281 = vpop.f32.mrb[0].mxu0
        %3282 = vdwg.mxu0
        %v3283 = vadd.f32 %v3053, %v3205
        %v3284 = vadd.f32 %v3054, %v3210
        %v3285 = vadd.f32 %v3055, %v3215
        %v3286 = vadd.f32 %v3056, %v3220
        %v3287 = vadd.f32 %v3057, %v3225
        %v3288 = vadd.f32 %v3058, %v3230
        %v3289 = vadd.f32 %v3059, %v3235
        %v3290 = vadd.f32 %v3060, %v3240
        %v3291 = vadd.f32 %v3061, %v3245
        %v3292 = vadd.f32 %v3062, %v3250
        %v3293 = vadd.f32 %v3063, %v3255
        %v3294 = vadd.f32 %v3064, %v3260
        %v3295 = vadd.f32 %v3065, %v3265
        %v3296 = vadd.f32 %v3066, %v3270
        %v3297 = vadd.f32 %v3067, %v3275
        %v3298 = vadd.f32 %v3068, %v3280
        %v3300 = vlaneseq
        %v3301 = vshrl.u32 %v3300, 7
        %v3302 = vsub.s32 0, %v3301
        %v3303 = vrot.slane %v185, %v3302
        %v3305 = vadd.f32 %v1430, %v3303
        %v3306 = vadd.f32 %v1431, %v3303
        %v3307 = vadd.f32 %v1432, %v3303
        %v3308 = vadd.f32 %v1433, %v3303
        %v3309 = vadd.f32 %v1434, %v3303
        %v3310 = vadd.f32 %v1435, %v3303
        %v3311 = vadd.f32 %v1436, %v3303
        %v3312 = vadd.f32 %v1437, %v3303
        %v3313 = vadd.f32 %v1438, %v3303
        %v3314 = vadd.f32 %v1439, %v3303
        %v3315 = vadd.f32 %v1440, %v3303
        %v3316 = vadd.f32 %v1441, %v3303
        %v3317 = vadd.f32 %v1442, %v3303
        %v3318 = vadd.f32 %v1443, %v3303
        %v3319 = vadd.f32 %v1444, %v3303
        %v3320 = vadd.f32 %v1445, %v3303
        %v3321 = vmax.f32 %v3305, 0.0
        %v3322 = vmax.f32 %v3306, 0.0
        %v3323 = vmax.f32 %v3307, 0.0
        %v3324 = vmax.f32 %v3308, 0.0
        %v3325 = vmax.f32 %v3309, 0.0
        %v3326 = vmax.f32 %v3310, 0.0
        %v3327 = vmax.f32 %v3311, 0.0
        %v3328 = vmax.f32 %v3312, 0.0
        %v3329 = vmax.f32 %v3313, 0.0
        %v3330 = vmax.f32 %v3314, 0.0
        %v3331 = vmax.f32 %v3315, 0.0
        %v3332 = vmax.f32 %v3316, 0.0
        %v3333 = vmax.f32 %v3317, 0.0
        %v3334 = vmax.f32 %v3318, 0.0
        %v3335 = vmax.f32 %v3319, 0.0
        %v3336 = vmax.f32 %v3320, 0.0
        %vm3337 = vcmask 64512
        %3338 = vst.msk [vmem:[%s177] sm:$0xff] %vm3337, %v3321
        %3339 = vst.msk [vmem:[%s177 + $0x8] sm:$0xff] %vm3337, %v3322
        %3340 = vst.msk [vmem:[%s177 + $0x20] sm:$0xff] %vm3337, %v3323
        %3341 = vst.msk [vmem:[%s177 + $0x28] sm:$0xff] %vm3337, %v3324
        %3342 = vst.msk [vmem:[%s177 + $0x40] sm:$0xff] %vm3337, %v3325
        %3343 = vst.msk [vmem:[%s177 + $0x48] sm:$0xff] %vm3337, %v3326
        %3344 = vst.msk [vmem:[%s177 + $0x60] sm:$0xff] %vm3337, %v3327
        %3345 = vst.msk [vmem:[%s177 + $0x68] sm:$0xff] %vm3337, %v3328
        %3346 = vst.msk [vmem:[%s177 + $0x80] sm:$0xff] %vm3337, %v3329
        %3347 = vst.msk [vmem:[%s177 + $0x88] sm:$0xff] %vm3337, %v3330
        %3348 = vst.msk [vmem:[%s177 + $0xa0] sm:$0xff] %vm3337, %v3331
        %3349 = vst.msk [vmem:[%s177 + $0xa8] sm:$0xff] %vm3337, %v3332
        %3350 = vst.msk [vmem:[%s177 + $0xc0] sm:$0xff] %vm3337, %v3333
        %3351 = vst.msk [vmem:[%s177 + $0xc8] sm:$0xff] %vm3337, %v3334
        %3352 = vst.msk [vmem:[%s177 + $0xe0] sm:$0xff] %vm3337, %v3335
        %3353 = vst.msk [vmem:[%s177 + $0xe8] sm:$0xff] %vm3337, %v3336
        %v3354 = vadd.f32 %v2126, %v3303
        %v3355 = vadd.f32 %v2127, %v3303
        %v3356 = vadd.f32 %v2128, %v3303
        %v3357 = vadd.f32 %v2129, %v3303
        %v3358 = vadd.f32 %v2130, %v3303
        %v3359 = vadd.f32 %v2131, %v3303
        %v3360 = vadd.f32 %v2132, %v3303
        %v3361 = vadd.f32 %v2133, %v3303
        %v3362 = vadd.f32 %v2134, %v3303
        %v3363 = vadd.f32 %v2135, %v3303
        %v3364 = vadd.f32 %v2136, %v3303
        %v3365 = vadd.f32 %v2137, %v3303
        %v3366 = vadd.f32 %v2138, %v3303
        %v3367 = vadd.f32 %v2139, %v3303
        %v3368 = vadd.f32 %v2140, %v3303
        %v3369 = vadd.f32 %v2141, %v3303
        %v3370 = vmax.f32 %v3354, 0.0
        %v3371 = vmax.f32 %v3355, 0.0
        %v3372 = vmax.f32 %v3356, 0.0
        %v3373 = vmax.f32 %v3357, 0.0
        %v3374 = vmax.f32 %v3358, 0.0
        %v3375 = vmax.f32 %v3359, 0.0
        %v3376 = vmax.f32 %v3360, 0.0
        %v3377 = vmax.f32 %v3361, 0.0
        %v3378 = vmax.f32 %v3362, 0.0
        %v3379 = vmax.f32 %v3363, 0.0
        %v3380 = vmax.f32 %v3364, 0.0
        %v3381 = vmax.f32 %v3365, 0.0
        %v3382 = vmax.f32 %v3366, 0.0
        %v3383 = vmax.f32 %v3367, 0.0
        %v3384 = vmax.f32 %v3368, 0.0
        %v3385 = vmax.f32 %v3369, 0.0
        %3402 = vrot.lane.b32.xlu0 %v3370, 8
        %v3403 = vpop.permute.xlu0 %3402
        %3404 = vrot.lane.b32.xlu0 %v3371, 8
        %v3405 = vpop.permute.xlu0 %3404
        %3406 = vrot.lane.b32.xlu0 %v3372, 8
        %v3407 = vpop.permute.xlu0 %3406
        %3408 = vrot.lane.b32.xlu0 %v3373, 8
        %v3409 = vpop.permute.xlu0 %3408
        %3410 = vrot.lane.b32.xlu0 %v3374, 8
        %v3411 = vpop.permute.xlu0 %3410
        %3412 = vrot.lane.b32.xlu0 %v3375, 8
        %v3413 = vpop.permute.xlu0 %3412
        %3414 = vrot.lane.b32.xlu0 %v3376, 8
        %v3415 = vpop.permute.xlu0 %3414
        %3416 = vrot.lane.b32.xlu0 %v3377, 8
        %v3417 = vpop.permute.xlu0 %3416
        %3418 = vrot.lane.b32.xlu0 %v3378, 8
        %v3419 = vpop.permute.xlu0 %3418
        %3420 = vrot.lane.b32.xlu0 %v3379, 8
        %v3421 = vpop.permute.xlu0 %3420
        %3422 = vrot.lane.b32.xlu0 %v3380, 8
        %v3423 = vpop.permute.xlu0 %3422
        %3424 = vrot.lane.b32.xlu0 %v3381, 8
        %v3425 = vpop.permute.xlu0 %3424
        %3426 = vrot.lane.b32.xlu0 %v3382, 8
        %v3427 = vpop.permute.xlu0 %3426
        %3428 = vrot.lane.b32.xlu0 %v3383, 8
        %v3429 = vpop.permute.xlu0 %3428
        %3430 = vrot.lane.b32.xlu0 %v3384, 8
        %v3431 = vpop.permute.xlu0 %3430
        %3432 = vrot.lane.b32.xlu0 %v3385, 8
        %v3433 = vpop.permute.xlu0 %3432
        %vm3450 = vcmask 130112
        %3451 = vst.msk [vmem:[%s177] sm:$0xff] %vm3450, %v3403
        %3452 = vst.msk [vmem:[%s177 + $0x8] sm:$0xff] %vm3450, %v3405
        %3453 = vst.msk [vmem:[%s177 + $0x20] sm:$0xff] %vm3450, %v3407
        %3454 = vst.msk [vmem:[%s177 + $0x28] sm:$0xff] %vm3450, %v3409
        %3455 = vst.msk [vmem:[%s177 + $0x40] sm:$0xff] %vm3450, %v3411
        %3456 = vst.msk [vmem:[%s177 + $0x48] sm:$0xff] %vm3450, %v3413
        %3457 = vst.msk [vmem:[%s177 + $0x60] sm:$0xff] %vm3450, %v3415
        %3458 = vst.msk [vmem:[%s177 + $0x68] sm:$0xff] %vm3450, %v3417
        %3459 = vst.msk [vmem:[%s177 + $0x80] sm:$0xff] %vm3450, %v3419
        %3460 = vst.msk [vmem:[%s177 + $0x88] sm:$0xff] %vm3450, %v3421
        %3461 = vst.msk [vmem:[%s177 + $0xa0] sm:$0xff] %vm3450, %v3423
        %3462 = vst.msk [vmem:[%s177 + $0xa8] sm:$0xff] %vm3450, %v3425
        %3463 = vst.msk [vmem:[%s177 + $0xc0] sm:$0xff] %vm3450, %v3427
        %3464 = vst.msk [vmem:[%s177 + $0xc8] sm:$0xff] %vm3450, %v3429
        %3465 = vst.msk [vmem:[%s177 + $0xe0] sm:$0xff] %vm3450, %v3431
        %3466 = vst.msk [vmem:[%s177 + $0xe8] sm:$0xff] %vm3450, %v3433
        %v3467 = vadd.f32 %v2887, %v3303
        %v3468 = vadd.f32 %v2888, %v3303
        %v3469 = vadd.f32 %v2889, %v3303
        %v3470 = vadd.f32 %v2890, %v3303
        %v3471 = vadd.f32 %v2891, %v3303
        %v3472 = vadd.f32 %v2892, %v3303
        %v3473 = vadd.f32 %v2893, %v3303
        %v3474 = vadd.f32 %v2894, %v3303
        %v3475 = vadd.f32 %v2895, %v3303
        %v3476 = vadd.f32 %v2896, %v3303
        %v3477 = vadd.f32 %v2897, %v3303
        %v3478 = vadd.f32 %v2898, %v3303
        %v3479 = vadd.f32 %v2899, %v3303
        %v3480 = vadd.f32 %v2900, %v3303
        %v3481 = vadd.f32 %v2901, %v3303
        %v3482 = vadd.f32 %v2902, %v3303
        %v3483 = vmax.f32 %v3467, 0.0
        %v3484 = vmax.f32 %v3468, 0.0
        %v3485 = vmax.f32 %v3469, 0.0
        %v3486 = vmax.f32 %v3470, 0.0
        %v3487 = vmax.f32 %v3471, 0.0
        %v3488 = vmax.f32 %v3472, 0.0
        %v3489 = vmax.f32 %v3473, 0.0
        %v3490 = vmax.f32 %v3474, 0.0
        %v3491 = vmax.f32 %v3475, 0.0
        %v3492 = vmax.f32 %v3476, 0.0
        %v3493 = vmax.f32 %v3477, 0.0
        %v3494 = vmax.f32 %v3478, 0.0
        %v3495 = vmax.f32 %v3479, 0.0
        %v3496 = vmax.f32 %v3480, 0.0
        %v3497 = vmax.f32 %v3481, 0.0
        %v3498 = vmax.f32 %v3482, 0.0
        %s3499 = scalar_lea.vmem %s177, 16 [#allocation2]
        %3500 = vst.msk [vmem:[%s3499] sm:$0xff] %vm3337, %v3483
        %3501 = vst.msk [vmem:[%s3499 + $0x8] sm:$0xff] %vm3337, %v3484
        %3502 = vst.msk [vmem:[%s3499 + $0x20] sm:$0xff] %vm3337, %v3485
        %3503 = vst.msk [vmem:[%s3499 + $0x28] sm:$0xff] %vm3337, %v3486
        %3504 = vst.msk [vmem:[%s3499 + $0x40] sm:$0xff] %vm3337, %v3487
        %3505 = vst.msk [vmem:[%s3499 + $0x48] sm:$0xff] %vm3337, %v3488
        %3506 = vst.msk [vmem:[%s3499 + $0x60] sm:$0xff] %vm3337, %v3489
        %3507 = vst.msk [vmem:[%s3499 + $0x68] sm:$0xff] %vm3337, %v3490
        %3508 = vst.msk [vmem:[%s3499 + $0x80] sm:$0xff] %vm3337, %v3491
        %3509 = vst.msk [vmem:[%s3499 + $0x88] sm:$0xff] %vm3337, %v3492
        %3510 = vst.msk [vmem:[%s3499 + $0xa0] sm:$0xff] %vm3337, %v3493
        %3511 = vst.msk [vmem:[%s3499 + $0xa8] sm:$0xff] %vm3337, %v3494
        %3512 = vst.msk [vmem:[%s3499 + $0xc0] sm:$0xff] %vm3337, %v3495
        %3513 = vst.msk [vmem:[%s3499 + $0xc8] sm:$0xff] %vm3337, %v3496
        %3514 = vst.msk [vmem:[%s3499 + $0xe0] sm:$0xff] %vm3337, %v3497
        %3515 = vst.msk [vmem:[%s3499 + $0xe8] sm:$0xff] %vm3337, %v3498
        %v3516 = vadd.f32 %v3283, %v3303
        %v3517 = vadd.f32 %v3284, %v3303
        %v3518 = vadd.f32 %v3285, %v3303
        %v3519 = vadd.f32 %v3286, %v3303
        %v3520 = vadd.f32 %v3287, %v3303
        %v3521 = vadd.f32 %v3288, %v3303
        %v3522 = vadd.f32 %v3289, %v3303
        %v3523 = vadd.f32 %v3290, %v3303
        %v3524 = vadd.f32 %v3291, %v3303
        %v3525 = vadd.f32 %v3292, %v3303
        %v3526 = vadd.f32 %v3293, %v3303
        %v3527 = vadd.f32 %v3294, %v3303
        %v3528 = vadd.f32 %v3295, %v3303
        %v3529 = vadd.f32 %v3296, %v3303
        %v3530 = vadd.f32 %v3297, %v3303
        %v3531 = vadd.f32 %v3298, %v3303
        %v3532 = vmax.f32 %v3516, 0.0
        %v3533 = vmax.f32 %v3517, 0.0
        %v3534 = vmax.f32 %v3518, 0.0
        %v3535 = vmax.f32 %v3519, 0.0
        %v3536 = vmax.f32 %v3520, 0.0
        %v3537 = vmax.f32 %v3521, 0.0
        %v3538 = vmax.f32 %v3522, 0.0
        %v3539 = vmax.f32 %v3523, 0.0
        %v3540 = vmax.f32 %v3524, 0.0
        %v3541 = vmax.f32 %v3525, 0.0
        %v3542 = vmax.f32 %v3526, 0.0
        %v3543 = vmax.f32 %v3527, 0.0
        %v3544 = vmax.f32 %v3528, 0.0
        %v3545 = vmax.f32 %v3529, 0.0
        %v3546 = vmax.f32 %v3530, 0.0
        %v3547 = vmax.f32 %v3531, 0.0
        %3564 = vrot.lane.b32.xlu0 %v3532, 8
        %v3565 = vpop.permute.xlu0 %3564
        %3566 = vrot.lane.b32.xlu0 %v3533, 8
        %v3567 = vpop.permute.xlu0 %3566
        %3568 = vrot.lane.b32.xlu0 %v3534, 8
        %v3569 = vpop.permute.xlu0 %3568
        %3570 = vrot.lane.b32.xlu0 %v3535, 8
        %v3571 = vpop.permute.xlu0 %3570
        %3572 = vrot.lane.b32.xlu0 %v3536, 8
        %v3573 = vpop.permute.xlu0 %3572
        %3574 = vrot.lane.b32.xlu0 %v3537, 8
        %v3575 = vpop.permute.xlu0 %3574
        %3576 = vrot.lane.b32.xlu0 %v3538, 8
        %v3577 = vpop.permute.xlu0 %3576
        %3578 = vrot.lane.b32.xlu0 %v3539, 8
        %v3579 = vpop.permute.xlu0 %3578
        %3580 = vrot.lane.b32.xlu0 %v3540, 8
        %v3581 = vpop.permute.xlu0 %3580
        %3582 = vrot.lane.b32.xlu0 %v3541, 8
        %v3583 = vpop.permute.xlu0 %3582
        %3584 = vrot.lane.b32.xlu0 %v3542, 8
        %v3585 = vpop.permute.xlu0 %3584
        %3586 = vrot.lane.b32.xlu0 %v3543, 8
        %v3587 = vpop.permute.xlu0 %3586
        %3588 = vrot.lane.b32.xlu0 %v3544, 8
        %v3589 = vpop.permute.xlu0 %3588
        %3590 = vrot.lane.b32.xlu0 %v3545, 8
        %v3591 = vpop.permute.xlu0 %3590
        %3592 = vrot.lane.b32.xlu0 %v3546, 8
        %v3593 = vpop.permute.xlu0 %3592
        %3594 = vrot.lane.b32.xlu0 %v3547, 8
        %v3595 = vpop.permute.xlu0 %3594
        %3612 = vst.msk [vmem:[%s3499] sm:$0xff] %vm3450, %v3565
        %3613 = vst.msk [vmem:[%s3499 + $0x8] sm:$0xff] %vm3450, %v3567
        %3614 = vst.msk [vmem:[%s3499 + $0x20] sm:$0xff] %vm3450, %v3569
        %3615 = vst.msk [vmem:[%s3499 + $0x28] sm:$0xff] %vm3450, %v3571
        %3616 = vst.msk [vmem:[%s3499 + $0x40] sm:$0xff] %vm3450, %v3573
        %3617 = vst.msk [vmem:[%s3499 + $0x48] sm:$0xff] %vm3450, %v3575
        %3618 = vst.msk [vmem:[%s3499 + $0x60] sm:$0xff] %vm3450, %v3577
        %3619 = vst.msk [vmem:[%s3499 + $0x68] sm:$0xff] %vm3450, %v3579
        %3620 = vst.msk [vmem:[%s3499 + $0x80] sm:$0xff] %vm3450, %v3581
        %3621 = vst.msk [vmem:[%s3499 + $0x88] sm:$0xff] %vm3450, %v3583
        %3622 = vst.msk [vmem:[%s3499 + $0xa0] sm:$0xff] %vm3450, %v3585
        %3623 = vst.msk [vmem:[%s3499 + $0xa8] sm:$0xff] %vm3450, %v3587
        %3624 = vst.msk [vmem:[%s3499 + $0xc0] sm:$0xff] %vm3450, %v3589
        %3625 = vst.msk [vmem:[%s3499 + $0xc8] sm:$0xff] %vm3450, %v3591
        %3626 = vst.msk [vmem:[%s3499 + $0xe0] sm:$0xff] %vm3450, %v3593
        %3627 = vst.msk [vmem:[%s3499 + $0xe8] sm:$0xff] %vm3450, %v3595
        %s3628 = sand.u32 %s107, 1
        %s3629 = scalar_lea.sflag [#allocation3], %s3628
        %s3630 = sand.u32 %s107, 1
        %s3631 = smul.addr %s3630, 256
        %s3632 = scalar_lea.vmem [#allocation2], %s3631
        // Predicated region
        $region33: #{tpu_custom_call.1} parent=31 // pred_check
          %p3633 = pneg %p117
        $region34: #{tpu_custom_call.1} parent=31 // pred_check_branch
          %3635 = sbr.rel (%p3633) target = $region36
        $region35: #{tpu_custom_call.1} parent=31 // pred_region
          %s3636 = smul.u32 8, %s22
          %s3638 = ssub.s32 4096, 4096
          %3639 = vsyncadd %s3629, %s3638
          %s3640 = smul.addr %s3636, 4
          %s3641 = smul.addr %s21, 64
          %s3642 = sadd.s32 %s3640, %s3641
          %s3643 = smul.addr %s3642, 128
          %s3644 = scalar_lea.hbm %s3, %s3643
          %s3645 = sshll.u32 %s3632, 4
          %s3646 = int_to_ptr.vmem [resolvable:$true] %s3645
          %3651 = dma.vmem_to_hbm [thread:$0]  %s3646, 4096, %s3644, %s3629, 128, 128, 8
        $region36: #{tpu_custom_call.1} parent=31 // pred_fallthru
          _
      $region32: #{tpu_custom_call.1} parent=5 // pred_fallthru
        _
      %p3652 = scmp.le.s32.totalorder 2, %s12
      // Predicated region
      $region37: #{tpu_custom_call.1} parent=5 // pred_check
        %p3653 = pneg %p3652
      $region38: #{tpu_custom_call.1} parent=5 // pred_check_branch
        %3655 = sbr.rel (%p3653) target = $region40
      $region39: #{tpu_custom_call.1} parent=5 // pred_region
        %s3656 = ssub.s32 %s12, 2
        // Predicated region
        $region41: #{tpu_custom_call.1} parent=39 // pred_check
          %p3657 = pneg %p123
        $region42: #{tpu_custom_call.1} parent=39 // pred_check_branch
          %3659 = sbr.rel (%p3657) target = $region44
        $region43: #{tpu_custom_call.1} parent=39 // pred_region
          %s3660 = sand.u32 %s108, 1
          %s3661 = scalar_lea.sflag [#allocation3], %s3660
          %s3662 = sand.u32 %s108, 1
          %s3663 = smul.addr %s3662, 256
          %s3664 = scalar_lea.vmem [#allocation2], %s3663
          %3665 = dma.done %s3661, 4096
        $region44: #{tpu_custom_call.1} parent=39 // pred_fallthru
          _
      $region40: #{tpu_custom_call.1} parent=5 // pred_fallthru
        _
    $region6: #{tpu_custom_call.1} parent=1 // loop_footer
      %s16 = sadd.s32 1, %s12
    $region7: #{tpu_custom_call.1} parent=1 // loop_footer_branch
      %11 = sbr.rel target = $region3
    $region8: #{tpu_custom_call.1} parent=1 // loop_exit
      _
    %3666 = vsyncpa [#allocation3], 1
    %s3667 = scalar_lea.sflag [#allocation3], 1
    %3668 = vsyncpa %s3667, 1

</llo_original>
